<compile_context>
chip_gen: v7x
topology: tpu7x:2x2x1
jax: 0.10.0
libtpu: 0.0.40
codegen_flags: <defaults>
</compile_context>

<pallas_src>
from functools import partial

import jax
import jax.numpy as jnp
from jax.experimental import pallas as pl
from jax.experimental.pallas import tpu as pltpu


def _round_up(x, m):
    return (x + m - 1) // m * m


def _device_kind():
    try:
        return jax.devices()[0].device_kind.lower()
    except Exception:
        return ""


def _choose_block_b(batch, max_block=8, min_grid=1):
    """Largest divisor of `batch` (<= max_block) that still leaves >= min_grid steps."""
    divisors = [d for d in range(1, min(batch, max_block) + 1) if batch % d == 0]
    ok = [d for d in divisors if batch // d >= min_grid]
    return max(ok) if ok else max(divisors)


def _attention_kernel(*refs, num_heads, head_dim, has_bias, exp_dtype):
    if has_bias:
        bias_ref, x_ref, wqkv_ref, bqkv_ref, wo_ref, bo_ref, o_ref = refs
    else:
        x_ref, wqkv_ref, bqkv_ref, wo_ref, bo_ref, o_ref = refs
        bias_ref = None

    Bt, Np, Cp = x_ref.shape
    dh = head_dim

    # Fused QKV projection over the whole batch tile: one [Bt*Np, Cp] x [Cp, 3Cp]
    # MXU matmul (bf16 operands, f32 accumulation), bias added in f32.
    x = x_ref[...].reshape(Bt * Np, Cp)                          # bf16
    qkv = jnp.dot(x, wqkv_ref[...], preferred_element_type=jnp.float32)
    qkv = (qkv + bqkv_ref[...]).astype(x.dtype)                  # [Bt*Np, 3Cp] bf16

    per_batch = []
    for b in range(Bt):                                          # static unroll
        qkv_b = qkv[b * Np:(b + 1) * Np, :]                      # sublane slice
        key_bias = bias_ref[b] if has_bias else None             # [1, Np] f32
        per_head = []
        for h in range(num_heads):                               # static unroll
            q_h = qkv_b[:, h * dh:(h + 1) * dh]                  # [Np, dh]
            k_h = qkv_b[:, Cp + h * dh:Cp + (h + 1) * dh]        # [Np, dh]
            v_h = qkv_b[:, 2 * Cp + h * dh:2 * Cp + (h + 1) * dh]

            # scores = q_h @ k_h.T  (softmax scale already folded into wq/bq)
            s = jax.lax.dot_general(q_h, k_h, (((1,), (1,)), ((), ())),
                                    preferred_element_type=jnp.float32)  # [Np, Np]
            if has_bias:
                s = s + key_bias                                 # 0 / -1e9 additive

            m = jnp.max(s, axis=-1, keepdims=True)
            p = jnp.exp((s - m).astype(exp_dtype))               # bf16 exp on v6e/v7x
            l = jnp.sum(p.astype(jnp.float32), axis=-1, keepdims=True)

            # Unnormalized weighted sum of values, then one cheap EUP reciprocal.
            o_h = jnp.dot(p.astype(x.dtype), v_h,
                          preferred_element_type=jnp.float32)    # [Np, dh] f32
            per_head.append(o_h * pl.reciprocal(l, approx=True))
        per_batch.append(jnp.concatenate(per_head, axis=-1))     # [Np, C] f32

    attn = per_batch[0] if Bt == 1 else jnp.concatenate(per_batch, axis=0)
    attn = attn.astype(x.dtype)                                  # single bf16 cast

    # Output 1x1 conv: [Bt*Np, C] x [C, Cp] + bias (f32 accumulation).
    out = jnp.dot(attn, wo_ref[...], preferred_element_type=jnp.float32) + bo_ref[...]
    o_ref[...] = out.reshape(Bt, Np, Cp).astype(o_ref.dtype)     # bf16 store


def attention_layer(x_nchw, params, mask=None, *, num_heads):
    """params: dict with 'wq','bq','wk','bk','wv','bv','wo','bo'.
       Weights have shape (C_out, C_in) (1x1 conv weights squeezed)."""
    B, C, H, W = x_nchw.shape
    assert C % num_heads == 0, "channels must be divisible by num_heads"
    N = H * W
    head_dim = C // num_heads
    scale = head_dim ** -0.5
    out_dtype = x_nchw.dtype

    Cp = _round_up(C, 128)          # lane-dense channels
    Np = _round_up(N, 16)           # bf16 sublane packing (16 rows / vreg)

    kind = _device_kind()
    is_v5 = "v5" in kind
    num_cores = 2 if "v7" in kind else 1
    Bt = _choose_block_b(B, max_block=8, min_grid=num_cores)
    # bf16 exp on v6e/v7x (EUP-bound path); f32 exp on v5e (no bf16 EUP/VPU).
    exp_dtype = jnp.float32 if is_v5 else jnp.bfloat16
    vmem_limit = (56 if num_cores == 2 else 96) * 1024 * 1024

    # NCHW -> [B, N, C] in bf16 (no f32 staging copy), then zero-pad.
    x = jnp.transpose(x_nchw.astype(jnp.bfloat16).reshape(B, C, N), (0, 2, 1))
    x = jnp.pad(x, ((0, 0), (0, Np - N), (0, Cp - C)))

    def pad_w(w_t):                 # (C, C) -> (Cp, Cp) f32
        return jnp.pad(w_t.astype(jnp.float32), ((0, Cp - C), (0, Cp - C)))

    def pad_b(b):                   # (C,) -> (1, Cp) f32
        return jnp.pad(b.astype(jnp.float32).reshape(1, C), ((0, 0), (0, Cp - C)))

    # Pre-transpose conv weights so the kernel does x @ W^T as x @ w_t; fold the
    # softmax scale into the query projection (weight AND bias).
    wq_t = params['wq'].T * scale
    bq = params['bq'] * scale
    wqkv = jnp.concatenate(
        [pad_w(wq_t), pad_w(params['wk'].T), pad_w(params['wv'].T)],
        axis=1).astype(jnp.bfloat16)                        # (Cp, 3*Cp) bf16
    bqkv = jnp.concatenate(
        [pad_b(bq), pad_b(params['bk']), pad_b(params['bv'])],
        axis=1)                                             # (1, 3*Cp) f32
    # Output weight: contraction dim stays C (matches concatenated head outputs);
    # only the output dim is padded to Cp.
    wo_t = jnp.pad(params['wo'].T.astype(jnp.float32),
                   ((0, 0), (0, Cp - C))).astype(jnp.bfloat16)   # (C, Cp) bf16
    bo = pad_b(params['bo'])                                     # (1, Cp) f32

    has_bias = (mask is not None) or (Np != N)

    args = []
    in_specs = []
    if has_bias:
        if mask is not None:
            # jnp.where handles non-binary masks exactly like the reference.
            key_bias = jnp.where(mask.reshape(B, 1, N) == 0,
                                 jnp.float32(-1e9), jnp.float32(0.0))
        else:
            key_bias = jnp.zeros((B, 1, N), jnp.float32)
        if Np != N:
            key_bias = jnp.concatenate(
                [key_bias, jnp.full((B, 1, Np - N), -1e9, jnp.float32)], axis=-1)
        args.append(key_bias)
        in_specs.append(pl.BlockSpec((Bt, 1, Np), lambda b: (b, 0, 0)))

    args += [x, wqkv, bqkv, wo_t, bo]
    in_specs += [
        pl.BlockSpec((Bt, Np, Cp), lambda b: (b, 0, 0)),    # x (Bt batch elems/step)
        pl.BlockSpec((Cp, 3 * Cp), lambda b: (0, 0)),       # fused qkv weight
        pl.BlockSpec((1, 3 * Cp), lambda b: (0, 0)),        # fused qkv bias
        pl.BlockSpec((C, Cp), lambda b: (0, 0)),            # output weight
        pl.BlockSpec((1, Cp), lambda b: (0, 0)),            # output bias
    ]

    kernel = partial(_attention_kernel, num_heads=num_heads, head_dim=head_dim,
                     has_bias=has_bias, exp_dtype=exp_dtype)

    out = pl.pallas_call(
        kernel,
        out_shape=jax.ShapeDtypeStruct((B, Np, Cp), jnp.bfloat16),
        grid_spec=pltpu.PrefetchScalarGridSpec(
            num_scalar_prefetch=0,
            grid=(B // Bt,),
            in_specs=in_specs,
            out_specs=pl.BlockSpec((Bt, Np, Cp), lambda b: (b, 0, 0)),
        ),
        compiler_params=pltpu.CompilerParams(
            dimension_semantics=("parallel",),
            vmem_limit_bytes=vmem_limit),
    )(*args)

    # Strip padding / transpose in bf16, cast to the caller dtype at the end.
    out = out[:, :N, :C]
    out = jnp.transpose(out, (0, 2, 1)).reshape(B, C, H, W)
    return out.astype(out_dtype)


def _reference(x, params, num_heads, mask=None):
    """Pure-JAX (f32) mirror of the PyTorch forward, for verification."""
    B, C, H, W = x.shape
    N = H * W
    dh = C // num_heads
    scale = dh ** -0.5

    def conv1x1(z, w, b):
        return jnp.einsum('oc,bchw->bohw', w, z) + b[None, :, None, None]

    q = conv1x1(x, params['wq'], params['bq'])
    k = conv1x1(x, params['wk'], params['bk'])
    v = conv1x1(x, params['wv'], params['bv'])
    q = q.reshape(B, num_heads, dh, N).transpose(0, 1, 3, 2)
    k = k.reshape(B, num_heads, dh, N).transpose(0, 1, 3, 2)
    v = v.reshape(B, num_heads, dh, N).transpose(0, 1, 3, 2)
    s = jnp.einsum('bhnd,bhmd->bhnm', q, k) * scale
    if mask is not None:
        s = jnp.where(mask.reshape(B, 1, 1, N) == 0, -1e9, s)
    w_ = jax.nn.softmax(s, axis=-1)
    o = jnp.einsum('bhnm,bhmd->bhnd', w_, v)
    o = o.transpose(0, 1, 3, 2).reshape(B, C, H, W)
    return conv1x1(o, params['wo'], params['bo'])


if __name__ == "__main__":
    C, H, W = 32, 8, 8
    num_heads = 4

    key = jax.random.PRNGKey(0)
    ks = jax.random.split(key, 8)
    params = {
        'wq': jax.random.normal(ks[0], (C, C), jnp.float32) * 0.05,
        'bq': jax.random.normal(ks[1], (C,),   jnp.float32) * 0.05,
        'wk': jax.random.normal(ks[2], (C, C), jnp.float32) * 0.05,
        'bk': jax.random.normal(ks[3], (C,),   jnp.float32) * 0.05,
        'wv': jax.random.normal(ks[4], (C, C), jnp.float32) * 0.05,
        'bv': jax.random.normal(ks[5], (C,),   jnp.float32) * 0.05,
        'wo': jax.random.normal(ks[6], (C, C), jnp.float32) * 0.05,
        'bo': jax.random.normal(ks[7], (C,),   jnp.float32) * 0.05,
    }

    # 1) mask=None path (no bias ref compiled in), B=2.
    B = 2
    x = jax.random.normal(jax.random.PRNGKey(1), (B, C, H, W), jnp.float32)
    out = jax.block_until_ready(attention_layer(x, params, num_heads=num_heads))
    ref = _reference(x, params, num_heads)
    assert out.shape == (B, C, H, W)
    assert jnp.allclose(out, ref, rtol=5e-2, atol=5e-3), \
        f"no-mask mismatch, max abs diff={jnp.max(jnp.abs(out - ref))}"

    # 2) masked path (mask == 0 -> key position ignored), B=2.
    mask = (jnp.arange(H * W) % 4 != 3).astype(jnp.float32)
    mask = jnp.broadcast_to(mask[None, :], (B, H * W))
    out_m = jax.block_until_ready(
        attention_layer(x, params, mask=mask, num_heads=num_heads))
    ref_m = _reference(x, params, num_heads, mask=mask)
    assert jnp.allclose(out_m, ref_m, rtol=5e-2, atol=5e-3), \
        f"mask mismatch, max abs diff={jnp.max(jnp.abs(out_m - ref_m))}"

    # 3) larger batch to exercise batch blocking (Bt>1) and multiple grid steps.
    B2 = 16
    x2 = jax.random.normal(jax.random.PRNGKey(2), (B2, C, H, W), jnp.float32)
    out2 = jax.block_until_ready(attention_layer(x2, params, num_heads=num_heads))
    ref2 = _reference(x2, params, num_heads)
    assert jnp.allclose(out2, ref2, rtol=5e-2, atol=5e-3), \
        f"batched mismatch, max abs diff={jnp.max(jnp.abs(out2 - ref2))}"

    print("KERNEL_OK")
</pallas_src>

<mosaic_0001>
module attributes {stable_mosaic.version = 11 : i64} {
  func.func @_attention_kernel(%arg0: i32, %arg1: memref<2x64x128xbf16, #tpu.memory_space<vmem>>, %arg2: memref<128x384xbf16, #tpu.memory_space<vmem>>, %arg3: memref<1x384xf32, #tpu.memory_space<vmem>>, %arg4: memref<32x128xbf16, #tpu.memory_space<vmem>>, %arg5: memref<1x128xf32, #tpu.memory_space<vmem>>, %arg6: memref<2x64x128xbf16, #tpu.memory_space<vmem>>) attributes {dimension_semantics = [#tpu.dimension_semantics<parallel>], iteration_bounds = array<i64: 1>, scalar_prefetch = 0 : i64, scratch_operands = 0 : i64, tpu.core_type = #tpu.core_type<tc>, window_params = [{transform_indices = @transform_0, window_bounds = array<i64: 2, 64, 128>}, {pipeline_mode = #tpu.pipeline_mode<synchronous>, transform_indices = @transform_1, window_bounds = array<i64: 128, 384>}, {pipeline_mode = #tpu.pipeline_mode<synchronous>, transform_indices = @transform_2, window_bounds = array<i64: 1, 384>}, {pipeline_mode = #tpu.pipeline_mode<synchronous>, transform_indices = @transform_3, window_bounds = array<i64: 32, 128>}, {pipeline_mode = #tpu.pipeline_mode<synchronous>, transform_indices = @transform_4, window_bounds = array<i64: 1, 128>}, {transform_indices = @transform_5, window_bounds = array<i64: 2, 64, 128>}]} {
    %c0 = arith.constant 0 : index
    %c0_0 = arith.constant 0 : index
    %c0_1 = arith.constant 0 : index
    %0 = vector.load %arg1[%c0, %c0_0, %c0_1] : memref<2x64x128xbf16, #tpu.memory_space<vmem>>, vector<2x64x128xbf16>
    %1 = vector.shape_cast %0 : vector<2x64x128xbf16> to vector<128x128xbf16>
    %c0_2 = arith.constant 0 : index
    %c0_3 = arith.constant 0 : index
    %2 = vector.load %arg2[%c0_2, %c0_3] : memref<128x384xbf16, #tpu.memory_space<vmem>>, vector<128x384xbf16>
    %cst = arith.constant dense<0.000000e+00> : vector<128x384xf32>
    %3 = tpu.matmul %1, %2, %cst {dimension_numbers = #tpu.dot_dimension_numbers<[1], [0], [0], [1], [0, 0, 1, 1], [], []>} : vector<128x128xbf16>, vector<128x384xbf16>, vector<128x384xf32> -> vector<128x384xf32>
    %c0_4 = arith.constant 0 : index
    %c0_5 = arith.constant 0 : index
    %4 = vector.load %arg3[%c0_4, %c0_5] : memref<1x384xf32, #tpu.memory_space<vmem>>, vector<1x384xf32>
    %5 = vector.broadcast %4 : vector<1x384xf32> to vector<128x384xf32>
    %6 = arith.addf %3, %5 : vector<128x384xf32>
    %7 = arith.truncf %6 : vector<128x384xf32> to vector<128x384xbf16>
    %8 = vector.extract_strided_slice %7 {offsets = [0, 0], sizes = [64, 384], strides = [1, 1]} : vector<128x384xbf16> to vector<64x384xbf16>
    %9 = vector.extract_strided_slice %8 {offsets = [0, 0], sizes = [64, 8], strides = [1, 1]} : vector<64x384xbf16> to vector<64x8xbf16>
    %10 = vector.extract_strided_slice %8 {offsets = [0, 128], sizes = [64, 8], strides = [1, 1]} : vector<64x384xbf16> to vector<64x8xbf16>
    %11 = vector.extract_strided_slice %8 {offsets = [0, 256], sizes = [64, 8], strides = [1, 1]} : vector<64x384xbf16> to vector<64x8xbf16>
    %cst_6 = arith.constant dense<0.000000e+00> : vector<64x64xf32>
    %12 = tpu.matmul %9, %10, %cst_6 {dimension_numbers = #tpu.dot_dimension_numbers<[1], [1], [0], [0], [0, 0, 1, 0], [], []>} : vector<64x8xbf16>, vector<64x8xbf16>, vector<64x64xf32> -> vector<64x64xf32>
    %cst_7 = arith.constant dense<0xFF800000> : vector<64xf32>
    %13 = vector.multi_reduction <maximumf>, %12, %cst_7 [1] : vector<64x64xf32> to vector<64xf32>
    %14 = vector.shape_cast %13 : vector<64xf32> to vector<64x1xf32>
    %15 = vector.broadcast %14 : vector<64x1xf32> to vector<64x64xf32>
    %16 = arith.subf %12, %15 : vector<64x64xf32>
    %17 = arith.truncf %16 : vector<64x64xf32> to vector<64x64xbf16>
    %18 = math.exp %17 : vector<64x64xbf16>
    %19 = arith.extf %18 : vector<64x64xbf16> to vector<64x64xf32>
    %cst_8 = arith.constant dense<0.000000e+00> : vector<64xf32>
    %20 = vector.multi_reduction <add>, %19, %cst_8 [1] : vector<64x64xf32> to vector<64xf32>
    %21 = vector.shape_cast %20 : vector<64xf32> to vector<64x1xf32>
    %cst_9 = arith.constant dense<0.000000e+00> : vector<64x8xf32>
    %22 = tpu.matmul %18, %11, %cst_9 {dimension_numbers = #tpu.dot_dimension_numbers<[1], [0], [0], [1], [0, 0, 1, 1], [], []>} : vector<64x64xbf16>, vector<64x8xbf16>, vector<64x8xf32> -> vector<64x8xf32>
    %23 = tpu.reciprocal %21 {approx = true} : vector<64x1xf32> -> vector<64x1xf32>
    %24 = vector.broadcast %23 : vector<64x1xf32> to vector<64x8xf32>
    %25 = arith.mulf %22, %24 : vector<64x8xf32>
    %26 = vector.extract_strided_slice %8 {offsets = [0, 8], sizes = [64, 8], strides = [1, 1]} : vector<64x384xbf16> to vector<64x8xbf16>
    %27 = vector.extract_strided_slice %8 {offsets = [0, 136], sizes = [64, 8], strides = [1, 1]} : vector<64x384xbf16> to vector<64x8xbf16>
    %28 = vector.extract_strided_slice %8 {offsets = [0, 264], sizes = [64, 8], strides = [1, 1]} : vector<64x384xbf16> to vector<64x8xbf16>
    %cst_10 = arith.constant dense<0.000000e+00> : vector<64x64xf32>
    %29 = tpu.matmul %26, %27, %cst_10 {dimension_numbers = #tpu.dot_dimension_numbers<[1], [1], [0], [0], [0, 0, 1, 0], [], []>} : vector<64x8xbf16>, vector<64x8xbf16>, vector<64x64xf32> -> vector<64x64xf32>
    %cst_11 = arith.constant dense<0xFF800000> : vector<64xf32>
    %30 = vector.multi_reduction <maximumf>, %29, %cst_11 [1] : vector<64x64xf32> to vector<64xf32>
    %31 = vector.shape_cast %30 : vector<64xf32> to vector<64x1xf32>
    %32 = vector.broadcast %31 : vector<64x1xf32> to vector<64x64xf32>
    %33 = arith.subf %29, %32 : vector<64x64xf32>
    %34 = arith.truncf %33 : vector<64x64xf32> to vector<64x64xbf16>
    %35 = math.exp %34 : vector<64x64xbf16>
    %36 = arith.extf %35 : vector<64x64xbf16> to vector<64x64xf32>
    %cst_12 = arith.constant dense<0.000000e+00> : vector<64xf32>
    %37 = vector.multi_reduction <add>, %36, %cst_12 [1] : vector<64x64xf32> to vector<64xf32>
    %38 = vector.shape_cast %37 : vector<64xf32> to vector<64x1xf32>
    %cst_13 = arith.constant dense<0.000000e+00> : vector<64x8xf32>
    %39 = tpu.matmul %35, %28, %cst_13 {dimension_numbers = #tpu.dot_dimension_numbers<[1], [0], [0], [1], [0, 0, 1, 1], [], []>} : vector<64x64xbf16>, vector<64x8xbf16>, vector<64x8xf32> -> vector<64x8xf32>
    %40 = tpu.reciprocal %38 {approx = true} : vector<64x1xf32> -> vector<64x1xf32>
    %41 = vector.broadcast %40 : vector<64x1xf32> to vector<64x8xf32>
    %42 = arith.mulf %39, %41 : vector<64x8xf32>
    %43 = vector.extract_strided_slice %8 {offsets = [0, 16], sizes = [64, 8], strides = [1, 1]} : vector<64x384xbf16> to vector<64x8xbf16>
    %44 = vector.extract_strided_slice %8 {offsets = [0, 144], sizes = [64, 8], strides = [1, 1]} : vector<64x384xbf16> to vector<64x8xbf16>
    %45 = vector.extract_strided_slice %8 {offsets = [0, 272], sizes = [64, 8], strides = [1, 1]} : vector<64x384xbf16> to vector<64x8xbf16>
    %cst_14 = arith.constant dense<0.000000e+00> : vector<64x64xf32>
    %46 = tpu.matmul %43, %44, %cst_14 {dimension_numbers = #tpu.dot_dimension_numbers<[1], [1], [0], [0], [0, 0, 1, 0], [], []>} : vector<64x8xbf16>, vector<64x8xbf16>, vector<64x64xf32> -> vector<64x64xf32>
    %cst_15 = arith.constant dense<0xFF800000> : vector<64xf32>
    %47 = vector.multi_reduction <maximumf>, %46, %cst_15 [1] : vector<64x64xf32> to vector<64xf32>
    %48 = vector.shape_cast %47 : vector<64xf32> to vector<64x1xf32>
    %49 = vector.broadcast %48 : vector<64x1xf32> to vector<64x64xf32>
    %50 = arith.subf %46, %49 : vector<64x64xf32>
    %51 = arith.truncf %50 : vector<64x64xf32> to vector<64x64xbf16>
    %52 = math.exp %51 : vector<64x64xbf16>
    %53 = arith.extf %52 : vector<64x64xbf16> to vector<64x64xf32>
    %cst_16 = arith.constant dense<0.000000e+00> : vector<64xf32>
    %54 = vector.multi_reduction <add>, %53, %cst_16 [1] : vector<64x64xf32> to vector<64xf32>
    %55 = vector.shape_cast %54 : vector<64xf32> to vector<64x1xf32>
    %cst_17 = arith.constant dense<0.000000e+00> : vector<64x8xf32>
    %56 = tpu.matmul %52, %45, %cst_17 {dimension_numbers = #tpu.dot_dimension_numbers<[1], [0], [0], [1], [0, 0, 1, 1], [], []>} : vector<64x64xbf16>, vector<64x8xbf16>, vector<64x8xf32> -> vector<64x8xf32>
    %57 = tpu.reciprocal %55 {approx = true} : vector<64x1xf32> -> vector<64x1xf32>
    %58 = vector.broadcast %57 : vector<64x1xf32> to vector<64x8xf32>
    %59 = arith.mulf %56, %58 : vector<64x8xf32>
    %60 = vector.extract_strided_slice %8 {offsets = [0, 24], sizes = [64, 8], strides = [1, 1]} : vector<64x384xbf16> to vector<64x8xbf16>
    %61 = vector.extract_strided_slice %8 {offsets = [0, 152], sizes = [64, 8], strides = [1, 1]} : vector<64x384xbf16> to vector<64x8xbf16>
    %62 = vector.extract_strided_slice %8 {offsets = [0, 280], sizes = [64, 8], strides = [1, 1]} : vector<64x384xbf16> to vector<64x8xbf16>
    %cst_18 = arith.constant dense<0.000000e+00> : vector<64x64xf32>
    %63 = tpu.matmul %60, %61, %cst_18 {dimension_numbers = #tpu.dot_dimension_numbers<[1], [1], [0], [0], [0, 0, 1, 0], [], []>} : vector<64x8xbf16>, vector<64x8xbf16>, vector<64x64xf32> -> vector<64x64xf32>
    %cst_19 = arith.constant dense<0xFF800000> : vector<64xf32>
    %64 = vector.multi_reduction <maximumf>, %63, %cst_19 [1] : vector<64x64xf32> to vector<64xf32>
    %65 = vector.shape_cast %64 : vector<64xf32> to vector<64x1xf32>
    %66 = vector.broadcast %65 : vector<64x1xf32> to vector<64x64xf32>
    %67 = arith.subf %63, %66 : vector<64x64xf32>
    %68 = arith.truncf %67 : vector<64x64xf32> to vector<64x64xbf16>
    %69 = math.exp %68 : vector<64x64xbf16>
    %70 = arith.extf %69 : vector<64x64xbf16> to vector<64x64xf32>
    %cst_20 = arith.constant dense<0.000000e+00> : vector<64xf32>
    %71 = vector.multi_reduction <add>, %70, %cst_20 [1] : vector<64x64xf32> to vector<64xf32>
    %72 = vector.shape_cast %71 : vector<64xf32> to vector<64x1xf32>
    %cst_21 = arith.constant dense<0.000000e+00> : vector<64x8xf32>
    %73 = tpu.matmul %69, %62, %cst_21 {dimension_numbers = #tpu.dot_dimension_numbers<[1], [0], [0], [1], [0, 0, 1, 1], [], []>} : vector<64x64xbf16>, vector<64x8xbf16>, vector<64x8xf32> -> vector<64x8xf32>
    %74 = tpu.reciprocal %72 {approx = true} : vector<64x1xf32> -> vector<64x1xf32>
    %75 = vector.broadcast %74 : vector<64x1xf32> to vector<64x8xf32>
    %76 = arith.mulf %73, %75 : vector<64x8xf32>
    %77 = tpu.concatenate %25, %42, %59, %76 in 1 : vector<64x8xf32>, vector<64x8xf32>, vector<64x8xf32>, vector<64x8xf32> -> vector<64x32xf32>
    %78 = vector.extract_strided_slice %7 {offsets = [64, 0], sizes = [64, 384], strides = [1, 1]} : vector<128x384xbf16> to vector<64x384xbf16>
    %79 = vector.extract_strided_slice %78 {offsets = [0, 0], sizes = [64, 8], strides = [1, 1]} : vector<64x384xbf16> to vector<64x8xbf16>
    %80 = vector.extract_strided_slice %78 {offsets = [0, 128], sizes = [64, 8], strides = [1, 1]} : vector<64x384xbf16> to vector<64x8xbf16>
    %81 = vector.extract_strided_slice %78 {offsets = [0, 256], sizes = [64, 8], strides = [1, 1]} : vector<64x384xbf16> to vector<64x8xbf16>
    %cst_22 = arith.constant dense<0.000000e+00> : vector<64x64xf32>
    %82 = tpu.matmul %79, %80, %cst_22 {dimension_numbers = #tpu.dot_dimension_numbers<[1], [1], [0], [0], [0, 0, 1, 0], [], []>} : vector<64x8xbf16>, vector<64x8xbf16>, vector<64x64xf32> -> vector<64x64xf32>
    %cst_23 = arith.constant dense<0xFF800000> : vector<64xf32>
    %83 = vector.multi_reduction <maximumf>, %82, %cst_23 [1] : vector<64x64xf32> to vector<64xf32>
    %84 = vector.shape_cast %83 : vector<64xf32> to vector<64x1xf32>
    %85 = vector.broadcast %84 : vector<64x1xf32> to vector<64x64xf32>
    %86 = arith.subf %82, %85 : vector<64x64xf32>
    %87 = arith.truncf %86 : vector<64x64xf32> to vector<64x64xbf16>
    %88 = math.exp %87 : vector<64x64xbf16>
    %89 = arith.extf %88 : vector<64x64xbf16> to vector<64x64xf32>
    %cst_24 = arith.constant dense<0.000000e+00> : vector<64xf32>
    %90 = vector.multi_reduction <add>, %89, %cst_24 [1] : vector<64x64xf32> to vector<64xf32>
    %91 = vector.shape_cast %90 : vector<64xf32> to vector<64x1xf32>
    %cst_25 = arith.constant dense<0.000000e+00> : vector<64x8xf32>
    %92 = tpu.matmul %88, %81, %cst_25 {dimension_numbers = #tpu.dot_dimension_numbers<[1], [0], [0], [1], [0, 0, 1, 1], [], []>} : vector<64x64xbf16>, vector<64x8xbf16>, vector<64x8xf32> -> vector<64x8xf32>
    %93 = tpu.reciprocal %91 {approx = true} : vector<64x1xf32> -> vector<64x1xf32>
    %94 = vector.broadcast %93 : vector<64x1xf32> to vector<64x8xf32>
    %95 = arith.mulf %92, %94 : vector<64x8xf32>
    %96 = vector.extract_strided_slice %78 {offsets = [0, 8], sizes = [64, 8], strides = [1, 1]} : vector<64x384xbf16> to vector<64x8xbf16>
    %97 = vector.extract_strided_slice %78 {offsets = [0, 136], sizes = [64, 8], strides = [1, 1]} : vector<64x384xbf16> to vector<64x8xbf16>
    %98 = vector.extract_strided_slice %78 {offsets = [0, 264], sizes = [64, 8], strides = [1, 1]} : vector<64x384xbf16> to vector<64x8xbf16>
    %cst_26 = arith.constant dense<0.000000e+00> : vector<64x64xf32>
    %99 = tpu.matmul %96, %97, %cst_26 {dimension_numbers = #tpu.dot_dimension_numbers<[1], [1], [0], [0], [0, 0, 1, 0], [], []>} : vector<64x8xbf16>, vector<64x8xbf16>, vector<64x64xf32> -> vector<64x64xf32>
    %cst_27 = arith.constant dense<0xFF800000> : vector<64xf32>
    %100 = vector.multi_reduction <maximumf>, %99, %cst_27 [1] : vector<64x64xf32> to vector<64xf32>
    %101 = vector.shape_cast %100 : vector<64xf32> to vector<64x1xf32>
    %102 = vector.broadcast %101 : vector<64x1xf32> to vector<64x64xf32>
    %103 = arith.subf %99, %102 : vector<64x64xf32>
    %104 = arith.truncf %103 : vector<64x64xf32> to vector<64x64xbf16>
    %105 = math.exp %104 : vector<64x64xbf16>
    %106 = arith.extf %105 : vector<64x64xbf16> to vector<64x64xf32>
    %cst_28 = arith.constant dense<0.000000e+00> : vector<64xf32>
    %107 = vector.multi_reduction <add>, %106, %cst_28 [1] : vector<64x64xf32> to vector<64xf32>
    %108 = vector.shape_cast %107 : vector<64xf32> to vector<64x1xf32>
    %cst_29 = arith.constant dense<0.000000e+00> : vector<64x8xf32>
    %109 = tpu.matmul %105, %98, %cst_29 {dimension_numbers = #tpu.dot_dimension_numbers<[1], [0], [0], [1], [0, 0, 1, 1], [], []>} : vector<64x64xbf16>, vector<64x8xbf16>, vector<64x8xf32> -> vector<64x8xf32>
    %110 = tpu.reciprocal %108 {approx = true} : vector<64x1xf32> -> vector<64x1xf32>
    %111 = vector.broadcast %110 : vector<64x1xf32> to vector<64x8xf32>
    %112 = arith.mulf %109, %111 : vector<64x8xf32>
    %113 = vector.extract_strided_slice %78 {offsets = [0, 16], sizes = [64, 8], strides = [1, 1]} : vector<64x384xbf16> to vector<64x8xbf16>
    %114 = vector.extract_strided_slice %78 {offsets = [0, 144], sizes = [64, 8], strides = [1, 1]} : vector<64x384xbf16> to vector<64x8xbf16>
    %115 = vector.extract_strided_slice %78 {offsets = [0, 272], sizes = [64, 8], strides = [1, 1]} : vector<64x384xbf16> to vector<64x8xbf16>
    %cst_30 = arith.constant dense<0.000000e+00> : vector<64x64xf32>
    %116 = tpu.matmul %113, %114, %cst_30 {dimension_numbers = #tpu.dot_dimension_numbers<[1], [1], [0], [0], [0, 0, 1, 0], [], []>} : vector<64x8xbf16>, vector<64x8xbf16>, vector<64x64xf32> -> vector<64x64xf32>
    %cst_31 = arith.constant dense<0xFF800000> : vector<64xf32>
    %117 = vector.multi_reduction <maximumf>, %116, %cst_31 [1] : vector<64x64xf32> to vector<64xf32>
    %118 = vector.shape_cast %117 : vector<64xf32> to vector<64x1xf32>
    %119 = vector.broadcast %118 : vector<64x1xf32> to vector<64x64xf32>
    %120 = arith.subf %116, %119 : vector<64x64xf32>
    %121 = arith.truncf %120 : vector<64x64xf32> to vector<64x64xbf16>
    %122 = math.exp %121 : vector<64x64xbf16>
    %123 = arith.extf %122 : vector<64x64xbf16> to vector<64x64xf32>
    %cst_32 = arith.constant dense<0.000000e+00> : vector<64xf32>
    %124 = vector.multi_reduction <add>, %123, %cst_32 [1] : vector<64x64xf32> to vector<64xf32>
    %125 = vector.shape_cast %124 : vector<64xf32> to vector<64x1xf32>
    %cst_33 = arith.constant dense<0.000000e+00> : vector<64x8xf32>
    %126 = tpu.matmul %122, %115, %cst_33 {dimension_numbers = #tpu.dot_dimension_numbers<[1], [0], [0], [1], [0, 0, 1, 1], [], []>} : vector<64x64xbf16>, vector<64x8xbf16>, vector<64x8xf32> -> vector<64x8xf32>
    %127 = tpu.reciprocal %125 {approx = true} : vector<64x1xf32> -> vector<64x1xf32>
    %128 = vector.broadcast %127 : vector<64x1xf32> to vector<64x8xf32>
    %129 = arith.mulf %126, %128 : vector<64x8xf32>
    %130 = vector.extract_strided_slice %78 {offsets = [0, 24], sizes = [64, 8], strides = [1, 1]} : vector<64x384xbf16> to vector<64x8xbf16>
    %131 = vector.extract_strided_slice %78 {offsets = [0, 152], sizes = [64, 8], strides = [1, 1]} : vector<64x384xbf16> to vector<64x8xbf16>
    %132 = vector.extract_strided_slice %78 {offsets = [0, 280], sizes = [64, 8], strides = [1, 1]} : vector<64x384xbf16> to vector<64x8xbf16>
    %cst_34 = arith.constant dense<0.000000e+00> : vector<64x64xf32>
    %133 = tpu.matmul %130, %131, %cst_34 {dimension_numbers = #tpu.dot_dimension_numbers<[1], [1], [0], [0], [0, 0, 1, 0], [], []>} : vector<64x8xbf16>, vector<64x8xbf16>, vector<64x64xf32> -> vector<64x64xf32>
    %cst_35 = arith.constant dense<0xFF800000> : vector<64xf32>
    %134 = vector.multi_reduction <maximumf>, %133, %cst_35 [1] : vector<64x64xf32> to vector<64xf32>
    %135 = vector.shape_cast %134 : vector<64xf32> to vector<64x1xf32>
    %136 = vector.broadcast %135 : vector<64x1xf32> to vector<64x64xf32>
    %137 = arith.subf %133, %136 : vector<64x64xf32>
    %138 = arith.truncf %137 : vector<64x64xf32> to vector<64x64xbf16>
    %139 = math.exp %138 : vector<64x64xbf16>
    %140 = arith.extf %139 : vector<64x64xbf16> to vector<64x64xf32>
    %cst_36 = arith.constant dense<0.000000e+00> : vector<64xf32>
    %141 = vector.multi_reduction <add>, %140, %cst_36 [1] : vector<64x64xf32> to vector<64xf32>
    %142 = vector.shape_cast %141 : vector<64xf32> to vector<64x1xf32>
    %cst_37 = arith.constant dense<0.000000e+00> : vector<64x8xf32>
    %143 = tpu.matmul %139, %132, %cst_37 {dimension_numbers = #tpu.dot_dimension_numbers<[1], [0], [0], [1], [0, 0, 1, 1], [], []>} : vector<64x64xbf16>, vector<64x8xbf16>, vector<64x8xf32> -> vector<64x8xf32>
    %144 = tpu.reciprocal %142 {approx = true} : vector<64x1xf32> -> vector<64x1xf32>
    %145 = vector.broadcast %144 : vector<64x1xf32> to vector<64x8xf32>
    %146 = arith.mulf %143, %145 : vector<64x8xf32>
    %147 = tpu.concatenate %95, %112, %129, %146 in 1 : vector<64x8xf32>, vector<64x8xf32>, vector<64x8xf32>, vector<64x8xf32> -> vector<64x32xf32>
    %148 = tpu.concatenate %77, %147 in 0 : vector<64x32xf32>, vector<64x32xf32> -> vector<128x32xf32>
    %149 = arith.truncf %148 : vector<128x32xf32> to vector<128x32xbf16>
    %c0_38 = arith.constant 0 : index
    %c0_39 = arith.constant 0 : index
    %150 = vector.load %arg4[%c0_38, %c0_39] : memref<32x128xbf16, #tpu.memory_space<vmem>>, vector<32x128xbf16>
    %cst_40 = arith.constant dense<0.000000e+00> : vector<128x128xf32>
    %151 = tpu.matmul %149, %150, %cst_40 {dimension_numbers = #tpu.dot_dimension_numbers<[1], [0], [0], [1], [0, 0, 1, 1], [], []>} : vector<128x32xbf16>, vector<32x128xbf16>, vector<128x128xf32> -> vector<128x128xf32>
    %c0_41 = arith.constant 0 : index
    %c0_42 = arith.constant 0 : index
    %152 = vector.load %arg5[%c0_41, %c0_42] : memref<1x128xf32, #tpu.memory_space<vmem>>, vector<1x128xf32>
    %153 = vector.broadcast %152 : vector<1x128xf32> to vector<128x128xf32>
    %154 = arith.addf %151, %153 : vector<128x128xf32>
    %155 = vector.shape_cast %154 : vector<128x128xf32> to vector<2x64x128xf32>
    %156 = arith.truncf %155 : vector<2x64x128xf32> to vector<2x64x128xbf16>
    %c0_43 = arith.constant 0 : index
    %c0_44 = arith.constant 0 : index
    %c0_45 = arith.constant 0 : index
    %157 = vector.load %arg6[%c0_43, %c0_44, %c0_45] : memref<2x64x128xbf16, #tpu.memory_space<vmem>>, vector<2x64x128xbf16>
    tpu.vector_store %arg6[%c0_43, %c0_44, %c0_45], %156 {strides = array<i32>} : memref<2x64x128xbf16, #tpu.memory_space<vmem>>, vector<2x64x128xbf16>,
    return
  }
  func.func @transform_0(%arg0: i32) -> (i32, i32, i32) {
    %c0_i32 = arith.constant 0 : i32
    %c0_i32_0 = arith.constant 0 : i32
    %c0_i32_1 = arith.constant 0 : i32
    return %arg0, %c0_i32, %c0_i32_0 : i32, i32, i32
  }
  func.func @transform_1(%arg0: i32) -> (i32, i32) {
    %c0_i32 = arith.constant 0 : i32
    %c0_i32_0 = arith.constant 0 : i32
    %c0_i32_1 = arith.constant 0 : i32
    return %c0_i32, %c0_i32_0 : i32, i32
  }
  func.func @transform_2(%arg0: i32) -> (i32, i32) {
    %c0_i32 = arith.constant 0 : i32
    %c0_i32_0 = arith.constant 0 : i32
    %c0_i32_1 = arith.constant 0 : i32
    return %c0_i32, %c0_i32_0 : i32, i32
  }
  func.func @transform_3(%arg0: i32) -> (i32, i32) {
    %c0_i32 = arith.constant 0 : i32
    %c0_i32_0 = arith.constant 0 : i32
    %c0_i32_1 = arith.constant 0 : i32
    return %c0_i32, %c0_i32_0 : i32, i32
  }
  func.func @transform_4(%arg0: i32) -> (i32, i32) {
    %c0_i32 = arith.constant 0 : i32
    %c0_i32_0 = arith.constant 0 : i32
    %c0_i32_1 = arith.constant 0 : i32
    return %c0_i32, %c0_i32_0 : i32, i32
  }
  func.func @transform_5(%arg0: i32) -> (i32, i32, i32) {
    %c0_i32 = arith.constant 0 : i32
    %c0_i32_0 = arith.constant 0 : i32
    %c0_i32_1 = arith.constant 0 : i32
    return %arg0, %c0_i32, %c0_i32_0 : i32, i32, i32
  }
}

</mosaic_0001>

<llo_original>
// kernel: tpu_custom_call.1
$region0: #{tpu_custom_call.1}
  #allocation0 [shape = 'u32[]', space=smem, size = 0x4, offset = 0x4, fixed_abs, tag = 'smem constant byte address 0x4 - core index']
  #allocation1 [shape = 'u32[144,128]{1,0:T(1,128)}', space=vmem, size = 0x12000, scoped, tag = 'internal scratch']
  %s0 = inlined_call_operand.hbm [shape: bf16[2,64,128], index: 0, kind: input, shape index: {}]
  %s1 = inlined_call_operand.hbm [shape: bf16[128,384], index: 1, kind: input, shape index: {}]
  %s2 = inlined_call_operand.hbm [shape: f32[1,384], index: 2, kind: input, shape index: {}]
  %s3 = inlined_call_operand.hbm [shape: bf16[32,128], index: 3, kind: input, shape index: {}]
  %s4 = inlined_call_operand.hbm [shape: f32[1,128], index: 4, kind: input, shape index: {}]
  %s5 = inlined_call_operand.hbm [shape: bf16[2,64,128], index: 5, kind: output, shape index: {}]
  %s6 = sld [smem:[#allocation0]]
  $region50: #{tpu_custom_call.1} parent=0
    _
  %s8 = ssub.s32 1, %s6
  %s9 = scalar_select 0, %s8, %s6
  $region1: #{tpu_custom_call.1} parent=0
    #allocation2 [shape = 'u8[32768]{0}', space=vmem, size = 0x8000, scoped, tag = 'input window, operand 0, single buffered']
    #allocation3 [shape = 's32[1]{0}', space=sflag, size = 0x4, scoped, tag = 'scoped memory for tpu_custom_call.1']
    #allocation4 [shape = 's32[1]{0}', space=sflag, size = 0x4, scoped, tag = 'scoped memory for tpu_custom_call.1']
    #allocation5 [shape = 'u8[98304]{0}', space=vmem, size = 0x18000, scoped, tag = 'input window, operand 1, single buffered']
    #allocation6 [shape = 's32[1]{0}', space=sflag, size = 0x4, scoped, tag = 'scoped memory for tpu_custom_call.1']
    #allocation7 [shape = 'u8[1536]{0}', space=vmem, size = 0x800, scoped, tag = 'input window, operand 2, single buffered']
    #allocation8 [shape = 'u8[8192]{0}', space=vmem, size = 0x2000, scoped, tag = 'input window, operand 3, single buffered']
    #allocation9 [shape = 's32[1]{0}', space=sflag, size = 0x4, scoped, tag = 'scoped memory for tpu_custom_call.1']
    #allocation10 [shape = 'u8[512]{0}', space=vmem, size = 0x400, scoped, tag = 'input window, operand 4, single buffered']
    #allocation11 [shape = 'u8[32768]{0}', space=vmem, size = 0x8000, scoped, tag = 'output window, operand 0, single buffered']
    %10 = vsyncpa [#allocation3], 0
    %11 = vsyncpa [#allocation6], 0
    %12 = vsyncpa [#allocation9], 0
    %13 = vsyncpa [#allocation4], 0
    // Predicated region
    $region2: #{tpu_custom_call.1} parent=1 // pred_check
      _
    $region3: #{tpu_custom_call.1} parent=1 // pred_check_branch
      %15 = sbr.rel (0) target = $region5
    $region4: #{tpu_custom_call.1} parent=1 // pred_region
      %s17 = ssub.s32 1024, 1024
      %18 = vsyncadd [#allocation3], %s17
      %s19 = sshll.u32 [#allocation2], 4
      %s20 = int_to_ptr.vmem [resolvable:$true] %s19
      %25 = dma.hbm_to_vmem [thread:$0]  %s0, 1024, %s20, [#allocation3], 64, 64, 4
    $region5: #{tpu_custom_call.1} parent=1 // pred_fallthru
      _
    // Predicated region
    $region6: #{tpu_custom_call.1} parent=1 // pred_check
      _
    $region7: #{tpu_custom_call.1} parent=1 // pred_check_branch
      %27 = sbr.rel (0) target = $region9
    $region8: #{tpu_custom_call.1} parent=1 // pred_region
      %s29 = ssub.s32 3072, 3072
      %30 = vsyncadd [#allocation6], %s29
      %s31 = sshll.u32 [#allocation5], 4
      %s32 = int_to_ptr.vmem [resolvable:$true] %s31
      %37 = dma.hbm_to_vmem [thread:$0]  %s1, 3072, %s32, [#allocation6], 192, 192, 12
    $region9: #{tpu_custom_call.1} parent=1 // pred_fallthru
      _
    // Predicated region
    $region10: #{tpu_custom_call.1} parent=1 // pred_check
      _
    $region11: #{tpu_custom_call.1} parent=1 // pred_check_branch
      %39 = sbr.rel (0) target = $region13
    $region12: #{tpu_custom_call.1} parent=1 // pred_region
      %s41 = ssub.s32 48, 48
      %42 = vsyncadd [#allocation6], %s41
      %s44 = sshll.u32 [#allocation7], 4
      %s45 = int_to_ptr.vmem [resolvable:$true] %s44
      %47 = dma.hbm_to_vmem [thread:$0]  %s2, 48, %s45, [#allocation6]
    $region13: #{tpu_custom_call.1} parent=1 // pred_fallthru
      _
    // Predicated region
    $region14: #{tpu_custom_call.1} parent=1 // pred_check
      _
    $region15: #{tpu_custom_call.1} parent=1 // pred_check_branch
      %49 = sbr.rel (0) target = $region17
    $region16: #{tpu_custom_call.1} parent=1 // pred_region
      %s51 = ssub.s32 256, 256
      %52 = vsyncadd [#allocation9], %s51
      %s53 = sshll.u32 [#allocation8], 4
      %s54 = int_to_ptr.vmem [resolvable:$true] %s53
      %59 = dma.hbm_to_vmem [thread:$0]  %s3, 256, %s54, [#allocation9], 64, 64, 4
    $region17: #{tpu_custom_call.1} parent=1 // pred_fallthru
      _
    // Predicated region
    $region18: #{tpu_custom_call.1} parent=1 // pred_check
      _
    $region19: #{tpu_custom_call.1} parent=1 // pred_check_branch
      %61 = sbr.rel (0) target = $region21
    $region20: #{tpu_custom_call.1} parent=1 // pred_region
      %s63 = ssub.s32 16, 16
      %64 = vsyncadd [#allocation9], %s63
      %s66 = sshll.u32 [#allocation10], 4
      %s67 = int_to_ptr.vmem [resolvable:$true] %s66
      %69 = dma.hbm_to_vmem [thread:$0]  %s4, 16, %s67, [#allocation9]
    $region21: #{tpu_custom_call.1} parent=1 // pred_fallthru
      _
    // Predicated region
    $region22: #{tpu_custom_call.1} parent=1 // pred_check
      _
    $region23: #{tpu_custom_call.1} parent=1 // pred_check_branch
      %71 = sbr.rel (0) target = $region25
    $region24: #{tpu_custom_call.1} parent=1 // pred_region
      %72 = dma.done [#allocation3], 1024
    $region25: #{tpu_custom_call.1} parent=1 // pred_fallthru
      _
    // Predicated region
    $region26: #{tpu_custom_call.1} parent=1 // pred_check
      _
    $region27: #{tpu_custom_call.1} parent=1 // pred_check_branch
      %74 = sbr.rel (0) target = $region29
    $region28: #{tpu_custom_call.1} parent=1 // pred_region
      %75 = dma.done [#allocation6], 3072
    $region29: #{tpu_custom_call.1} parent=1 // pred_fallthru
      _
    // Predicated region
    $region30: #{tpu_custom_call.1} parent=1 // pred_check
      _
    $region31: #{tpu_custom_call.1} parent=1 // pred_check_branch
      %77 = sbr.rel (0) target = $region33
    $region32: #{tpu_custom_call.1} parent=1 // pred_region
      %78 = dma.done [#allocation6], 48
    $region33: #{tpu_custom_call.1} parent=1 // pred_fallthru
      _
    // Predicated region
    $region34: #{tpu_custom_call.1} parent=1 // pred_check
      _
    $region35: #{tpu_custom_call.1} parent=1 // pred_check_branch
      %80 = sbr.rel (0) target = $region37
    $region36: #{tpu_custom_call.1} parent=1 // pred_region
      %81 = dma.done [#allocation9], 256
    $region37: #{tpu_custom_call.1} parent=1 // pred_fallthru
      _
    // Predicated region
    $region38: #{tpu_custom_call.1} parent=1 // pred_check
      _
    $region39: #{tpu_custom_call.1} parent=1 // pred_check_branch
      %83 = sbr.rel (0) target = $region41
    $region40: #{tpu_custom_call.1} parent=1 // pred_region
      %84 = dma.done [#allocation9], 16
    $region41: #{tpu_custom_call.1} parent=1 // pred_fallthru
      _
    %v86 = vld [vmem:[#allocation2] sm:$0xf]
    %v87 = vld [vmem:[#allocation2 + $0x4] sm:$0xf]
    %v88 = vld [vmem:[#allocation2 + $0x8] sm:$0xf]
    %v89 = vld [vmem:[#allocation2 + $0xc] sm:$0xf]
    %v90 = vld [vmem:[#allocation2 + $0x10] sm:$0xf]
    %v91 = vld [vmem:[#allocation2 + $0x14] sm:$0xf]
    %v92 = vld [vmem:[#allocation2 + $0x18] sm:$0xf]
    %v93 = vld [vmem:[#allocation2 + $0x1c] sm:$0xf]
    %v94 = vld [vmem:[#allocation2 + $0x20] sm:$0xf]
    %v95 = vld [vmem:[#allocation2 + $0x24] sm:$0xf]
    %v96 = vld [vmem:[#allocation2 + $0x28] sm:$0xf]
    %v97 = vld [vmem:[#allocation2 + $0x2c] sm:$0xf]
    %v98 = vld [vmem:[#allocation2 + $0x30] sm:$0xf]
    %v99 = vld [vmem:[#allocation2 + $0x34] sm:$0xf]
    %v100 = vld [vmem:[#allocation2 + $0x38] sm:$0xf]
    %v101 = vld [vmem:[#allocation2 + $0x3c] sm:$0xf]
    %v102 = vld [vmem:[#allocation5] sm:$0xff]
    %v103 = vld [vmem:[#allocation5 + $0x8] sm:$0xf]
    %v104 = vld [vmem:[#allocation5 + $0xc] sm:$0xff]
    %v105 = vld [vmem:[#allocation5 + $0x14] sm:$0xf]
    %v106 = vld [vmem:[#allocation5 + $0x18] sm:$0xff]
    %v107 = vld [vmem:[#allocation5 + $0x20] sm:$0xf]
    %v108 = vld [vmem:[#allocation5 + $0x24] sm:$0xff]
    %v109 = vld [vmem:[#allocation5 + $0x2c] sm:$0xf]
    %v110 = vld [vmem:[#allocation5 + $0x30] sm:$0xff]
    %v111 = vld [vmem:[#allocation5 + $0x38] sm:$0xf]
    %v112 = vld [vmem:[#allocation5 + $0x3c] sm:$0xff]
    %v113 = vld [vmem:[#allocation5 + $0x44] sm:$0xf]
    %v114 = vld [vmem:[#allocation5 + $0x48] sm:$0xff]
    %v115 = vld [vmem:[#allocation5 + $0x50] sm:$0xf]
    %v116 = vld [vmem:[#allocation5 + $0x54] sm:$0xff]
    %v117 = vld [vmem:[#allocation5 + $0x5c] sm:$0xf]
    %v118 = vld [vmem:[#allocation5 + $0x60] sm:$0xff]
    %v119 = vld [vmem:[#allocation5 + $0x68] sm:$0xf]
    %v120 = vld [vmem:[#allocation5 + $0x6c] sm:$0xff]
    %v121 = vld [vmem:[#allocation5 + $0x74] sm:$0xf]
    %v122 = vld [vmem:[#allocation5 + $0x78] sm:$0xff]
    %v123 = vld [vmem:[#allocation5 + $0x80] sm:$0xf]
    %v124 = vld [vmem:[#allocation5 + $0x84] sm:$0xff]
    %v125 = vld [vmem:[#allocation5 + $0x8c] sm:$0xf]
    %v126 = vld [vmem:[#allocation5 + $0x90] sm:$0xff]
    %v127 = vld [vmem:[#allocation5 + $0x98] sm:$0xf]
    %v128 = vld [vmem:[#allocation5 + $0x9c] sm:$0xff]
    %v129 = vld [vmem:[#allocation5 + $0xa4] sm:$0xf]
    %v130 = vld [vmem:[#allocation5 + $0xa8] sm:$0xff]
    %v131 = vld [vmem:[#allocation5 + $0xb0] sm:$0xf]
    %v132 = vld [vmem:[#allocation5 + $0xb4] sm:$0xff]
    %v133 = vld [vmem:[#allocation5 + $0xbc] sm:$0xf]
    %v134 = vld [vmem:[#allocation7] sm:$0x7]
    %v136 = vlaneseq
    %v137 = vshrl.u32 %v136, 7
    %v138 = vsub.s32 0, %v137
    %v139 = vrot.slane %v134, %v138
    %v140 = vlaneseq
    %v141 = vshrl.u32 %v140, 7
    %v142 = vsub.s32 1, %v141
    %v143 = vrot.slane %v134, %v142
    %v144 = vlaneseq
    %v145 = vshrl.u32 %v144, 7
    %v146 = vsub.s32 2, %v145
    %v147 = vrot.slane %v134, %v146
    %v167 = vunpack.c.l.b16 %v86
    %v168 = vunpack.c.l.b16 %v87
    %v169 = vunpack.c.l.b16 %v88
    %v170 = vunpack.c.l.b16 %v89
    %v171 = vunpack.c.l.b16 %v90
    %v172 = vunpack.c.l.b16 %v91
    %v173 = vunpack.c.l.b16 %v92
    %v174 = vunpack.c.l.b16 %v93
    %v175 = vunpack.c.l.b16 %v94
    %v176 = vunpack.c.l.b16 %v95
    %v177 = vunpack.c.l.b16 %v96
    %v178 = vunpack.c.l.b16 %v97
    %v179 = vunpack.c.l.b16 %v98
    %v180 = vunpack.c.l.b16 %v99
    %v181 = vunpack.c.l.b16 %v100
    %v182 = vunpack.c.l.b16 %v101
    %v183 = vpack.c.b16 %v168, %v167
    %v184 = vpack.c.b16 %v170, %v169
    %v185 = vpack.c.b16 %v172, %v171
    %v186 = vpack.c.b16 %v174, %v173
    %v187 = vpack.c.b16 %v176, %v175
    %v188 = vpack.c.b16 %v178, %v177
    %v189 = vpack.c.b16 %v180, %v179
    %v190 = vpack.c.b16 %v182, %v181
    %v231 = vunpack.c.l.b16 %v102
    %v232 = vunpack.c.h.b16 %v102
    %v233 = vunpack.c.l.b16 %v103
    %v234 = vunpack.c.l.b16 %v104
    %v235 = vunpack.c.h.b16 %v104
    %v236 = vunpack.c.l.b16 %v105
    %v237 = vunpack.c.l.b16 %v106
    %v238 = vunpack.c.h.b16 %v106
    %v239 = vunpack.c.l.b16 %v107
    %v240 = vunpack.c.l.b16 %v108
    %v241 = vunpack.c.h.b16 %v108
    %v242 = vunpack.c.l.b16 %v109
    %v243 = vunpack.c.l.b16 %v110
    %v244 = vunpack.c.h.b16 %v110
    %v245 = vunpack.c.l.b16 %v111
    %v246 = vunpack.c.l.b16 %v112
    %v247 = vunpack.c.h.b16 %v112
    %v248 = vunpack.c.l.b16 %v113
    %v249 = vunpack.c.l.b16 %v114
    %v250 = vunpack.c.h.b16 %v114
    %v251 = vunpack.c.l.b16 %v115
    %v252 = vunpack.c.l.b16 %v116
    %v253 = vunpack.c.h.b16 %v116
    %v254 = vunpack.c.l.b16 %v117
    %v255 = vunpack.c.l.b16 %v118
    %v256 = vunpack.c.h.b16 %v118
    %v257 = vunpack.c.l.b16 %v119
    %v258 = vunpack.c.l.b16 %v120
    %v259 = vunpack.c.h.b16 %v120
    %v260 = vunpack.c.l.b16 %v121
    %v261 = vunpack.c.l.b16 %v122
    %v262 = vunpack.c.h.b16 %v122
    %v263 = vunpack.c.l.b16 %v123
    %v264 = vunpack.c.l.b16 %v124
    %v265 = vunpack.c.h.b16 %v124
    %v266 = vunpack.c.l.b16 %v125
    %v267 = vunpack.c.l.b16 %v126
    %v268 = vunpack.c.h.b16 %v126
    %v269 = vunpack.c.l.b16 %v127
    %v270 = vunpack.c.l.b16 %v128
    %v271 = vunpack.c.h.b16 %v128
    %v272 = vunpack.c.l.b16 %v129
    %v273 = vunpack.c.l.b16 %v130
    %v274 = vunpack.c.h.b16 %v130
    %v275 = vunpack.c.l.b16 %v131
    %v276 = vunpack.c.l.b16 %v132
    %v277 = vunpack.c.h.b16 %v132
    %v278 = vunpack.c.l.b16 %v133
    %v279 = vpack.c.b16 %v234, %v231
    %v280 = vpack.c.b16 %v235, %v232
    %v281 = vpack.c.b16 %v236, %v233
    %v282 = vpack.c.b16 %v240, %v237
    %v283 = vpack.c.b16 %v241, %v238
    %v284 = vpack.c.b16 %v242, %v239
    %v285 = vpack.c.b16 %v246, %v243
    %v286 = vpack.c.b16 %v247, %v244
    %v287 = vpack.c.b16 %v248, %v245
    %v288 = vpack.c.b16 %v252, %v249
    %v289 = vpack.c.b16 %v253, %v250
    %v290 = vpack.c.b16 %v254, %v251
    %v291 = vpack.c.b16 %v258, %v255
    %v292 = vpack.c.b16 %v259, %v256
    %v293 = vpack.c.b16 %v260, %v257
    %v294 = vpack.c.b16 %v264, %v261
    %v295 = vpack.c.b16 %v265, %v262
    %v296 = vpack.c.b16 %v266, %v263
    %v297 = vpack.c.b16 %v270, %v267
    %v298 = vpack.c.b16 %v271, %v268
    %v299 = vpack.c.b16 %v272, %v269
    %v300 = vpack.c.b16 %v276, %v273
    %v301 = vpack.c.b16 %v277, %v274
    %v302 = vpack.c.b16 %v278, %v275
    %327 = vmatprep.subr.bf16.mxu0 %v280
    %328 = vmatpush1.bf16.msra.mxu0 %v279
    %329 = vmatprep.subr.bf16.mxu0 %v283
    %330 = vmatpush1.bf16.msra.mxu0 %v282
    %331 = vmatprep.subr.bf16.mxu0 %v286
    %332 = vmatpush1.bf16.msra.mxu0 %v285
    %333 = vmatprep.subr.bf16.mxu0 %v289
    %334 = vmatpush1.bf16.msra.mxu0 %v288
    %335 = vmatprep.subr.bf16.mxu0 %v292
    %336 = vmatpush1.bf16.msra.mxu0 %v291
    %337 = vmatprep.subr.bf16.mxu0 %v295
    %338 = vmatpush1.bf16.msra.mxu0 %v294
    %339 = vmatprep.subr.bf16.mxu0 %v298
    %340 = vmatpush1.bf16.msra.mxu0 %v297
    %341 = vmatprep.subr.bf16.mxu0 %v301
    %342 = vmatpush1.bf16.msra.mxu0 %v300
    %343 = vmatprep.subr.bf16.mxu0 0
    %344 = vmatpush1.bf16.msra.mxu0 0
    %345 = vmatprep.subr.bf16.mxu0 0
    %346 = vmatpush1.bf16.msra.mxu0 0
    %347 = vmatprep.subr.bf16.mxu0 0
    %348 = vmatpush1.bf16.msra.mxu0 0
    %349 = vmatprep.subr.bf16.mxu0 0
    %350 = vmatpush1.bf16.msra.mxu0 0
    %351 = vmatprep.subr.bf16.mxu0 0
    %352 = vmatpush1.bf16.msra.mxu0 0
    %353 = vmatprep.subr.bf16.mxu0 0
    %354 = vmatpush1.bf16.msra.mxu0 0
    %355 = vmatprep.subr.bf16.mxu0 0
    %356 = vmatpush1.bf16.msra.mxu0 0
    %357 = vmatprep.subr.bf16.mxu0 0
    %358 = vmatpush1.bf16.msra.mxu0 0
    %359 = vmatprep.mubr.bf16.mxu0 0
    %360 = vmatmul.mubr.bf16.gmra.mrb[0].mxu0 %v183
    %v361 = vpop.f32.mrb[0].mxu0
    %v362 = vadd.f32 %v139, %v361
    %v363 = vpop.f32.mrb[0].mxu0
    %v364 = vadd.f32 %v143, %v363
    %v365 = vpop.f32.mrb[0].mxu0
    %v366 = vadd.f32 %v139, %v365
    %v367 = vpop.f32.mrb[0].mxu0
    %v368 = vadd.f32 %v143, %v367
    %369 = vmatprep.mubr.bf16.mxu0 0
    %370 = vmatmul.mubr.bf16.gmra.mrb[0].mxu0 %v184
    %v371 = vpop.f32.mrb[0].mxu0
    %v372 = vadd.f32 %v139, %v371
    %v373 = vpop.f32.mrb[0].mxu0
    %v374 = vadd.f32 %v143, %v373
    %v375 = vpop.f32.mrb[0].mxu0
    %v376 = vadd.f32 %v139, %v375
    %v377 = vpop.f32.mrb[0].mxu0
    %v378 = vadd.f32 %v143, %v377
    %379 = vmatprep.mubr.bf16.mxu0 0
    %380 = vmatmul.mubr.bf16.gmra.mrb[0].mxu0 %v185
    %v381 = vpop.f32.mrb[0].mxu0
    %v382 = vadd.f32 %v139, %v381
    %v383 = vpop.f32.mrb[0].mxu0
    %v384 = vadd.f32 %v143, %v383
    %v385 = vpop.f32.mrb[0].mxu0
    %v386 = vadd.f32 %v139, %v385
    %v387 = vpop.f32.mrb[0].mxu0
    %v388 = vadd.f32 %v143, %v387
    %389 = vmatprep.mubr.bf16.mxu0 0
    %390 = vmatmul.mubr.bf16.gmra.mrb[0].mxu0 %v186
    %v391 = vpop.f32.mrb[0].mxu0
    %v392 = vadd.f32 %v139, %v391
    %v393 = vpop.f32.mrb[0].mxu0
    %v394 = vadd.f32 %v143, %v393
    %v395 = vpop.f32.mrb[0].mxu0
    %v396 = vadd.f32 %v139, %v395
    %v397 = vpop.f32.mrb[0].mxu0
    %v398 = vadd.f32 %v143, %v397
    %399 = vmatprep.mubr.bf16.mxu0 0
    %400 = vmatmul.mubr.bf16.gmra.mrb[0].mxu0 %v187
    %v401 = vpop.f32.mrb[0].mxu0
    %v402 = vadd.f32 %v139, %v401
    %v403 = vpop.f32.mrb[0].mxu0
    %v404 = vadd.f32 %v143, %v403
    %v405 = vpop.f32.mrb[0].mxu0
    %v406 = vadd.f32 %v139, %v405
    %v407 = vpop.f32.mrb[0].mxu0
    %v408 = vadd.f32 %v143, %v407
    %409 = vmatprep.mubr.bf16.mxu0 0
    %410 = vmatmul.mubr.bf16.gmra.mrb[0].mxu0 %v188
    %v411 = vpop.f32.mrb[0].mxu0
    %v412 = vadd.f32 %v139, %v411
    %v413 = vpop.f32.mrb[0].mxu0
    %v414 = vadd.f32 %v143, %v413
    %v415 = vpop.f32.mrb[0].mxu0
    %v416 = vadd.f32 %v139, %v415
    %v417 = vpop.f32.mrb[0].mxu0
    %v418 = vadd.f32 %v143, %v417
    %419 = vmatprep.mubr.bf16.mxu0 0
    %420 = vmatmul.mubr.bf16.gmra.mrb[0].mxu0 %v189
    %v421 = vpop.f32.mrb[0].mxu0
    %v422 = vadd.f32 %v139, %v421
    %v423 = vpop.f32.mrb[0].mxu0
    %v424 = vadd.f32 %v143, %v423
    %v425 = vpop.f32.mrb[0].mxu0
    %v426 = vadd.f32 %v139, %v425
    %v427 = vpop.f32.mrb[0].mxu0
    %v428 = vadd.f32 %v143, %v427
    %429 = vmatprep.mubr.bf16.mxu0 0
    %430 = vmatmul.mubr.bf16.gmra.mrb[0].mxu0 %v190
    %v431 = vpop.f32.mrb[0].mxu0
    %v432 = vadd.f32 %v139, %v431
    %v433 = vpop.f32.mrb[0].mxu0
    %v434 = vadd.f32 %v143, %v433
    %v435 = vpop.f32.mrb[0].mxu0
    %v436 = vadd.f32 %v139, %v435
    %v437 = vpop.f32.mrb[0].mxu0
    %v438 = vadd.f32 %v143, %v437
    %439 = vdwg.mxu0
    %440 = vmatprep.subr.bf16.mxu0 0
    %441 = vmatpush1.bf16.msra.mxu0 %v281
    %442 = vmatprep.subr.bf16.mxu0 0
    %443 = vmatpush1.bf16.msra.mxu0 %v284
    %444 = vmatprep.subr.bf16.mxu0 0
    %445 = vmatpush1.bf16.msra.mxu0 %v287
    %446 = vmatprep.subr.bf16.mxu0 0
    %447 = vmatpush1.bf16.msra.mxu0 %v290
    %448 = vmatprep.subr.bf16.mxu0 0
    %449 = vmatpush1.bf16.msra.mxu0 %v293
    %450 = vmatprep.subr.bf16.mxu0 0
    %451 = vmatpush1.bf16.msra.mxu0 %v296
    %452 = vmatprep.subr.bf16.mxu0 0
    %453 = vmatpush1.bf16.msra.mxu0 %v299
    %454 = vmatprep.subr.bf16.mxu0 0
    %455 = vmatpush1.bf16.msra.mxu0 %v302
    %456 = vmatprep.subr.bf16.mxu0 0
    %457 = vmatpush1.bf16.msra.mxu0 0
    %458 = vmatprep.subr.bf16.mxu0 0
    %459 = vmatpush1.bf16.msra.mxu0 0
    %460 = vmatprep.subr.bf16.mxu0 0
    %461 = vmatpush1.bf16.msra.mxu0 0
    %462 = vmatprep.subr.bf16.mxu0 0
    %463 = vmatpush1.bf16.msra.mxu0 0
    %464 = vmatprep.subr.bf16.mxu0 0
    %465 = vmatpush1.bf16.msra.mxu0 0
    %466 = vmatprep.subr.bf16.mxu0 0
    %467 = vmatpush1.bf16.msra.mxu0 0
    %468 = vmatprep.subr.bf16.mxu0 0
    %469 = vmatpush1.bf16.msra.mxu0 0
    %470 = vmatprep.subr.bf16.mxu0 0
    %471 = vmatpush1.bf16.msra.mxu0 0
    %472 = vmatprep.mubr.bf16.mxu0 0
    %473 = vmatmul.mubr.bf16.gmra.mrb[0].mxu0 %v183
    %v474 = vpop.f32.mrb[0].mxu0
    %v475 = vadd.f32 %v147, %v474
    %v476 = vpop.f32.mrb[0].mxu0
    %v477 = vpop.f32.mrb[0].mxu0
    %v478 = vadd.f32 %v147, %v477
    %v479 = vpop.f32.mrb[0].mxu0
    %480 = vmatprep.mubr.bf16.mxu0 0
    %481 = vmatmul.mubr.bf16.gmra.mrb[0].mxu0 %v184
    %v482 = vpop.f32.mrb[0].mxu0
    %v483 = vadd.f32 %v147, %v482
    %v484 = vpop.f32.mrb[0].mxu0
    %v485 = vpop.f32.mrb[0].mxu0
    %v486 = vadd.f32 %v147, %v485
    %v487 = vpop.f32.mrb[0].mxu0
    %488 = vmatprep.mubr.bf16.mxu0 0
    %489 = vmatmul.mubr.bf16.gmra.mrb[0].mxu0 %v185
    %v490 = vpop.f32.mrb[0].mxu0
    %v491 = vadd.f32 %v147, %v490
    %v492 = vpop.f32.mrb[0].mxu0
    %v493 = vpop.f32.mrb[0].mxu0
    %v494 = vadd.f32 %v147, %v493
    %v495 = vpop.f32.mrb[0].mxu0
    %496 = vmatprep.mubr.bf16.mxu0 0
    %497 = vmatmul.mubr.bf16.gmra.mrb[0].mxu0 %v186
    %v498 = vpop.f32.mrb[0].mxu0
    %v499 = vadd.f32 %v147, %v498
    %v500 = vpop.f32.mrb[0].mxu0
    %v501 = vpop.f32.mrb[0].mxu0
    %v502 = vadd.f32 %v147, %v501
    %v503 = vpop.f32.mrb[0].mxu0
    %504 = vmatprep.mubr.bf16.mxu0 0
    %505 = vmatmul.mubr.bf16.gmra.mrb[0].mxu0 %v187
    %v506 = vpop.f32.mrb[0].mxu0
    %v507 = vadd.f32 %v147, %v506
    %v508 = vpop.f32.mrb[0].mxu0
    %v509 = vpop.f32.mrb[0].mxu0
    %v510 = vadd.f32 %v147, %v509
    %v511 = vpop.f32.mrb[0].mxu0
    %512 = vmatprep.mubr.bf16.mxu0 0
    %513 = vmatmul.mubr.bf16.gmra.mrb[0].mxu0 %v188
    %v514 = vpop.f32.mrb[0].mxu0
    %v515 = vadd.f32 %v147, %v514
    %v516 = vpop.f32.mrb[0].mxu0
    %v517 = vpop.f32.mrb[0].mxu0
    %v518 = vadd.f32 %v147, %v517
    %v519 = vpop.f32.mrb[0].mxu0
    %520 = vmatprep.mubr.bf16.mxu0 0
    %521 = vmatmul.mubr.bf16.gmra.mrb[0].mxu0 %v189
    %v522 = vpop.f32.mrb[0].mxu0
    %v523 = vadd.f32 %v147, %v522
    %v524 = vpop.f32.mrb[0].mxu0
    %v525 = vpop.f32.mrb[0].mxu0
    %v526 = vadd.f32 %v147, %v525
    %v527 = vpop.f32.mrb[0].mxu0
    %528 = vmatprep.mubr.bf16.mxu0 0
    %529 = vmatmul.mubr.bf16.gmra.mrb[0].mxu0 %v190
    %v530 = vpop.f32.mrb[0].mxu0
    %v531 = vadd.f32 %v147, %v530
    %v532 = vpop.f32.mrb[0].mxu0
    %v533 = vpop.f32.mrb[0].mxu0
    %v534 = vadd.f32 %v147, %v533
    %v535 = vpop.f32.mrb[0].mxu0
    %536 = vdwg.mxu0
    %v537 = vpack.c.bf16 %v366, %v362
    %v538 = vpack.c.bf16 %v368, %v364
    %v539 = vpack.c.bf16 %v478, %v475
    %v540 = vpack.c.bf16 %v376, %v372
    %v541 = vpack.c.bf16 %v378, %v374
    %v542 = vpack.c.bf16 %v486, %v483
    %v543 = vpack.c.bf16 %v386, %v382
    %v544 = vpack.c.bf16 %v388, %v384
    %v545 = vpack.c.bf16 %v494, %v491
    %v546 = vpack.c.bf16 %v396, %v392
    %v547 = vpack.c.bf16 %v398, %v394
    %v548 = vpack.c.bf16 %v502, %v499
    %v549 = vpack.c.bf16 %v406, %v402
    %v550 = vpack.c.bf16 %v408, %v404
    %v551 = vpack.c.bf16 %v510, %v507
    %v552 = vpack.c.bf16 %v416, %v412
    %v553 = vpack.c.bf16 %v418, %v414
    %v554 = vpack.c.bf16 %v518, %v515
    %v555 = vpack.c.bf16 %v426, %v422
    %v556 = vpack.c.bf16 %v428, %v424
    %v557 = vpack.c.bf16 %v526, %v523
    %v558 = vpack.c.bf16 %v436, %v432
    %v559 = vpack.c.bf16 %v438, %v434
    %v560 = vpack.c.bf16 %v534, %v531
    %vm561 = vcmask 64512
    %v563 = vsel %vm561, %v537, 0
    %v566 = vsel %vm561, %v540, 0
    %v569 = vsel %vm561, %v543, 0
    %v572 = vsel %vm561, %v546, 0
    %v575 = vsel %vm561, %v538, 0
    %v578 = vsel %vm561, %v541, 0
    %v581 = vsel %vm561, %v544, 0
    %v584 = vsel %vm561, %v547, 0
    %586 = vmatprep.subr.bf16.mxu0 0
    %587 = vmatpush1.bf16.xpose.msra.mxu0 %v575
    %588 = vmatprep.subr.bf16.mxu0 0
    %589 = vmatpush1.bf16.xpose.msra.mxu0 %v578
    %590 = vmatprep.subr.bf16.mxu0 0
    %591 = vmatpush1.bf16.xpose.msra.mxu0 %v581
    %592 = vmatprep.subr.bf16.mxu0 0
    %593 = vmatpush1.bf16.xpose.msra.mxu0 %v584
    %594 = vmatprep.subr.bf16.mxu0 0
    %595 = vmatpush1.bf16.xpose.msra.mxu0 0
    %596 = vmatprep.subr.bf16.mxu0 0
    %597 = vmatpush1.bf16.xpose.msra.mxu0 0
    %598 = vmatprep.subr.bf16.mxu0 0
    %599 = vmatpush1.bf16.xpose.msra.mxu0 0
    %600 = vmatprep.subr.bf16.mxu0 0
    %601 = vmatpush1.bf16.xpose.msra.mxu0 0
    %602 = vmatprep.subr.bf16.mxu0 0
    %603 = vmatpush1.bf16.xpose.msra.mxu0 0
    %604 = vmatprep.subr.bf16.mxu0 0
    %605 = vmatpush1.bf16.xpose.msra.mxu0 0
    %606 = vmatprep.subr.bf16.mxu0 0
    %607 = vmatpush1.bf16.xpose.msra.mxu0 0
    %608 = vmatprep.subr.bf16.mxu0 0
    %609 = vmatpush1.bf16.xpose.msra.mxu0 0
    %610 = vmatprep.subr.bf16.mxu0 0
    %611 = vmatpush1.bf16.xpose.msra.mxu0 0
    %612 = vmatprep.subr.bf16.mxu0 0
    %613 = vmatpush1.bf16.xpose.msra.mxu0 0
    %614 = vmatprep.subr.bf16.mxu0 0
    %615 = vmatpush1.bf16.xpose.msra.mxu0 0
    %616 = vmatprep.subr.bf16.mxu0 0
    %617 = vmatpush1.bf16.xpose.msra.mxu0 0
    %618 = vmatprep.mubr.bf16.mxu0 0
    %619 = vmatmul.mubr.bf16.gmra.mrb[0].mxu0 %v563
    %v620 = vpop.f32.mrb[0].mxu0
    %v621 = vadd.f32 0.0, %v620
    %v622 = vpop.f32.mrb[0].mxu0
    %v623 = vpop.f32.mrb[0].mxu0
    %v624 = vadd.f32 0.0, %v623
    %v625 = vpop.f32.mrb[0].mxu0
    %626 = vmatprep.mubr.bf16.mxu0 0
    %627 = vmatmul.mubr.bf16.gmra.mrb[0].mxu0 %v566
    %v628 = vpop.f32.mrb[0].mxu0
    %v629 = vadd.f32 0.0, %v628
    %v630 = vpop.f32.mrb[0].mxu0
    %v631 = vpop.f32.mrb[0].mxu0
    %v632 = vadd.f32 0.0, %v631
    %v633 = vpop.f32.mrb[0].mxu0
    %634 = vmatprep.mubr.bf16.mxu0 0
    %635 = vmatmul.mubr.bf16.gmra.mrb[0].mxu0 %v569
    %v636 = vpop.f32.mrb[0].mxu0
    %v637 = vadd.f32 0.0, %v636
    %v638 = vpop.f32.mrb[0].mxu0
    %v639 = vpop.f32.mrb[0].mxu0
    %v640 = vadd.f32 0.0, %v639
    %v641 = vpop.f32.mrb[0].mxu0
    %642 = vmatprep.mubr.bf16.mxu0 0
    %643 = vmatmul.mubr.bf16.gmra.mrb[0].mxu0 %v572
    %v644 = vpop.f32.mrb[0].mxu0
    %v645 = vadd.f32 0.0, %v644
    %v646 = vpop.f32.mrb[0].mxu0
    %v647 = vpop.f32.mrb[0].mxu0
    %v648 = vadd.f32 0.0, %v647
    %v649 = vpop.f32.mrb[0].mxu0
    %650 = vdwg.mxu0
    %vm651 = vcmask 523264
    %v652 = vsel %vm651, %v621, -inf
    %653 = vmax.xlane.f32.xlu0 %v652
    %v654 = vpop.xlane.xlu0 %653
    %v655 = vsel %vm651, %v624, -inf
    %656 = vmax.xlane.f32.xlu0 %v655
    %v657 = vpop.xlane.xlu0 %656
    %v658 = vsel %vm651, %v629, -inf
    %659 = vmax.xlane.f32.xlu0 %v658
    %v660 = vpop.xlane.xlu0 %659
    %v661 = vsel %vm651, %v632, -inf
    %662 = vmax.xlane.f32.xlu0 %v661
    %v663 = vpop.xlane.xlu0 %662
    %v664 = vsel %vm651, %v637, -inf
    %665 = vmax.xlane.f32.xlu0 %v664
    %v666 = vpop.xlane.xlu0 %665
    %v667 = vsel %vm651, %v640, -inf
    %668 = vmax.xlane.f32.xlu0 %v667
    %v669 = vpop.xlane.xlu0 %668
    %v670 = vsel %vm651, %v645, -inf
    %671 = vmax.xlane.f32.xlu0 %v670
    %v672 = vpop.xlane.xlu0 %671
    %v673 = vsel %vm651, %v648, -inf
    %674 = vmax.xlane.f32.xlu0 %v673
    %v675 = vpop.xlane.xlu0 %674
    %v676 = vsub.f32 %v621, %v654
    %v677 = vsub.f32 %v624, %v657
    %v678 = vsub.f32 %v629, %v660
    %v679 = vsub.f32 %v632, %v663
    %v680 = vsub.f32 %v637, %v666
    %v681 = vsub.f32 %v640, %v669
    %v682 = vsub.f32 %v645, %v672
    %v683 = vsub.f32 %v648, %v675
    %v684 = vpack.c.bf16 %v677, %v676
    %v685 = vpack.c.bf16 %v679, %v678
    %v686 = vpack.c.bf16 %v681, %v680
    %v687 = vpack.c.bf16 %v683, %v682
    %v689 = vmul.bf16 %v684, 1069105081
    %v690 = vpow.bf16.pop %v689
    %v692 = vmul.bf16 %v685, 1069105081
    %v693 = vpow.bf16.pop %v692
    %v695 = vmul.bf16 %v686, 1069105081
    %v696 = vpow.bf16.pop %v695
    %v698 = vmul.bf16 %v687, 1069105081
    %v699 = vpow.bf16.pop %v698
    %v700 = vunpack.c.l.bf16 %v690
    %v701 = vunpack.c.h.bf16 %v690
    %v702 = vunpack.c.l.bf16 %v693
    %v703 = vunpack.c.h.bf16 %v693
    %v704 = vunpack.c.l.bf16 %v696
    %v705 = vunpack.c.h.bf16 %v696
    %v706 = vunpack.c.l.bf16 %v699
    %v707 = vunpack.c.h.bf16 %v699
    %v708 = vsel %vm651, %v700, 0.0
    %709 = vadd.xlane.f32.xlu0 %v708
    %v710 = vpop.xlane.xlu0 %709
    %v711 = vsel %vm651, %v701, 0.0
    %712 = vadd.xlane.f32.xlu0 %v711
    %v713 = vpop.xlane.xlu0 %712
    %v714 = vsel %vm651, %v702, 0.0
    %715 = vadd.xlane.f32.xlu0 %v714
    %v716 = vpop.xlane.xlu0 %715
    %v717 = vsel %vm651, %v703, 0.0
    %718 = vadd.xlane.f32.xlu0 %v717
    %v719 = vpop.xlane.xlu0 %718
    %v720 = vsel %vm651, %v704, 0.0
    %721 = vadd.xlane.f32.xlu0 %v720
    %v722 = vpop.xlane.xlu0 %721
    %v723 = vsel %vm651, %v705, 0.0
    %724 = vadd.xlane.f32.xlu0 %v723
    %v725 = vpop.xlane.xlu0 %724
    %v726 = vsel %vm651, %v706, 0.0
    %727 = vadd.xlane.f32.xlu0 %v726
    %v728 = vpop.xlane.xlu0 %727
    %v729 = vsel %vm651, %v707, 0.0
    %730 = vadd.xlane.f32.xlu0 %v729
    %v731 = vpop.xlane.xlu0 %730
    %v733 = vsel %vm651, %v690, 0
    %v736 = vsel %vm651, %v693, 0
    %v739 = vsel %vm651, %v696, 0
    %v742 = vsel %vm651, %v699, 0
    %744 = vmatprep.subr.bf16.mxu0 0
    %745 = vmatpush1.bf16.msra.mxu0 %v539
    %746 = vmatprep.subr.bf16.mxu0 0
    %747 = vmatpush1.bf16.msra.mxu0 %v542
    %748 = vmatprep.subr.bf16.mxu0 0
    %749 = vmatpush1.bf16.msra.mxu0 %v545
    %750 = vmatprep.subr.bf16.mxu0 0
    %751 = vmatpush1.bf16.msra.mxu0 %v548
    %752 = vmatprep.subr.bf16.mxu0 0
    %753 = vmatpush1.bf16.msra.mxu0 0
    %754 = vmatprep.subr.bf16.mxu0 0
    %755 = vmatpush1.bf16.msra.mxu0 0
    %756 = vmatprep.subr.bf16.mxu0 0
    %757 = vmatpush1.bf16.msra.mxu0 0
    %758 = vmatprep.subr.bf16.mxu0 0
    %759 = vmatpush1.bf16.msra.mxu0 0
    %760 = vmatprep.subr.bf16.mxu0 0
    %761 = vmatpush1.bf16.msra.mxu0 0
    %762 = vmatprep.subr.bf16.mxu0 0
    %763 = vmatpush1.bf16.msra.mxu0 0
    %764 = vmatprep.subr.bf16.mxu0 0
    %765 = vmatpush1.bf16.msra.mxu0 0
    %766 = vmatprep.subr.bf16.mxu0 0
    %767 = vmatpush1.bf16.msra.mxu0 0
    %768 = vmatprep.subr.bf16.mxu0 0
    %769 = vmatpush1.bf16.msra.mxu0 0
    %770 = vmatprep.subr.bf16.mxu0 0
    %771 = vmatpush1.bf16.msra.mxu0 0
    %772 = vmatprep.subr.bf16.mxu0 0
    %773 = vmatpush1.bf16.msra.mxu0 0
    %774 = vmatprep.subr.bf16.mxu0 0
    %775 = vmatpush1.bf16.msra.mxu0 0
    %776 = vmatprep.mubr.bf16.mxu0 0
    %777 = vmatmul.mubr.bf16.gmra.mrb[0].mxu0 %v733
    %v778 = vpop.f32.mrb[0].mxu0
    %v779 = vadd.f32 0.0, %v778
    %v780 = vpop.f32.mrb[0].mxu0
    %v781 = vpop.f32.mrb[0].mxu0
    %v782 = vadd.f32 0.0, %v781
    %v783 = vpop.f32.mrb[0].mxu0
    %784 = vmatprep.mubr.bf16.mxu0 0
    %785 = vmatmul.mubr.bf16.gmra.mrb[0].mxu0 %v736
    %v786 = vpop.f32.mrb[0].mxu0
    %v787 = vadd.f32 0.0, %v786
    %v788 = vpop.f32.mrb[0].mxu0
    %v789 = vpop.f32.mrb[0].mxu0
    %v790 = vadd.f32 0.0, %v789
    %v791 = vpop.f32.mrb[0].mxu0
    %792 = vmatprep.mubr.bf16.mxu0 0
    %793 = vmatmul.mubr.bf16.gmra.mrb[0].mxu0 %v739
    %v794 = vpop.f32.mrb[0].mxu0
    %v795 = vadd.f32 0.0, %v794
    %v796 = vpop.f32.mrb[0].mxu0
    %v797 = vpop.f32.mrb[0].mxu0
    %v798 = vadd.f32 0.0, %v797
    %v799 = vpop.f32.mrb[0].mxu0
    %800 = vmatprep.mubr.bf16.mxu0 0
    %801 = vmatmul.mubr.bf16.gmra.mrb[0].mxu0 %v742
    %v802 = vpop.f32.mrb[0].mxu0
    %v803 = vadd.f32 0.0, %v802
    %v804 = vpop.f32.mrb[0].mxu0
    %v805 = vpop.f32.mrb[0].mxu0
    %v806 = vadd.f32 0.0, %v805
    %v807 = vpop.f32.mrb[0].mxu0
    %808 = vdwg.mxu0
    %v809 = vrcp.pop %v710
    %v810 = vrcp.pop %v713
    %v811 = vrcp.pop %v716
    %v812 = vrcp.pop %v719
    %v813 = vrcp.pop %v722
    %v814 = vrcp.pop %v725
    %v815 = vrcp.pop %v728
    %v816 = vrcp.pop %v731
    %v817 = vmul.f32 %v779, %v809
    %v818 = vmul.f32 %v782, %v810
    %v819 = vmul.f32 %v787, %v811
    %v820 = vmul.f32 %v790, %v812
    %v821 = vmul.f32 %v795, %v813
    %v822 = vmul.f32 %v798, %v814
    %v823 = vmul.f32 %v803, %v815
    %v824 = vmul.f32 %v806, %v816
    %829 = vrot.lane.b32.xlu0 %v537, 120
    %v830 = vpop.permute.xlu0 %829
    %831 = vrot.lane.b32.xlu0 %v540, 120
    %v832 = vpop.permute.xlu0 %831
    %833 = vrot.lane.b32.xlu0 %v543, 120
    %v834 = vpop.permute.xlu0 %833
    %835 = vrot.lane.b32.xlu0 %v546, 120
    %v836 = vpop.permute.xlu0 %835
    %841 = vrot.lane.b32.xlu0 %v538, 120
    %v842 = vpop.permute.xlu0 %841
    %843 = vrot.lane.b32.xlu0 %v541, 120
    %v844 = vpop.permute.xlu0 %843
    %845 = vrot.lane.b32.xlu0 %v544, 120
    %v846 = vpop.permute.xlu0 %845
    %847 = vrot.lane.b32.xlu0 %v547, 120
    %v848 = vpop.permute.xlu0 %847
    %v850 = vsel %vm561, %v830, 0
    %v853 = vsel %vm561, %v832, 0
    %v856 = vsel %vm561, %v834, 0
    %v859 = vsel %vm561, %v836, 0
    %v862 = vsel %vm561, %v842, 0
    %v865 = vsel %vm561, %v844, 0
    %v868 = vsel %vm561, %v846, 0
    %v871 = vsel %vm561, %v848, 0
    %873 = vmatprep.subr.bf16.mxu0 0
    %874 = vmatpush1.bf16.xpose.msra.mxu0 %v862
    %875 = vmatprep.subr.bf16.mxu0 0
    %876 = vmatpush1.bf16.xpose.msra.mxu0 %v865
    %877 = vmatprep.subr.bf16.mxu0 0
    %878 = vmatpush1.bf16.xpose.msra.mxu0 %v868
    %879 = vmatprep.subr.bf16.mxu0 0
    %880 = vmatpush1.bf16.xpose.msra.mxu0 %v871
    %881 = vmatprep.subr.bf16.mxu0 0
    %882 = vmatpush1.bf16.xpose.msra.mxu0 0
    %883 = vmatprep.subr.bf16.mxu0 0
    %884 = vmatpush1.bf16.xpose.msra.mxu0 0
    %885 = vmatprep.subr.bf16.mxu0 0
    %886 = vmatpush1.bf16.xpose.msra.mxu0 0
    %887 = vmatprep.subr.bf16.mxu0 0
    %888 = vmatpush1.bf16.xpose.msra.mxu0 0
    %889 = vmatprep.subr.bf16.mxu0 0
    %890 = vmatpush1.bf16.xpose.msra.mxu0 0
    %891 = vmatprep.subr.bf16.mxu0 0
    %892 = vmatpush1.bf16.xpose.msra.mxu0 0
    %893 = vmatprep.subr.bf16.mxu0 0
    %894 = vmatpush1.bf16.xpose.msra.mxu0 0
    %895 = vmatprep.subr.bf16.mxu0 0
    %896 = vmatpush1.bf16.xpose.msra.mxu0 0
    %897 = vmatprep.subr.bf16.mxu0 0
    %898 = vmatpush1.bf16.xpose.msra.mxu0 0
    %899 = vmatprep.subr.bf16.mxu0 0
    %900 = vmatpush1.bf16.xpose.msra.mxu0 0
    %901 = vmatprep.subr.bf16.mxu0 0
    %902 = vmatpush1.bf16.xpose.msra.mxu0 0
    %903 = vmatprep.subr.bf16.mxu0 0
    %904 = vmatpush1.bf16.xpose.msra.mxu0 0
    %905 = vmatprep.mubr.bf16.mxu0 0
    %906 = vmatmul.mubr.bf16.gmra.mrb[0].mxu0 %v850
    %v907 = vpop.f32.mrb[0].mxu0
    %v908 = vadd.f32 0.0, %v907
    %v909 = vpop.f32.mrb[0].mxu0
    %v910 = vpop.f32.mrb[0].mxu0
    %v911 = vadd.f32 0.0, %v910
    %v912 = vpop.f32.mrb[0].mxu0
    %913 = vmatprep.mubr.bf16.mxu0 0
    %914 = vmatmul.mubr.bf16.gmra.mrb[0].mxu0 %v853
    %v915 = vpop.f32.mrb[0].mxu0
    %v916 = vadd.f32 0.0, %v915
    %v917 = vpop.f32.mrb[0].mxu0
    %v918 = vpop.f32.mrb[0].mxu0
    %v919 = vadd.f32 0.0, %v918
    %v920 = vpop.f32.mrb[0].mxu0
    %921 = vmatprep.mubr.bf16.mxu0 0
    %922 = vmatmul.mubr.bf16.gmra.mrb[0].mxu0 %v856
    %v923 = vpop.f32.mrb[0].mxu0
    %v924 = vadd.f32 0.0, %v923
    %v925 = vpop.f32.mrb[0].mxu0
    %v926 = vpop.f32.mrb[0].mxu0
    %v927 = vadd.f32 0.0, %v926
    %v928 = vpop.f32.mrb[0].mxu0
    %929 = vmatprep.mubr.bf16.mxu0 0
    %930 = vmatmul.mubr.bf16.gmra.mrb[0].mxu0 %v859
    %v931 = vpop.f32.mrb[0].mxu0
    %v932 = vadd.f32 0.0, %v931
    %v933 = vpop.f32.mrb[0].mxu0
    %v934 = vpop.f32.mrb[0].mxu0
    %v935 = vadd.f32 0.0, %v934
    %v936 = vpop.f32.mrb[0].mxu0
    %937 = vdwg.mxu0
    %v938 = vsel %vm651, %v908, -inf
    %939 = vmax.xlane.f32.xlu0 %v938
    %v940 = vpop.xlane.xlu0 %939
    %v941 = vsel %vm651, %v911, -inf
    %942 = vmax.xlane.f32.xlu0 %v941
    %v943 = vpop.xlane.xlu0 %942
    %v944 = vsel %vm651, %v916, -inf
    %945 = vmax.xlane.f32.xlu0 %v944
    %v946 = vpop.xlane.xlu0 %945
    %v947 = vsel %vm651, %v919, -inf
    %948 = vmax.xlane.f32.xlu0 %v947
    %v949 = vpop.xlane.xlu0 %948
    %v950 = vsel %vm651, %v924, -inf
    %951 = vmax.xlane.f32.xlu0 %v950
    %v952 = vpop.xlane.xlu0 %951
    %v953 = vsel %vm651, %v927, -inf
    %954 = vmax.xlane.f32.xlu0 %v953
    %v955 = vpop.xlane.xlu0 %954
    %v956 = vsel %vm651, %v932, -inf
    %957 = vmax.xlane.f32.xlu0 %v956
    %v958 = vpop.xlane.xlu0 %957
    %v959 = vsel %vm651, %v935, -inf
    %960 = vmax.xlane.f32.xlu0 %v959
    %v961 = vpop.xlane.xlu0 %960
    %v962 = vsub.f32 %v908, %v940
    %v963 = vsub.f32 %v911, %v943
    %v964 = vsub.f32 %v916, %v946
    %v965 = vsub.f32 %v919, %v949
    %v966 = vsub.f32 %v924, %v952
    %v967 = vsub.f32 %v927, %v955
    %v968 = vsub.f32 %v932, %v958
    %v969 = vsub.f32 %v935, %v961
    %v970 = vpack.c.bf16 %v963, %v962
    %v971 = vpack.c.bf16 %v965, %v964
    %v972 = vpack.c.bf16 %v967, %v966
    %v973 = vpack.c.bf16 %v969, %v968
    %v975 = vmul.bf16 %v970, 1069105081
    %v976 = vpow.bf16.pop %v975
    %v978 = vmul.bf16 %v971, 1069105081
    %v979 = vpow.bf16.pop %v978
    %v981 = vmul.bf16 %v972, 1069105081
    %v982 = vpow.bf16.pop %v981
    %v984 = vmul.bf16 %v973, 1069105081
    %v985 = vpow.bf16.pop %v984
    %v986 = vunpack.c.l.bf16 %v976
    %v987 = vunpack.c.h.bf16 %v976
    %v988 = vunpack.c.l.bf16 %v979
    %v989 = vunpack.c.h.bf16 %v979
    %v990 = vunpack.c.l.bf16 %v982
    %v991 = vunpack.c.h.bf16 %v982
    %v992 = vunpack.c.l.bf16 %v985
    %v993 = vunpack.c.h.bf16 %v985
    %v994 = vsel %vm651, %v986, 0.0
    %995 = vadd.xlane.f32.xlu0 %v994
    %v996 = vpop.xlane.xlu0 %995
    %v997 = vsel %vm651, %v987, 0.0
    %998 = vadd.xlane.f32.xlu0 %v997
    %v999 = vpop.xlane.xlu0 %998
    %v1000 = vsel %vm651, %v988, 0.0
    %1001 = vadd.xlane.f32.xlu0 %v1000
    %v1002 = vpop.xlane.xlu0 %1001
    %v1003 = vsel %vm651, %v989, 0.0
    %1004 = vadd.xlane.f32.xlu0 %v1003
    %v1005 = vpop.xlane.xlu0 %1004
    %v1006 = vsel %vm651, %v990, 0.0
    %1007 = vadd.xlane.f32.xlu0 %v1006
    %v1008 = vpop.xlane.xlu0 %1007
    %v1009 = vsel %vm651, %v991, 0.0
    %1010 = vadd.xlane.f32.xlu0 %v1009
    %v1011 = vpop.xlane.xlu0 %1010
    %v1012 = vsel %vm651, %v992, 0.0
    %1013 = vadd.xlane.f32.xlu0 %v1012
    %v1014 = vpop.xlane.xlu0 %1013
    %v1015 = vsel %vm651, %v993, 0.0
    %1016 = vadd.xlane.f32.xlu0 %v1015
    %v1017 = vpop.xlane.xlu0 %1016
    %1022 = vrot.lane.b32.xlu0 %v539, 120
    %v1023 = vpop.permute.xlu0 %1022
    %1024 = vrot.lane.b32.xlu0 %v542, 120
    %v1025 = vpop.permute.xlu0 %1024
    %1026 = vrot.lane.b32.xlu0 %v545, 120
    %v1027 = vpop.permute.xlu0 %1026
    %1028 = vrot.lane.b32.xlu0 %v548, 120
    %v1029 = vpop.permute.xlu0 %1028
    %v1035 = vsel %vm651, %v976, 0
    %v1038 = vsel %vm651, %v979, 0
    %v1041 = vsel %vm651, %v982, 0
    %v1044 = vsel %vm651, %v985, 0
    %1046 = vmatprep.subr.bf16.mxu0 0
    %1047 = vmatpush1.bf16.msra.mxu0 %v1023
    %1048 = vmatprep.subr.bf16.mxu0 0
    %1049 = vmatpush1.bf16.msra.mxu0 %v1025
    %1050 = vmatprep.subr.bf16.mxu0 0
    %1051 = vmatpush1.bf16.msra.mxu0 %v1027
    %1052 = vmatprep.subr.bf16.mxu0 0
    %1053 = vmatpush1.bf16.msra.mxu0 %v1029
    %1054 = vmatprep.subr.bf16.mxu0 0
    %1055 = vmatpush1.bf16.msra.mxu0 0
    %1056 = vmatprep.subr.bf16.mxu0 0
    %1057 = vmatpush1.bf16.msra.mxu0 0
    %1058 = vmatprep.subr.bf16.mxu0 0
    %1059 = vmatpush1.bf16.msra.mxu0 0
    %1060 = vmatprep.subr.bf16.mxu0 0
    %1061 = vmatpush1.bf16.msra.mxu0 0
    %1062 = vmatprep.subr.bf16.mxu0 0
    %1063 = vmatpush1.bf16.msra.mxu0 0
    %1064 = vmatprep.subr.bf16.mxu0 0
    %1065 = vmatpush1.bf16.msra.mxu0 0
    %1066 = vmatprep.subr.bf16.mxu0 0
    %1067 = vmatpush1.bf16.msra.mxu0 0
    %1068 = vmatprep.subr.bf16.mxu0 0
    %1069 = vmatpush1.bf16.msra.mxu0 0
    %1070 = vmatprep.subr.bf16.mxu0 0
    %1071 = vmatpush1.bf16.msra.mxu0 0
    %1072 = vmatprep.subr.bf16.mxu0 0
    %1073 = vmatpush1.bf16.msra.mxu0 0
    %1074 = vmatprep.subr.bf16.mxu0 0
    %1075 = vmatpush1.bf16.msra.mxu0 0
    %1076 = vmatprep.subr.bf16.mxu0 0
    %1077 = vmatpush1.bf16.msra.mxu0 0
    %1078 = vmatprep.mubr.bf16.mxu0 0
    %1079 = vmatmul.mubr.bf16.gmra.mrb[0].mxu0 %v1035
    %v1080 = vpop.f32.mrb[0].mxu0
    %v1081 = vadd.f32 0.0, %v1080
    %v1082 = vpop.f32.mrb[0].mxu0
    %v1083 = vpop.f32.mrb[0].mxu0
    %v1084 = vadd.f32 0.0, %v1083
    %v1085 = vpop.f32.mrb[0].mxu0
    %1086 = vmatprep.mubr.bf16.mxu0 0
    %1087 = vmatmul.mubr.bf16.gmra.mrb[0].mxu0 %v1038
    %v1088 = vpop.f32.mrb[0].mxu0
    %v1089 = vadd.f32 0.0, %v1088
    %v1090 = vpop.f32.mrb[0].mxu0
    %v1091 = vpop.f32.mrb[0].mxu0
    %v1092 = vadd.f32 0.0, %v1091
    %v1093 = vpop.f32.mrb[0].mxu0
    %1094 = vmatprep.mubr.bf16.mxu0 0
    %1095 = vmatmul.mubr.bf16.gmra.mrb[0].mxu0 %v1041
    %v1096 = vpop.f32.mrb[0].mxu0
    %v1097 = vadd.f32 0.0, %v1096
    %v1098 = vpop.f32.mrb[0].mxu0
    %v1099 = vpop.f32.mrb[0].mxu0
    %v1100 = vadd.f32 0.0, %v1099
    %v1101 = vpop.f32.mrb[0].mxu0
    %1102 = vmatprep.mubr.bf16.mxu0 0
    %1103 = vmatmul.mubr.bf16.gmra.mrb[0].mxu0 %v1044
    %v1104 = vpop.f32.mrb[0].mxu0
    %v1105 = vadd.f32 0.0, %v1104
    %v1106 = vpop.f32.mrb[0].mxu0
    %v1107 = vpop.f32.mrb[0].mxu0
    %v1108 = vadd.f32 0.0, %v1107
    %v1109 = vpop.f32.mrb[0].mxu0
    %1110 = vdwg.mxu0
    %v1111 = vrcp.pop %v996
    %v1112 = vrcp.pop %v999
    %v1113 = vrcp.pop %v1002
    %v1114 = vrcp.pop %v1005
    %v1115 = vrcp.pop %v1008
    %v1116 = vrcp.pop %v1011
    %v1117 = vrcp.pop %v1014
    %v1118 = vrcp.pop %v1017
    %v1119 = vmul.f32 %v1081, %v1111
    %v1120 = vmul.f32 %v1084, %v1112
    %v1121 = vmul.f32 %v1089, %v1113
    %v1122 = vmul.f32 %v1092, %v1114
    %v1123 = vmul.f32 %v1097, %v1115
    %v1124 = vmul.f32 %v1100, %v1116
    %v1125 = vmul.f32 %v1105, %v1117
    %v1126 = vmul.f32 %v1108, %v1118
    %1127 = vrot.lane.b32.xlu0 %v537, 112
    %v1128 = vpop.permute.xlu0 %1127
    %1129 = vrot.lane.b32.xlu0 %v540, 112
    %v1130 = vpop.permute.xlu0 %1129
    %1131 = vrot.lane.b32.xlu0 %v543, 112
    %v1132 = vpop.permute.xlu0 %1131
    %1133 = vrot.lane.b32.xlu0 %v546, 112
    %v1134 = vpop.permute.xlu0 %1133
    %1135 = vrot.lane.b32.xlu0 %v538, 112
    %v1136 = vpop.permute.xlu0 %1135
    %1137 = vrot.lane.b32.xlu0 %v541, 112
    %v1138 = vpop.permute.xlu0 %1137
    %1139 = vrot.lane.b32.xlu0 %v544, 112
    %v1140 = vpop.permute.xlu0 %1139
    %1141 = vrot.lane.b32.xlu0 %v547, 112
    %v1142 = vpop.permute.xlu0 %1141
    %v1144 = vsel %vm561, %v1128, 0
    %v1147 = vsel %vm561, %v1130, 0
    %v1150 = vsel %vm561, %v1132, 0
    %v1153 = vsel %vm561, %v1134, 0
    %v1156 = vsel %vm561, %v1136, 0
    %v1159 = vsel %vm561, %v1138, 0
    %v1162 = vsel %vm561, %v1140, 0
    %v1165 = vsel %vm561, %v1142, 0
    %1167 = vmatprep.subr.bf16.mxu0 0
    %1168 = vmatpush1.bf16.xpose.msra.mxu0 %v1156
    %1169 = vmatprep.subr.bf16.mxu0 0
    %1170 = vmatpush1.bf16.xpose.msra.mxu0 %v1159
    %1171 = vmatprep.subr.bf16.mxu0 0
    %1172 = vmatpush1.bf16.xpose.msra.mxu0 %v1162
    %1173 = vmatprep.subr.bf16.mxu0 0
    %1174 = vmatpush1.bf16.xpose.msra.mxu0 %v1165
    %1175 = vmatprep.subr.bf16.mxu0 0
    %1176 = vmatpush1.bf16.xpose.msra.mxu0 0
    %1177 = vmatprep.subr.bf16.mxu0 0
    %1178 = vmatpush1.bf16.xpose.msra.mxu0 0
    %1179 = vmatprep.subr.bf16.mxu0 0
    %1180 = vmatpush1.bf16.xpose.msra.mxu0 0
    %1181 = vmatprep.subr.bf16.mxu0 0
    %1182 = vmatpush1.bf16.xpose.msra.mxu0 0
    %1183 = vmatprep.subr.bf16.mxu0 0
    %1184 = vmatpush1.bf16.xpose.msra.mxu0 0
    %1185 = vmatprep.subr.bf16.mxu0 0
    %1186 = vmatpush1.bf16.xpose.msra.mxu0 0
    %1187 = vmatprep.subr.bf16.mxu0 0
    %1188 = vmatpush1.bf16.xpose.msra.mxu0 0
    %1189 = vmatprep.subr.bf16.mxu0 0
    %1190 = vmatpush1.bf16.xpose.msra.mxu0 0
    %1191 = vmatprep.subr.bf16.mxu0 0
    %1192 = vmatpush1.bf16.xpose.msra.mxu0 0
    %1193 = vmatprep.subr.bf16.mxu0 0
    %1194 = vmatpush1.bf16.xpose.msra.mxu0 0
    %1195 = vmatprep.subr.bf16.mxu0 0
    %1196 = vmatpush1.bf16.xpose.msra.mxu0 0
    %1197 = vmatprep.subr.bf16.mxu0 0
    %1198 = vmatpush1.bf16.xpose.msra.mxu0 0
    %1199 = vmatprep.mubr.bf16.mxu0 0
    %1200 = vmatmul.mubr.bf16.gmra.mrb[0].mxu0 %v1144
    %v1201 = vpop.f32.mrb[0].mxu0
    %v1202 = vadd.f32 0.0, %v1201
    %v1203 = vpop.f32.mrb[0].mxu0
    %v1204 = vpop.f32.mrb[0].mxu0
    %v1205 = vadd.f32 0.0, %v1204
    %v1206 = vpop.f32.mrb[0].mxu0
    %1207 = vmatprep.mubr.bf16.mxu0 0
    %1208 = vmatmul.mubr.bf16.gmra.mrb[0].mxu0 %v1147
    %v1209 = vpop.f32.mrb[0].mxu0
    %v1210 = vadd.f32 0.0, %v1209
    %v1211 = vpop.f32.mrb[0].mxu0
    %v1212 = vpop.f32.mrb[0].mxu0
    %v1213 = vadd.f32 0.0, %v1212
    %v1214 = vpop.f32.mrb[0].mxu0
    %1215 = vmatprep.mubr.bf16.mxu0 0
    %1216 = vmatmul.mubr.bf16.gmra.mrb[0].mxu0 %v1150
    %v1217 = vpop.f32.mrb[0].mxu0
    %v1218 = vadd.f32 0.0, %v1217
    %v1219 = vpop.f32.mrb[0].mxu0
    %v1220 = vpop.f32.mrb[0].mxu0
    %v1221 = vadd.f32 0.0, %v1220
    %v1222 = vpop.f32.mrb[0].mxu0
    %1223 = vmatprep.mubr.bf16.mxu0 0
    %1224 = vmatmul.mubr.bf16.gmra.mrb[0].mxu0 %v1153
    %v1225 = vpop.f32.mrb[0].mxu0
    %v1226 = vadd.f32 0.0, %v1225
    %v1227 = vpop.f32.mrb[0].mxu0
    %v1228 = vpop.f32.mrb[0].mxu0
    %v1229 = vadd.f32 0.0, %v1228
    %v1230 = vpop.f32.mrb[0].mxu0
    %1231 = vdwg.mxu0
    %v1232 = vsel %vm651, %v1202, -inf
    %1233 = vmax.xlane.f32.xlu0 %v1232
    %v1234 = vpop.xlane.xlu0 %1233
    %v1235 = vsel %vm651, %v1205, -inf
    %1236 = vmax.xlane.f32.xlu0 %v1235
    %v1237 = vpop.xlane.xlu0 %1236
    %v1238 = vsel %vm651, %v1210, -inf
    %1239 = vmax.xlane.f32.xlu0 %v1238
    %v1240 = vpop.xlane.xlu0 %1239
    %v1241 = vsel %vm651, %v1213, -inf
    %1242 = vmax.xlane.f32.xlu0 %v1241
    %v1243 = vpop.xlane.xlu0 %1242
    %v1244 = vsel %vm651, %v1218, -inf
    %1245 = vmax.xlane.f32.xlu0 %v1244
    %v1246 = vpop.xlane.xlu0 %1245
    %v1247 = vsel %vm651, %v1221, -inf
    %1248 = vmax.xlane.f32.xlu0 %v1247
    %v1249 = vpop.xlane.xlu0 %1248
    %v1250 = vsel %vm651, %v1226, -inf
    %1251 = vmax.xlane.f32.xlu0 %v1250
    %v1252 = vpop.xlane.xlu0 %1251
    %v1253 = vsel %vm651, %v1229, -inf
    %1254 = vmax.xlane.f32.xlu0 %v1253
    %v1255 = vpop.xlane.xlu0 %1254
    %v1256 = vsub.f32 %v1202, %v1234
    %v1257 = vsub.f32 %v1205, %v1237
    %v1258 = vsub.f32 %v1210, %v1240
    %v1259 = vsub.f32 %v1213, %v1243
    %v1260 = vsub.f32 %v1218, %v1246
    %v1261 = vsub.f32 %v1221, %v1249
    %v1262 = vsub.f32 %v1226, %v1252
    %v1263 = vsub.f32 %v1229, %v1255
    %v1264 = vpack.c.bf16 %v1257, %v1256
    %v1265 = vpack.c.bf16 %v1259, %v1258
    %v1266 = vpack.c.bf16 %v1261, %v1260
    %v1267 = vpack.c.bf16 %v1263, %v1262
    %v1269 = vmul.bf16 %v1264, 1069105081
    %v1270 = vpow.bf16.pop %v1269
    %v1272 = vmul.bf16 %v1265, 1069105081
    %v1273 = vpow.bf16.pop %v1272
    %v1275 = vmul.bf16 %v1266, 1069105081
    %v1276 = vpow.bf16.pop %v1275
    %v1278 = vmul.bf16 %v1267, 1069105081
    %v1279 = vpow.bf16.pop %v1278
    %v1280 = vunpack.c.l.bf16 %v1270
    %v1281 = vunpack.c.h.bf16 %v1270
    %v1282 = vunpack.c.l.bf16 %v1273
    %v1283 = vunpack.c.h.bf16 %v1273
    %v1284 = vunpack.c.l.bf16 %v1276
    %v1285 = vunpack.c.h.bf16 %v1276
    %v1286 = vunpack.c.l.bf16 %v1279
    %v1287 = vunpack.c.h.bf16 %v1279
    %v1288 = vsel %vm651, %v1280, 0.0
    %1289 = vadd.xlane.f32.xlu0 %v1288
    %v1290 = vpop.xlane.xlu0 %1289
    %v1291 = vsel %vm651, %v1281, 0.0
    %1292 = vadd.xlane.f32.xlu0 %v1291
    %v1293 = vpop.xlane.xlu0 %1292
    %v1294 = vsel %vm651, %v1282, 0.0
    %1295 = vadd.xlane.f32.xlu0 %v1294
    %v1296 = vpop.xlane.xlu0 %1295
    %v1297 = vsel %vm651, %v1283, 0.0
    %1298 = vadd.xlane.f32.xlu0 %v1297
    %v1299 = vpop.xlane.xlu0 %1298
    %v1300 = vsel %vm651, %v1284, 0.0
    %1301 = vadd.xlane.f32.xlu0 %v1300
    %v1302 = vpop.xlane.xlu0 %1301
    %v1303 = vsel %vm651, %v1285, 0.0
    %1304 = vadd.xlane.f32.xlu0 %v1303
    %v1305 = vpop.xlane.xlu0 %1304
    %v1306 = vsel %vm651, %v1286, 0.0
    %1307 = vadd.xlane.f32.xlu0 %v1306
    %v1308 = vpop.xlane.xlu0 %1307
    %v1309 = vsel %vm651, %v1287, 0.0
    %1310 = vadd.xlane.f32.xlu0 %v1309
    %v1311 = vpop.xlane.xlu0 %1310
    %1312 = vrot.lane.b32.xlu0 %v539, 112
    %v1313 = vpop.permute.xlu0 %1312
    %1314 = vrot.lane.b32.xlu0 %v542, 112
    %v1315 = vpop.permute.xlu0 %1314
    %1316 = vrot.lane.b32.xlu0 %v545, 112
    %v1317 = vpop.permute.xlu0 %1316
    %1318 = vrot.lane.b32.xlu0 %v548, 112
    %v1319 = vpop.permute.xlu0 %1318
    %v1325 = vsel %vm651, %v1270, 0
    %v1328 = vsel %vm651, %v1273, 0
    %v1331 = vsel %vm651, %v1276, 0
    %v1334 = vsel %vm651, %v1279, 0
    %1336 = vmatprep.subr.bf16.mxu0 0
    %1337 = vmatpush1.bf16.msra.mxu0 %v1313
    %1338 = vmatprep.subr.bf16.mxu0 0
    %1339 = vmatpush1.bf16.msra.mxu0 %v1315
    %1340 = vmatprep.subr.bf16.mxu0 0
    %1341 = vmatpush1.bf16.msra.mxu0 %v1317
    %1342 = vmatprep.subr.bf16.mxu0 0
    %1343 = vmatpush1.bf16.msra.mxu0 %v1319
    %1344 = vmatprep.subr.bf16.mxu0 0
    %1345 = vmatpush1.bf16.msra.mxu0 0
    %1346 = vmatprep.subr.bf16.mxu0 0
    %1347 = vmatpush1.bf16.msra.mxu0 0
    %1348 = vmatprep.subr.bf16.mxu0 0
    %1349 = vmatpush1.bf16.msra.mxu0 0
    %1350 = vmatprep.subr.bf16.mxu0 0
    %1351 = vmatpush1.bf16.msra.mxu0 0
    %1352 = vmatprep.subr.bf16.mxu0 0
    %1353 = vmatpush1.bf16.msra.mxu0 0
    %1354 = vmatprep.subr.bf16.mxu0 0
    %1355 = vmatpush1.bf16.msra.mxu0 0
    %1356 = vmatprep.subr.bf16.mxu0 0
    %1357 = vmatpush1.bf16.msra.mxu0 0
    %1358 = vmatprep.subr.bf16.mxu0 0
    %1359 = vmatpush1.bf16.msra.mxu0 0
    %1360 = vmatprep.subr.bf16.mxu0 0
    %1361 = vmatpush1.bf16.msra.mxu0 0
    %1362 = vmatprep.subr.bf16.mxu0 0
    %1363 = vmatpush1.bf16.msra.mxu0 0
    %1364 = vmatprep.subr.bf16.mxu0 0
    %1365 = vmatpush1.bf16.msra.mxu0 0
    %1366 = vmatprep.subr.bf16.mxu0 0
    %1367 = vmatpush1.bf16.msra.mxu0 0
    %1368 = vmatprep.mubr.bf16.mxu0 0
    %1369 = vmatmul.mubr.bf16.gmra.mrb[0].mxu0 %v1325
    %v1370 = vpop.f32.mrb[0].mxu0
    %v1371 = vadd.f32 0.0, %v1370
    %v1372 = vpop.f32.mrb[0].mxu0
    %v1373 = vpop.f32.mrb[0].mxu0
    %v1374 = vadd.f32 0.0, %v1373
    %v1375 = vpop.f32.mrb[0].mxu0
    %1376 = vmatprep.mubr.bf16.mxu0 0
    %1377 = vmatmul.mubr.bf16.gmra.mrb[0].mxu0 %v1328
    %v1378 = vpop.f32.mrb[0].mxu0
    %v1379 = vadd.f32 0.0, %v1378
    %v1380 = vpop.f32.mrb[0].mxu0
    %v1381 = vpop.f32.mrb[0].mxu0
    %v1382 = vadd.f32 0.0, %v1381
    %v1383 = vpop.f32.mrb[0].mxu0
    %1384 = vmatprep.mubr.bf16.mxu0 0
    %1385 = vmatmul.mubr.bf16.gmra.mrb[0].mxu0 %v1331
    %v1386 = vpop.f32.mrb[0].mxu0
    %v1387 = vadd.f32 0.0, %v1386
    %v1388 = vpop.f32.mrb[0].mxu0
    %v1389 = vpop.f32.mrb[0].mxu0
    %v1390 = vadd.f32 0.0, %v1389
    %v1391 = vpop.f32.mrb[0].mxu0
    %1392 = vmatprep.mubr.bf16.mxu0 0
    %1393 = vmatmul.mubr.bf16.gmra.mrb[0].mxu0 %v1334
    %v1394 = vpop.f32.mrb[0].mxu0
    %v1395 = vadd.f32 0.0, %v1394
    %v1396 = vpop.f32.mrb[0].mxu0
    %v1397 = vpop.f32.mrb[0].mxu0
    %v1398 = vadd.f32 0.0, %v1397
    %v1399 = vpop.f32.mrb[0].mxu0
    %1400 = vdwg.mxu0
    %v1401 = vrcp.pop %v1290
    %v1402 = vrcp.pop %v1293
    %v1403 = vrcp.pop %v1296
    %v1404 = vrcp.pop %v1299
    %v1405 = vrcp.pop %v1302
    %v1406 = vrcp.pop %v1305
    %v1407 = vrcp.pop %v1308
    %v1408 = vrcp.pop %v1311
    %v1409 = vmul.f32 %v1371, %v1401
    %v1410 = vmul.f32 %v1374, %v1402
    %v1411 = vmul.f32 %v1379, %v1403
    %v1412 = vmul.f32 %v1382, %v1404
    %v1413 = vmul.f32 %v1387, %v1405
    %v1414 = vmul.f32 %v1390, %v1406
    %v1415 = vmul.f32 %v1395, %v1407
    %v1416 = vmul.f32 %v1398, %v1408
    %1417 = vrot.lane.b32.xlu0 %v537, 104
    %v1418 = vpop.permute.xlu0 %1417
    %1419 = vrot.lane.b32.xlu0 %v540, 104
    %v1420 = vpop.permute.xlu0 %1419
    %1421 = vrot.lane.b32.xlu0 %v543, 104
    %v1422 = vpop.permute.xlu0 %1421
    %1423 = vrot.lane.b32.xlu0 %v546, 104
    %v1424 = vpop.permute.xlu0 %1423
    %1425 = vrot.lane.b32.xlu0 %v538, 104
    %v1426 = vpop.permute.xlu0 %1425
    %1427 = vrot.lane.b32.xlu0 %v541, 104
    %v1428 = vpop.permute.xlu0 %1427
    %1429 = vrot.lane.b32.xlu0 %v544, 104
    %v1430 = vpop.permute.xlu0 %1429
    %1431 = vrot.lane.b32.xlu0 %v547, 104
    %v1432 = vpop.permute.xlu0 %1431
    %v1434 = vsel %vm561, %v1418, 0
    %v1437 = vsel %vm561, %v1420, 0
    %v1440 = vsel %vm561, %v1422, 0
    %v1443 = vsel %vm561, %v1424, 0
    %v1446 = vsel %vm561, %v1426, 0
    %v1449 = vsel %vm561, %v1428, 0
    %v1452 = vsel %vm561, %v1430, 0
    %v1455 = vsel %vm561, %v1432, 0
    %1457 = vmatprep.subr.bf16.mxu0 0
    %1458 = vmatpush1.bf16.xpose.msra.mxu0 %v1446
    %1459 = vmatprep.subr.bf16.mxu0 0
    %1460 = vmatpush1.bf16.xpose.msra.mxu0 %v1449
    %1461 = vmatprep.subr.bf16.mxu0 0
    %1462 = vmatpush1.bf16.xpose.msra.mxu0 %v1452
    %1463 = vmatprep.subr.bf16.mxu0 0
    %1464 = vmatpush1.bf16.xpose.msra.mxu0 %v1455
    %1465 = vmatprep.subr.bf16.mxu0 0
    %1466 = vmatpush1.bf16.xpose.msra.mxu0 0
    %1467 = vmatprep.subr.bf16.mxu0 0
    %1468 = vmatpush1.bf16.xpose.msra.mxu0 0
    %1469 = vmatprep.subr.bf16.mxu0 0
    %1470 = vmatpush1.bf16.xpose.msra.mxu0 0
    %1471 = vmatprep.subr.bf16.mxu0 0
    %1472 = vmatpush1.bf16.xpose.msra.mxu0 0
    %1473 = vmatprep.subr.bf16.mxu0 0
    %1474 = vmatpush1.bf16.xpose.msra.mxu0 0
    %1475 = vmatprep.subr.bf16.mxu0 0
    %1476 = vmatpush1.bf16.xpose.msra.mxu0 0
    %1477 = vmatprep.subr.bf16.mxu0 0
    %1478 = vmatpush1.bf16.xpose.msra.mxu0 0
    %1479 = vmatprep.subr.bf16.mxu0 0
    %1480 = vmatpush1.bf16.xpose.msra.mxu0 0
    %1481 = vmatprep.subr.bf16.mxu0 0
    %1482 = vmatpush1.bf16.xpose.msra.mxu0 0
    %1483 = vmatprep.subr.bf16.mxu0 0
    %1484 = vmatpush1.bf16.xpose.msra.mxu0 0
    %1485 = vmatprep.subr.bf16.mxu0 0
    %1486 = vmatpush1.bf16.xpose.msra.mxu0 0
    %1487 = vmatprep.subr.bf16.mxu0 0
    %1488 = vmatpush1.bf16.xpose.msra.mxu0 0
    %1489 = vmatprep.mubr.bf16.mxu0 0
    %1490 = vmatmul.mubr.bf16.gmra.mrb[0].mxu0 %v1434
    %v1491 = vpop.f32.mrb[0].mxu0
    %v1492 = vadd.f32 0.0, %v1491
    %v1493 = vpop.f32.mrb[0].mxu0
    %v1494 = vpop.f32.mrb[0].mxu0
    %v1495 = vadd.f32 0.0, %v1494
    %v1496 = vpop.f32.mrb[0].mxu0
    %1497 = vmatprep.mubr.bf16.mxu0 0
    %1498 = vmatmul.mubr.bf16.gmra.mrb[0].mxu0 %v1437
    %v1499 = vpop.f32.mrb[0].mxu0
    %v1500 = vadd.f32 0.0, %v1499
    %v1501 = vpop.f32.mrb[0].mxu0
    %v1502 = vpop.f32.mrb[0].mxu0
    %v1503 = vadd.f32 0.0, %v1502
    %v1504 = vpop.f32.mrb[0].mxu0
    %1505 = vmatprep.mubr.bf16.mxu0 0
    %1506 = vmatmul.mubr.bf16.gmra.mrb[0].mxu0 %v1440
    %v1507 = vpop.f32.mrb[0].mxu0
    %v1508 = vadd.f32 0.0, %v1507
    %v1509 = vpop.f32.mrb[0].mxu0
    %v1510 = vpop.f32.mrb[0].mxu0
    %v1511 = vadd.f32 0.0, %v1510
    %v1512 = vpop.f32.mrb[0].mxu0
    %1513 = vmatprep.mubr.bf16.mxu0 0
    %1514 = vmatmul.mubr.bf16.gmra.mrb[0].mxu0 %v1443
    %v1515 = vpop.f32.mrb[0].mxu0
    %v1516 = vadd.f32 0.0, %v1515
    %v1517 = vpop.f32.mrb[0].mxu0
    %v1518 = vpop.f32.mrb[0].mxu0
    %v1519 = vadd.f32 0.0, %v1518
    %v1520 = vpop.f32.mrb[0].mxu0
    %1521 = vdwg.mxu0
    %v1522 = vsel %vm651, %v1492, -inf
    %1523 = vmax.xlane.f32.xlu0 %v1522
    %v1524 = vpop.xlane.xlu0 %1523
    %v1525 = vsel %vm651, %v1495, -inf
    %1526 = vmax.xlane.f32.xlu0 %v1525
    %v1527 = vpop.xlane.xlu0 %1526
    %v1528 = vsel %vm651, %v1500, -inf
    %1529 = vmax.xlane.f32.xlu0 %v1528
    %v1530 = vpop.xlane.xlu0 %1529
    %v1531 = vsel %vm651, %v1503, -inf
    %1532 = vmax.xlane.f32.xlu0 %v1531
    %v1533 = vpop.xlane.xlu0 %1532
    %v1534 = vsel %vm651, %v1508, -inf
    %1535 = vmax.xlane.f32.xlu0 %v1534
    %v1536 = vpop.xlane.xlu0 %1535
    %v1537 = vsel %vm651, %v1511, -inf
    %1538 = vmax.xlane.f32.xlu0 %v1537
    %v1539 = vpop.xlane.xlu0 %1538
    %v1540 = vsel %vm651, %v1516, -inf
    %1541 = vmax.xlane.f32.xlu0 %v1540
    %v1542 = vpop.xlane.xlu0 %1541
    %v1543 = vsel %vm651, %v1519, -inf
    %1544 = vmax.xlane.f32.xlu0 %v1543
    %v1545 = vpop.xlane.xlu0 %1544
    %v1546 = vsub.f32 %v1492, %v1524
    %v1547 = vsub.f32 %v1495, %v1527
    %v1548 = vsub.f32 %v1500, %v1530
    %v1549 = vsub.f32 %v1503, %v1533
    %v1550 = vsub.f32 %v1508, %v1536
    %v1551 = vsub.f32 %v1511, %v1539
    %v1552 = vsub.f32 %v1516, %v1542
    %v1553 = vsub.f32 %v1519, %v1545
    %v1554 = vpack.c.bf16 %v1547, %v1546
    %v1555 = vpack.c.bf16 %v1549, %v1548
    %v1556 = vpack.c.bf16 %v1551, %v1550
    %v1557 = vpack.c.bf16 %v1553, %v1552
    %v1559 = vmul.bf16 %v1554, 1069105081
    %v1560 = vpow.bf16.pop %v1559
    %v1562 = vmul.bf16 %v1555, 1069105081
    %v1563 = vpow.bf16.pop %v1562
    %v1565 = vmul.bf16 %v1556, 1069105081
    %v1566 = vpow.bf16.pop %v1565
    %v1568 = vmul.bf16 %v1557, 1069105081
    %v1569 = vpow.bf16.pop %v1568
    %v1570 = vunpack.c.l.bf16 %v1560
    %v1571 = vunpack.c.h.bf16 %v1560
    %v1572 = vunpack.c.l.bf16 %v1563
    %v1573 = vunpack.c.h.bf16 %v1563
    %v1574 = vunpack.c.l.bf16 %v1566
    %v1575 = vunpack.c.h.bf16 %v1566
    %v1576 = vunpack.c.l.bf16 %v1569
    %v1577 = vunpack.c.h.bf16 %v1569
    %v1578 = vsel %vm651, %v1570, 0.0
    %1579 = vadd.xlane.f32.xlu0 %v1578
    %v1580 = vpop.xlane.xlu0 %1579
    %v1581 = vsel %vm651, %v1571, 0.0
    %1582 = vadd.xlane.f32.xlu0 %v1581
    %v1583 = vpop.xlane.xlu0 %1582
    %v1584 = vsel %vm651, %v1572, 0.0
    %1585 = vadd.xlane.f32.xlu0 %v1584
    %v1586 = vpop.xlane.xlu0 %1585
    %v1587 = vsel %vm651, %v1573, 0.0
    %1588 = vadd.xlane.f32.xlu0 %v1587
    %v1589 = vpop.xlane.xlu0 %1588
    %v1590 = vsel %vm651, %v1574, 0.0
    %1591 = vadd.xlane.f32.xlu0 %v1590
    %v1592 = vpop.xlane.xlu0 %1591
    %v1593 = vsel %vm651, %v1575, 0.0
    %1594 = vadd.xlane.f32.xlu0 %v1593
    %v1595 = vpop.xlane.xlu0 %1594
    %v1596 = vsel %vm651, %v1576, 0.0
    %1597 = vadd.xlane.f32.xlu0 %v1596
    %v1598 = vpop.xlane.xlu0 %1597
    %v1599 = vsel %vm651, %v1577, 0.0
    %1600 = vadd.xlane.f32.xlu0 %v1599
    %v1601 = vpop.xlane.xlu0 %1600
    %1602 = vrot.lane.b32.xlu0 %v539, 104
    %v1603 = vpop.permute.xlu0 %1602
    %1604 = vrot.lane.b32.xlu0 %v542, 104
    %v1605 = vpop.permute.xlu0 %1604
    %1606 = vrot.lane.b32.xlu0 %v545, 104
    %v1607 = vpop.permute.xlu0 %1606
    %1608 = vrot.lane.b32.xlu0 %v548, 104
    %v1609 = vpop.permute.xlu0 %1608
    %v1615 = vsel %vm651, %v1560, 0
    %v1618 = vsel %vm651, %v1563, 0
    %v1621 = vsel %vm651, %v1566, 0
    %v1624 = vsel %vm651, %v1569, 0
    %1626 = vmatprep.subr.bf16.mxu0 0
    %1627 = vmatpush1.bf16.msra.mxu0 %v1603
    %1628 = vmatprep.subr.bf16.mxu0 0
    %1629 = vmatpush1.bf16.msra.mxu0 %v1605
    %1630 = vmatprep.subr.bf16.mxu0 0
    %1631 = vmatpush1.bf16.msra.mxu0 %v1607
    %1632 = vmatprep.subr.bf16.mxu0 0
    %1633 = vmatpush1.bf16.msra.mxu0 %v1609
    %1634 = vmatprep.subr.bf16.mxu0 0
    %1635 = vmatpush1.bf16.msra.mxu0 0
    %1636 = vmatprep.subr.bf16.mxu0 0
    %1637 = vmatpush1.bf16.msra.mxu0 0
    %1638 = vmatprep.subr.bf16.mxu0 0
    %1639 = vmatpush1.bf16.msra.mxu0 0
    %1640 = vmatprep.subr.bf16.mxu0 0
    %1641 = vmatpush1.bf16.msra.mxu0 0
    %1642 = vmatprep.subr.bf16.mxu0 0
    %1643 = vmatpush1.bf16.msra.mxu0 0
    %1644 = vmatprep.subr.bf16.mxu0 0
    %1645 = vmatpush1.bf16.msra.mxu0 0
    %1646 = vmatprep.subr.bf16.mxu0 0
    %1647 = vmatpush1.bf16.msra.mxu0 0
    %1648 = vmatprep.subr.bf16.mxu0 0
    %1649 = vmatpush1.bf16.msra.mxu0 0
    %1650 = vmatprep.subr.bf16.mxu0 0
    %1651 = vmatpush1.bf16.msra.mxu0 0
    %1652 = vmatprep.subr.bf16.mxu0 0
    %1653 = vmatpush1.bf16.msra.mxu0 0
    %1654 = vmatprep.subr.bf16.mxu0 0
    %1655 = vmatpush1.bf16.msra.mxu0 0
    %1656 = vmatprep.subr.bf16.mxu0 0
    %1657 = vmatpush1.bf16.msra.mxu0 0
    %1658 = vmatprep.mubr.bf16.mxu0 0
    %1659 = vmatmul.mubr.bf16.gmra.mrb[0].mxu0 %v1615
    %v1660 = vpop.f32.mrb[0].mxu0
    %v1661 = vadd.f32 0.0, %v1660
    %v1662 = vpop.f32.mrb[0].mxu0
    %v1663 = vpop.f32.mrb[0].mxu0
    %v1664 = vadd.f32 0.0, %v1663
    %v1665 = vpop.f32.mrb[0].mxu0
    %1666 = vmatprep.mubr.bf16.mxu0 0
    %1667 = vmatmul.mubr.bf16.gmra.mrb[0].mxu0 %v1618
    %v1668 = vpop.f32.mrb[0].mxu0
    %v1669 = vadd.f32 0.0, %v1668
    %v1670 = vpop.f32.mrb[0].mxu0
    %v1671 = vpop.f32.mrb[0].mxu0
    %v1672 = vadd.f32 0.0, %v1671
    %v1673 = vpop.f32.mrb[0].mxu0
    %1674 = vmatprep.mubr.bf16.mxu0 0
    %1675 = vmatmul.mubr.bf16.gmra.mrb[0].mxu0 %v1621
    %v1676 = vpop.f32.mrb[0].mxu0
    %v1677 = vadd.f32 0.0, %v1676
    %v1678 = vpop.f32.mrb[0].mxu0
    %v1679 = vpop.f32.mrb[0].mxu0
    %v1680 = vadd.f32 0.0, %v1679
    %v1681 = vpop.f32.mrb[0].mxu0
    %1682 = vmatprep.mubr.bf16.mxu0 0
    %1683 = vmatmul.mubr.bf16.gmra.mrb[0].mxu0 %v1624
    %v1684 = vpop.f32.mrb[0].mxu0
    %v1685 = vadd.f32 0.0, %v1684
    %v1686 = vpop.f32.mrb[0].mxu0
    %v1687 = vpop.f32.mrb[0].mxu0
    %v1688 = vadd.f32 0.0, %v1687
    %v1689 = vpop.f32.mrb[0].mxu0
    %1690 = vdwg.mxu0
    %v1691 = vrcp.pop %v1580
    %v1692 = vrcp.pop %v1583
    %v1693 = vrcp.pop %v1586
    %v1694 = vrcp.pop %v1589
    %v1695 = vrcp.pop %v1592
    %v1696 = vrcp.pop %v1595
    %v1697 = vrcp.pop %v1598
    %v1698 = vrcp.pop %v1601
    %v1699 = vmul.f32 %v1661, %v1691
    %v1700 = vmul.f32 %v1664, %v1692
    %v1701 = vmul.f32 %v1669, %v1693
    %v1702 = vmul.f32 %v1672, %v1694
    %v1703 = vmul.f32 %v1677, %v1695
    %v1704 = vmul.f32 %v1680, %v1696
    %v1705 = vmul.f32 %v1685, %v1697
    %v1706 = vmul.f32 %v1688, %v1698
    %1715 = vrot.lane.b32.xlu0 %v1119, 8
    %v1716 = vpop.permute.xlu0 %1715
    %1717 = vrot.lane.b32.xlu0 %v1120, 8
    %v1718 = vpop.permute.xlu0 %1717
    %1719 = vrot.lane.b32.xlu0 %v1121, 8
    %v1720 = vpop.permute.xlu0 %1719
    %1721 = vrot.lane.b32.xlu0 %v1122, 8
    %v1722 = vpop.permute.xlu0 %1721
    %1723 = vrot.lane.b32.xlu0 %v1123, 8
    %v1724 = vpop.permute.xlu0 %1723
    %1725 = vrot.lane.b32.xlu0 %v1124, 8
    %v1726 = vpop.permute.xlu0 %1725
    %1727 = vrot.lane.b32.xlu0 %v1125, 8
    %v1728 = vpop.permute.xlu0 %1727
    %1729 = vrot.lane.b32.xlu0 %v1126, 8
    %v1730 = vpop.permute.xlu0 %1729
    %1747 = vrot.lane.b32.xlu0 %v1409, 16
    %v1748 = vpop.permute.xlu0 %1747
    %1749 = vrot.lane.b32.xlu0 %v1410, 16
    %v1750 = vpop.permute.xlu0 %1749
    %1751 = vrot.lane.b32.xlu0 %v1411, 16
    %v1752 = vpop.permute.xlu0 %1751
    %1753 = vrot.lane.b32.xlu0 %v1412, 16
    %v1754 = vpop.permute.xlu0 %1753
    %1755 = vrot.lane.b32.xlu0 %v1413, 16
    %v1756 = vpop.permute.xlu0 %1755
    %1757 = vrot.lane.b32.xlu0 %v1414, 16
    %v1758 = vpop.permute.xlu0 %1757
    %1759 = vrot.lane.b32.xlu0 %v1415, 16
    %v1760 = vpop.permute.xlu0 %1759
    %1761 = vrot.lane.b32.xlu0 %v1416, 16
    %v1762 = vpop.permute.xlu0 %1761
    %1779 = vrot.lane.b32.xlu0 %v1699, 24
    %v1780 = vpop.permute.xlu0 %1779
    %1781 = vrot.lane.b32.xlu0 %v1700, 24
    %v1782 = vpop.permute.xlu0 %1781
    %1783 = vrot.lane.b32.xlu0 %v1701, 24
    %v1784 = vpop.permute.xlu0 %1783
    %1785 = vrot.lane.b32.xlu0 %v1702, 24
    %v1786 = vpop.permute.xlu0 %1785
    %1787 = vrot.lane.b32.xlu0 %v1703, 24
    %v1788 = vpop.permute.xlu0 %1787
    %1789 = vrot.lane.b32.xlu0 %v1704, 24
    %v1790 = vpop.permute.xlu0 %1789
    %1791 = vrot.lane.b32.xlu0 %v1705, 24
    %v1792 = vpop.permute.xlu0 %1791
    %1793 = vrot.lane.b32.xlu0 %v1706, 24
    %v1794 = vpop.permute.xlu0 %1793
    %v1803 = vsel %vm561, %v817, %v1716
    %v1804 = vsel %vm561, %v818, %v1718
    %v1805 = vsel %vm561, %v819, %v1720
    %v1806 = vsel %vm561, %v820, %v1722
    %v1807 = vsel %vm561, %v821, %v1724
    %v1808 = vsel %vm561, %v822, %v1726
    %v1809 = vsel %vm561, %v823, %v1728
    %v1810 = vsel %vm561, %v824, %v1730
    %vm1811 = vcmask 130048
    %v1812 = vsel %vm1811, %v1803, %v1748
    %v1813 = vsel %vm1811, %v1804, %v1750
    %v1814 = vsel %vm1811, %v1805, %v1752
    %v1815 = vsel %vm1811, %v1806, %v1754
    %v1816 = vsel %vm1811, %v1807, %v1756
    %v1817 = vsel %vm1811, %v1808, %v1758
    %v1818 = vsel %vm1811, %v1809, %v1760
    %v1819 = vsel %vm1811, %v1810, %v1762
    %vm1820 = vcmask 195584
    %v1821 = vsel %vm1820, %v1812, %v1780
    %v1822 = vsel %vm1820, %v1813, %v1782
    %v1823 = vsel %vm1820, %v1814, %v1784
    %v1824 = vsel %vm1820, %v1815, %v1786
    %v1825 = vsel %vm1820, %v1816, %v1788
    %v1826 = vsel %vm1820, %v1817, %v1790
    %v1827 = vsel %vm1820, %v1818, %v1792
    %v1828 = vsel %vm1820, %v1819, %v1794
    %v1830 = vsel %vm561, %v549, 0
    %v1833 = vsel %vm561, %v552, 0
    %v1836 = vsel %vm561, %v555, 0
    %v1839 = vsel %vm561, %v558, 0
    %v1842 = vsel %vm561, %v550, 0
    %v1845 = vsel %vm561, %v553, 0
    %v1848 = vsel %vm561, %v556, 0
    %v1851 = vsel %vm561, %v559, 0
    %1853 = vmatprep.subr.bf16.mxu0 0
    %1854 = vmatpush1.bf16.xpose.msra.mxu0 %v1842
    %1855 = vmatprep.subr.bf16.mxu0 0
    %1856 = vmatpush1.bf16.xpose.msra.mxu0 %v1845
    %1857 = vmatprep.subr.bf16.mxu0 0
    %1858 = vmatpush1.bf16.xpose.msra.mxu0 %v1848
    %1859 = vmatprep.subr.bf16.mxu0 0
    %1860 = vmatpush1.bf16.xpose.msra.mxu0 %v1851
    %1861 = vmatprep.subr.bf16.mxu0 0
    %1862 = vmatpush1.bf16.xpose.msra.mxu0 0
    %1863 = vmatprep.subr.bf16.mxu0 0
    %1864 = vmatpush1.bf16.xpose.msra.mxu0 0
    %1865 = vmatprep.subr.bf16.mxu0 0
    %1866 = vmatpush1.bf16.xpose.msra.mxu0 0
    %1867 = vmatprep.subr.bf16.mxu0 0
    %1868 = vmatpush1.bf16.xpose.msra.mxu0 0
    %1869 = vmatprep.subr.bf16.mxu0 0
    %1870 = vmatpush1.bf16.xpose.msra.mxu0 0
    %1871 = vmatprep.subr.bf16.mxu0 0
    %1872 = vmatpush1.bf16.xpose.msra.mxu0 0
    %1873 = vmatprep.subr.bf16.mxu0 0
    %1874 = vmatpush1.bf16.xpose.msra.mxu0 0
    %1875 = vmatprep.subr.bf16.mxu0 0
    %1876 = vmatpush1.bf16.xpose.msra.mxu0 0
    %1877 = vmatprep.subr.bf16.mxu0 0
    %1878 = vmatpush1.bf16.xpose.msra.mxu0 0
    %1879 = vmatprep.subr.bf16.mxu0 0
    %1880 = vmatpush1.bf16.xpose.msra.mxu0 0
    %1881 = vmatprep.subr.bf16.mxu0 0
    %1882 = vmatpush1.bf16.xpose.msra.mxu0 0
    %1883 = vmatprep.subr.bf16.mxu0 0
    %1884 = vmatpush1.bf16.xpose.msra.mxu0 0
    %1885 = vmatprep.mubr.bf16.mxu0 0
    %1886 = vmatmul.mubr.bf16.gmra.mrb[0].mxu0 %v1830
    %v1887 = vpop.f32.mrb[0].mxu0
    %v1888 = vadd.f32 0.0, %v1887
    %v1889 = vpop.f32.mrb[0].mxu0
    %v1890 = vpop.f32.mrb[0].mxu0
    %v1891 = vadd.f32 0.0, %v1890
    %v1892 = vpop.f32.mrb[0].mxu0
    %1893 = vmatprep.mubr.bf16.mxu0 0
    %1894 = vmatmul.mubr.bf16.gmra.mrb[0].mxu0 %v1833
    %v1895 = vpop.f32.mrb[0].mxu0
    %v1896 = vadd.f32 0.0, %v1895
    %v1897 = vpop.f32.mrb[0].mxu0
    %v1898 = vpop.f32.mrb[0].mxu0
    %v1899 = vadd.f32 0.0, %v1898
    %v1900 = vpop.f32.mrb[0].mxu0
    %1901 = vmatprep.mubr.bf16.mxu0 0
    %1902 = vmatmul.mubr.bf16.gmra.mrb[0].mxu0 %v1836
    %v1903 = vpop.f32.mrb[0].mxu0
    %v1904 = vadd.f32 0.0, %v1903
    %v1905 = vpop.f32.mrb[0].mxu0
    %v1906 = vpop.f32.mrb[0].mxu0
    %v1907 = vadd.f32 0.0, %v1906
    %v1908 = vpop.f32.mrb[0].mxu0
    %1909 = vmatprep.mubr.bf16.mxu0 0
    %1910 = vmatmul.mubr.bf16.gmra.mrb[0].mxu0 %v1839
    %v1911 = vpop.f32.mrb[0].mxu0
    %v1912 = vadd.f32 0.0, %v1911
    %v1913 = vpop.f32.mrb[0].mxu0
    %v1914 = vpop.f32.mrb[0].mxu0
    %v1915 = vadd.f32 0.0, %v1914
    %v1916 = vpop.f32.mrb[0].mxu0
    %1917 = vdwg.mxu0
    %v1918 = vsel %vm651, %v1888, -inf
    %1919 = vmax.xlane.f32.xlu0 %v1918
    %v1920 = vpop.xlane.xlu0 %1919
    %v1921 = vsel %vm651, %v1891, -inf
    %1922 = vmax.xlane.f32.xlu0 %v1921
    %v1923 = vpop.xlane.xlu0 %1922
    %v1924 = vsel %vm651, %v1896, -inf
    %1925 = vmax.xlane.f32.xlu0 %v1924
    %v1926 = vpop.xlane.xlu0 %1925
    %v1927 = vsel %vm651, %v1899, -inf
    %1928 = vmax.xlane.f32.xlu0 %v1927
    %v1929 = vpop.xlane.xlu0 %1928
    %v1930 = vsel %vm651, %v1904, -inf
    %1931 = vmax.xlane.f32.xlu0 %v1930
    %v1932 = vpop.xlane.xlu0 %1931
    %v1933 = vsel %vm651, %v1907, -inf
    %1934 = vmax.xlane.f32.xlu0 %v1933
    %v1935 = vpop.xlane.xlu0 %1934
    %v1936 = vsel %vm651, %v1912, -inf
    %1937 = vmax.xlane.f32.xlu0 %v1936
    %v1938 = vpop.xlane.xlu0 %1937
    %v1939 = vsel %vm651, %v1915, -inf
    %1940 = vmax.xlane.f32.xlu0 %v1939
    %v1941 = vpop.xlane.xlu0 %1940
    %v1942 = vsub.f32 %v1888, %v1920
    %v1943 = vsub.f32 %v1891, %v1923
    %v1944 = vsub.f32 %v1896, %v1926
    %v1945 = vsub.f32 %v1899, %v1929
    %v1946 = vsub.f32 %v1904, %v1932
    %v1947 = vsub.f32 %v1907, %v1935
    %v1948 = vsub.f32 %v1912, %v1938
    %v1949 = vsub.f32 %v1915, %v1941
    %v1950 = vpack.c.bf16 %v1943, %v1942
    %v1951 = vpack.c.bf16 %v1945, %v1944
    %v1952 = vpack.c.bf16 %v1947, %v1946
    %v1953 = vpack.c.bf16 %v1949, %v1948
    %v1955 = vmul.bf16 %v1950, 1069105081
    %v1956 = vpow.bf16.pop %v1955
    %v1958 = vmul.bf16 %v1951, 1069105081
    %v1959 = vpow.bf16.pop %v1958
    %v1961 = vmul.bf16 %v1952, 1069105081
    %v1962 = vpow.bf16.pop %v1961
    %v1964 = vmul.bf16 %v1953, 1069105081
    %v1965 = vpow.bf16.pop %v1964
    %v1966 = vunpack.c.l.bf16 %v1956
    %v1967 = vunpack.c.h.bf16 %v1956
    %v1968 = vunpack.c.l.bf16 %v1959
    %v1969 = vunpack.c.h.bf16 %v1959
    %v1970 = vunpack.c.l.bf16 %v1962
    %v1971 = vunpack.c.h.bf16 %v1962
    %v1972 = vunpack.c.l.bf16 %v1965
    %v1973 = vunpack.c.h.bf16 %v1965
    %v1974 = vsel %vm651, %v1966, 0.0
    %1975 = vadd.xlane.f32.xlu0 %v1974
    %v1976 = vpop.xlane.xlu0 %1975
    %v1977 = vsel %vm651, %v1967, 0.0
    %1978 = vadd.xlane.f32.xlu0 %v1977
    %v1979 = vpop.xlane.xlu0 %1978
    %v1980 = vsel %vm651, %v1968, 0.0
    %1981 = vadd.xlane.f32.xlu0 %v1980
    %v1982 = vpop.xlane.xlu0 %1981
    %v1983 = vsel %vm651, %v1969, 0.0
    %1984 = vadd.xlane.f32.xlu0 %v1983
    %v1985 = vpop.xlane.xlu0 %1984
    %v1986 = vsel %vm651, %v1970, 0.0
    %1987 = vadd.xlane.f32.xlu0 %v1986
    %v1988 = vpop.xlane.xlu0 %1987
    %v1989 = vsel %vm651, %v1971, 0.0
    %1990 = vadd.xlane.f32.xlu0 %v1989
    %v1991 = vpop.xlane.xlu0 %1990
    %v1992 = vsel %vm651, %v1972, 0.0
    %1993 = vadd.xlane.f32.xlu0 %v1992
    %v1994 = vpop.xlane.xlu0 %1993
    %v1995 = vsel %vm651, %v1973, 0.0
    %1996 = vadd.xlane.f32.xlu0 %v1995
    %v1997 = vpop.xlane.xlu0 %1996
    %v1999 = vsel %vm651, %v1956, 0
    %v2002 = vsel %vm651, %v1959, 0
    %v2005 = vsel %vm651, %v1962, 0
    %v2008 = vsel %vm651, %v1965, 0
    %2010 = vmatprep.subr.bf16.mxu0 0
    %2011 = vmatpush1.bf16.msra.mxu0 %v551
    %2012 = vmatprep.subr.bf16.mxu0 0
    %2013 = vmatpush1.bf16.msra.mxu0 %v554
    %2014 = vmatprep.subr.bf16.mxu0 0
    %2015 = vmatpush1.bf16.msra.mxu0 %v557
    %2016 = vmatprep.subr.bf16.mxu0 0
    %2017 = vmatpush1.bf16.msra.mxu0 %v560
    %2018 = vmatprep.subr.bf16.mxu0 0
    %2019 = vmatpush1.bf16.msra.mxu0 0
    %2020 = vmatprep.subr.bf16.mxu0 0
    %2021 = vmatpush1.bf16.msra.mxu0 0
    %2022 = vmatprep.subr.bf16.mxu0 0
    %2023 = vmatpush1.bf16.msra.mxu0 0
    %2024 = vmatprep.subr.bf16.mxu0 0
    %2025 = vmatpush1.bf16.msra.mxu0 0
    %2026 = vmatprep.subr.bf16.mxu0 0
    %2027 = vmatpush1.bf16.msra.mxu0 0
    %2028 = vmatprep.subr.bf16.mxu0 0
    %2029 = vmatpush1.bf16.msra.mxu0 0
    %2030 = vmatprep.subr.bf16.mxu0 0
    %2031 = vmatpush1.bf16.msra.mxu0 0
    %2032 = vmatprep.subr.bf16.mxu0 0
    %2033 = vmatpush1.bf16.msra.mxu0 0
    %2034 = vmatprep.subr.bf16.mxu0 0
    %2035 = vmatpush1.bf16.msra.mxu0 0
    %2036 = vmatprep.subr.bf16.mxu0 0
    %2037 = vmatpush1.bf16.msra.mxu0 0
    %2038 = vmatprep.subr.bf16.mxu0 0
    %2039 = vmatpush1.bf16.msra.mxu0 0
    %2040 = vmatprep.subr.bf16.mxu0 0
    %2041 = vmatpush1.bf16.msra.mxu0 0
    %2042 = vmatprep.mubr.bf16.mxu0 0
    %2043 = vmatmul.mubr.bf16.gmra.mrb[0].mxu0 %v1999
    %v2044 = vpop.f32.mrb[0].mxu0
    %v2045 = vadd.f32 0.0, %v2044
    %v2046 = vpop.f32.mrb[0].mxu0
    %v2047 = vpop.f32.mrb[0].mxu0
    %v2048 = vadd.f32 0.0, %v2047
    %v2049 = vpop.f32.mrb[0].mxu0
    %2050 = vmatprep.mubr.bf16.mxu0 0
    %2051 = vmatmul.mubr.bf16.gmra.mrb[0].mxu0 %v2002
    %v2052 = vpop.f32.mrb[0].mxu0
    %v2053 = vadd.f32 0.0, %v2052
    %v2054 = vpop.f32.mrb[0].mxu0
    %v2055 = vpop.f32.mrb[0].mxu0
    %v2056 = vadd.f32 0.0, %v2055
    %v2057 = vpop.f32.mrb[0].mxu0
    %2058 = vmatprep.mubr.bf16.mxu0 0
    %2059 = vmatmul.mubr.bf16.gmra.mrb[0].mxu0 %v2005
    %v2060 = vpop.f32.mrb[0].mxu0
    %v2061 = vadd.f32 0.0, %v2060
    %v2062 = vpop.f32.mrb[0].mxu0
    %v2063 = vpop.f32.mrb[0].mxu0
    %v2064 = vadd.f32 0.0, %v2063
    %v2065 = vpop.f32.mrb[0].mxu0
    %2066 = vmatprep.mubr.bf16.mxu0 0
    %2067 = vmatmul.mubr.bf16.gmra.mrb[0].mxu0 %v2008
    %v2068 = vpop.f32.mrb[0].mxu0
    %v2069 = vadd.f32 0.0, %v2068
    %v2070 = vpop.f32.mrb[0].mxu0
    %v2071 = vpop.f32.mrb[0].mxu0
    %v2072 = vadd.f32 0.0, %v2071
    %v2073 = vpop.f32.mrb[0].mxu0
    %2074 = vdwg.mxu0
    %v2075 = vrcp.pop %v1976
    %v2076 = vrcp.pop %v1979
    %v2077 = vrcp.pop %v1982
    %v2078 = vrcp.pop %v1985
    %v2079 = vrcp.pop %v1988
    %v2080 = vrcp.pop %v1991
    %v2081 = vrcp.pop %v1994
    %v2082 = vrcp.pop %v1997
    %v2083 = vmul.f32 %v2045, %v2075
    %v2084 = vmul.f32 %v2048, %v2076
    %v2085 = vmul.f32 %v2053, %v2077
    %v2086 = vmul.f32 %v2056, %v2078
    %v2087 = vmul.f32 %v2061, %v2079
    %v2088 = vmul.f32 %v2064, %v2080
    %v2089 = vmul.f32 %v2069, %v2081
    %v2090 = vmul.f32 %v2072, %v2082
    %2095 = vrot.lane.b32.xlu0 %v549, 120
    %v2096 = vpop.permute.xlu0 %2095
    %2097 = vrot.lane.b32.xlu0 %v552, 120
    %v2098 = vpop.permute.xlu0 %2097
    %2099 = vrot.lane.b32.xlu0 %v555, 120
    %v2100 = vpop.permute.xlu0 %2099
    %2101 = vrot.lane.b32.xlu0 %v558, 120
    %v2102 = vpop.permute.xlu0 %2101
    %2107 = vrot.lane.b32.xlu0 %v550, 120
    %v2108 = vpop.permute.xlu0 %2107
    %2109 = vrot.lane.b32.xlu0 %v553, 120
    %v2110 = vpop.permute.xlu0 %2109
    %2111 = vrot.lane.b32.xlu0 %v556, 120
    %v2112 = vpop.permute.xlu0 %2111
    %2113 = vrot.lane.b32.xlu0 %v559, 120
    %v2114 = vpop.permute.xlu0 %2113
    %v2116 = vsel %vm561, %v2096, 0
    %v2119 = vsel %vm561, %v2098, 0
    %v2122 = vsel %vm561, %v2100, 0
    %v2125 = vsel %vm561, %v2102, 0
    %v2128 = vsel %vm561, %v2108, 0
    %v2131 = vsel %vm561, %v2110, 0
    %v2134 = vsel %vm561, %v2112, 0
    %v2137 = vsel %vm561, %v2114, 0
    %2139 = vmatprep.subr.bf16.mxu0 0
    %2140 = vmatpush1.bf16.xpose.msra.mxu0 %v2128
    %2141 = vmatprep.subr.bf16.mxu0 0
    %2142 = vmatpush1.bf16.xpose.msra.mxu0 %v2131
    %2143 = vmatprep.subr.bf16.mxu0 0
    %2144 = vmatpush1.bf16.xpose.msra.mxu0 %v2134
    %2145 = vmatprep.subr.bf16.mxu0 0
    %2146 = vmatpush1.bf16.xpose.msra.mxu0 %v2137
    %2147 = vmatprep.subr.bf16.mxu0 0
    %2148 = vmatpush1.bf16.xpose.msra.mxu0 0
    %2149 = vmatprep.subr.bf16.mxu0 0
    %2150 = vmatpush1.bf16.xpose.msra.mxu0 0
    %2151 = vmatprep.subr.bf16.mxu0 0
    %2152 = vmatpush1.bf16.xpose.msra.mxu0 0
    %2153 = vmatprep.subr.bf16.mxu0 0
    %2154 = vmatpush1.bf16.xpose.msra.mxu0 0
    %2155 = vmatprep.subr.bf16.mxu0 0
    %2156 = vmatpush1.bf16.xpose.msra.mxu0 0
    %2157 = vmatprep.subr.bf16.mxu0 0
    %2158 = vmatpush1.bf16.xpose.msra.mxu0 0
    %2159 = vmatprep.subr.bf16.mxu0 0
    %2160 = vmatpush1.bf16.xpose.msra.mxu0 0
    %2161 = vmatprep.subr.bf16.mxu0 0
    %2162 = vmatpush1.bf16.xpose.msra.mxu0 0
    %2163 = vmatprep.subr.bf16.mxu0 0
    %2164 = vmatpush1.bf16.xpose.msra.mxu0 0
    %2165 = vmatprep.subr.bf16.mxu0 0
    %2166 = vmatpush1.bf16.xpose.msra.mxu0 0
    %2167 = vmatprep.subr.bf16.mxu0 0
    %2168 = vmatpush1.bf16.xpose.msra.mxu0 0
    %2169 = vmatprep.subr.bf16.mxu0 0
    %2170 = vmatpush1.bf16.xpose.msra.mxu0 0
    %2171 = vmatprep.mubr.bf16.mxu0 0
    %2172 = vmatmul.mubr.bf16.gmra.mrb[0].mxu0 %v2116
    %v2173 = vpop.f32.mrb[0].mxu0
    %v2174 = vadd.f32 0.0, %v2173
    %v2175 = vpop.f32.mrb[0].mxu0
    %v2176 = vpop.f32.mrb[0].mxu0
    %v2177 = vadd.f32 0.0, %v2176
    %v2178 = vpop.f32.mrb[0].mxu0
    %2179 = vmatprep.mubr.bf16.mxu0 0
    %2180 = vmatmul.mubr.bf16.gmra.mrb[0].mxu0 %v2119
    %v2181 = vpop.f32.mrb[0].mxu0
    %v2182 = vadd.f32 0.0, %v2181
    %v2183 = vpop.f32.mrb[0].mxu0
    %v2184 = vpop.f32.mrb[0].mxu0
    %v2185 = vadd.f32 0.0, %v2184
    %v2186 = vpop.f32.mrb[0].mxu0
    %2187 = vmatprep.mubr.bf16.mxu0 0
    %2188 = vmatmul.mubr.bf16.gmra.mrb[0].mxu0 %v2122
    %v2189 = vpop.f32.mrb[0].mxu0
    %v2190 = vadd.f32 0.0, %v2189
    %v2191 = vpop.f32.mrb[0].mxu0
    %v2192 = vpop.f32.mrb[0].mxu0
    %v2193 = vadd.f32 0.0, %v2192
    %v2194 = vpop.f32.mrb[0].mxu0
    %2195 = vmatprep.mubr.bf16.mxu0 0
    %2196 = vmatmul.mubr.bf16.gmra.mrb[0].mxu0 %v2125
    %v2197 = vpop.f32.mrb[0].mxu0
    %v2198 = vadd.f32 0.0, %v2197
    %v2199 = vpop.f32.mrb[0].mxu0
    %v2200 = vpop.f32.mrb[0].mxu0
    %v2201 = vadd.f32 0.0, %v2200
    %v2202 = vpop.f32.mrb[0].mxu0
    %2203 = vdwg.mxu0
    %v2204 = vsel %vm651, %v2174, -inf
    %2205 = vmax.xlane.f32.xlu0 %v2204
    %v2206 = vpop.xlane.xlu0 %2205
    %v2207 = vsel %vm651, %v2177, -inf
    %2208 = vmax.xlane.f32.xlu0 %v2207
    %v2209 = vpop.xlane.xlu0 %2208
    %v2210 = vsel %vm651, %v2182, -inf
    %2211 = vmax.xlane.f32.xlu0 %v2210
    %v2212 = vpop.xlane.xlu0 %2211
    %v2213 = vsel %vm651, %v2185, -inf
    %2214 = vmax.xlane.f32.xlu0 %v2213
    %v2215 = vpop.xlane.xlu0 %2214
    %v2216 = vsel %vm651, %v2190, -inf
    %2217 = vmax.xlane.f32.xlu0 %v2216
    %v2218 = vpop.xlane.xlu0 %2217
    %v2219 = vsel %vm651, %v2193, -inf
    %2220 = vmax.xlane.f32.xlu0 %v2219
    %v2221 = vpop.xlane.xlu0 %2220
    %v2222 = vsel %vm651, %v2198, -inf
    %2223 = vmax.xlane.f32.xlu0 %v2222
    %v2224 = vpop.xlane.xlu0 %2223
    %v2225 = vsel %vm651, %v2201, -inf
    %2226 = vmax.xlane.f32.xlu0 %v2225
    %v2227 = vpop.xlane.xlu0 %2226
    %v2228 = vsub.f32 %v2174, %v2206
    %v2229 = vsub.f32 %v2177, %v2209
    %v2230 = vsub.f32 %v2182, %v2212
    %v2231 = vsub.f32 %v2185, %v2215
    %v2232 = vsub.f32 %v2190, %v2218
    %v2233 = vsub.f32 %v2193, %v2221
    %v2234 = vsub.f32 %v2198, %v2224
    %v2235 = vsub.f32 %v2201, %v2227
    %v2236 = vpack.c.bf16 %v2229, %v2228
    %v2237 = vpack.c.bf16 %v2231, %v2230
    %v2238 = vpack.c.bf16 %v2233, %v2232
    %v2239 = vpack.c.bf16 %v2235, %v2234
    %v2241 = vmul.bf16 %v2236, 1069105081
    %v2242 = vpow.bf16.pop %v2241
    %v2244 = vmul.bf16 %v2237, 1069105081
    %v2245 = vpow.bf16.pop %v2244
    %v2247 = vmul.bf16 %v2238, 1069105081
    %v2248 = vpow.bf16.pop %v2247
    %v2250 = vmul.bf16 %v2239, 1069105081
    %v2251 = vpow.bf16.pop %v2250
    %v2252 = vunpack.c.l.bf16 %v2242
    %v2253 = vunpack.c.h.bf16 %v2242
    %v2254 = vunpack.c.l.bf16 %v2245
    %v2255 = vunpack.c.h.bf16 %v2245
    %v2256 = vunpack.c.l.bf16 %v2248
    %v2257 = vunpack.c.h.bf16 %v2248
    %v2258 = vunpack.c.l.bf16 %v2251
    %v2259 = vunpack.c.h.bf16 %v2251
    %v2260 = vsel %vm651, %v2252, 0.0
    %2261 = vadd.xlane.f32.xlu0 %v2260
    %v2262 = vpop.xlane.xlu0 %2261
    %v2263 = vsel %vm651, %v2253, 0.0
    %2264 = vadd.xlane.f32.xlu0 %v2263
    %v2265 = vpop.xlane.xlu0 %2264
    %v2266 = vsel %vm651, %v2254, 0.0
    %2267 = vadd.xlane.f32.xlu0 %v2266
    %v2268 = vpop.xlane.xlu0 %2267
    %v2269 = vsel %vm651, %v2255, 0.0
    %2270 = vadd.xlane.f32.xlu0 %v2269
    %v2271 = vpop.xlane.xlu0 %2270
    %v2272 = vsel %vm651, %v2256, 0.0
    %2273 = vadd.xlane.f32.xlu0 %v2272
    %v2274 = vpop.xlane.xlu0 %2273
    %v2275 = vsel %vm651, %v2257, 0.0
    %2276 = vadd.xlane.f32.xlu0 %v2275
    %v2277 = vpop.xlane.xlu0 %2276
    %v2278 = vsel %vm651, %v2258, 0.0
    %2279 = vadd.xlane.f32.xlu0 %v2278
    %v2280 = vpop.xlane.xlu0 %2279
    %v2281 = vsel %vm651, %v2259, 0.0
    %2282 = vadd.xlane.f32.xlu0 %v2281
    %v2283 = vpop.xlane.xlu0 %2282
    %2288 = vrot.lane.b32.xlu0 %v551, 120
    %v2289 = vpop.permute.xlu0 %2288
    %2290 = vrot.lane.b32.xlu0 %v554, 120
    %v2291 = vpop.permute.xlu0 %2290
    %2292 = vrot.lane.b32.xlu0 %v557, 120
    %v2293 = vpop.permute.xlu0 %2292
    %2294 = vrot.lane.b32.xlu0 %v560, 120
    %v2295 = vpop.permute.xlu0 %2294
    %v2301 = vsel %vm651, %v2242, 0
    %v2304 = vsel %vm651, %v2245, 0
    %v2307 = vsel %vm651, %v2248, 0
    %v2310 = vsel %vm651, %v2251, 0
    %2312 = vmatprep.subr.bf16.mxu0 0
    %2313 = vmatpush1.bf16.msra.mxu0 %v2289
    %2314 = vmatprep.subr.bf16.mxu0 0
    %2315 = vmatpush1.bf16.msra.mxu0 %v2291
    %2316 = vmatprep.subr.bf16.mxu0 0
    %2317 = vmatpush1.bf16.msra.mxu0 %v2293
    %2318 = vmatprep.subr.bf16.mxu0 0
    %2319 = vmatpush1.bf16.msra.mxu0 %v2295
    %2320 = vmatprep.subr.bf16.mxu0 0
    %2321 = vmatpush1.bf16.msra.mxu0 0
    %2322 = vmatprep.subr.bf16.mxu0 0
    %2323 = vmatpush1.bf16.msra.mxu0 0
    %2324 = vmatprep.subr.bf16.mxu0 0
    %2325 = vmatpush1.bf16.msra.mxu0 0
    %2326 = vmatprep.subr.bf16.mxu0 0
    %2327 = vmatpush1.bf16.msra.mxu0 0
    %2328 = vmatprep.subr.bf16.mxu0 0
    %2329 = vmatpush1.bf16.msra.mxu0 0
    %2330 = vmatprep.subr.bf16.mxu0 0
    %2331 = vmatpush1.bf16.msra.mxu0 0
    %2332 = vmatprep.subr.bf16.mxu0 0
    %2333 = vmatpush1.bf16.msra.mxu0 0
    %2334 = vmatprep.subr.bf16.mxu0 0
    %2335 = vmatpush1.bf16.msra.mxu0 0
    %2336 = vmatprep.subr.bf16.mxu0 0
    %2337 = vmatpush1.bf16.msra.mxu0 0
    %2338 = vmatprep.subr.bf16.mxu0 0
    %2339 = vmatpush1.bf16.msra.mxu0 0
    %2340 = vmatprep.subr.bf16.mxu0 0
    %2341 = vmatpush1.bf16.msra.mxu0 0
    %2342 = vmatprep.subr.bf16.mxu0 0
    %2343 = vmatpush1.bf16.msra.mxu0 0
    %2344 = vmatprep.mubr.bf16.mxu0 0
    %2345 = vmatmul.mubr.bf16.gmra.mrb[0].mxu0 %v2301
    %v2346 = vpop.f32.mrb[0].mxu0
    %v2347 = vadd.f32 0.0, %v2346
    %v2348 = vpop.f32.mrb[0].mxu0
    %v2349 = vpop.f32.mrb[0].mxu0
    %v2350 = vadd.f32 0.0, %v2349
    %v2351 = vpop.f32.mrb[0].mxu0
    %2352 = vmatprep.mubr.bf16.mxu0 0
    %2353 = vmatmul.mubr.bf16.gmra.mrb[0].mxu0 %v2304
    %v2354 = vpop.f32.mrb[0].mxu0
    %v2355 = vadd.f32 0.0, %v2354
    %v2356 = vpop.f32.mrb[0].mxu0
    %v2357 = vpop.f32.mrb[0].mxu0
    %v2358 = vadd.f32 0.0, %v2357
    %v2359 = vpop.f32.mrb[0].mxu0
    %2360 = vmatprep.mubr.bf16.mxu0 0
    %2361 = vmatmul.mubr.bf16.gmra.mrb[0].mxu0 %v2307
    %v2362 = vpop.f32.mrb[0].mxu0
    %v2363 = vadd.f32 0.0, %v2362
    %v2364 = vpop.f32.mrb[0].mxu0
    %v2365 = vpop.f32.mrb[0].mxu0
    %v2366 = vadd.f32 0.0, %v2365
    %v2367 = vpop.f32.mrb[0].mxu0
    %2368 = vmatprep.mubr.bf16.mxu0 0
    %2369 = vmatmul.mubr.bf16.gmra.mrb[0].mxu0 %v2310
    %v2370 = vpop.f32.mrb[0].mxu0
    %v2371 = vadd.f32 0.0, %v2370
    %v2372 = vpop.f32.mrb[0].mxu0
    %v2373 = vpop.f32.mrb[0].mxu0
    %v2374 = vadd.f32 0.0, %v2373
    %v2375 = vpop.f32.mrb[0].mxu0
    %2376 = vdwg.mxu0
    %v2377 = vrcp.pop %v2262
    %v2378 = vrcp.pop %v2265
    %v2379 = vrcp.pop %v2268
    %v2380 = vrcp.pop %v2271
    %v2381 = vrcp.pop %v2274
    %v2382 = vrcp.pop %v2277
    %v2383 = vrcp.pop %v2280
    %v2384 = vrcp.pop %v2283
    %v2385 = vmul.f32 %v2347, %v2377
    %v2386 = vmul.f32 %v2350, %v2378
    %v2387 = vmul.f32 %v2355, %v2379
    %v2388 = vmul.f32 %v2358, %v2380
    %v2389 = vmul.f32 %v2363, %v2381
    %v2390 = vmul.f32 %v2366, %v2382
    %v2391 = vmul.f32 %v2371, %v2383
    %v2392 = vmul.f32 %v2374, %v2384
    %2393 = vrot.lane.b32.xlu0 %v549, 112
    %v2394 = vpop.permute.xlu0 %2393
    %2395 = vrot.lane.b32.xlu0 %v552, 112
    %v2396 = vpop.permute.xlu0 %2395
    %2397 = vrot.lane.b32.xlu0 %v555, 112
    %v2398 = vpop.permute.xlu0 %2397
    %2399 = vrot.lane.b32.xlu0 %v558, 112
    %v2400 = vpop.permute.xlu0 %2399
    %2401 = vrot.lane.b32.xlu0 %v550, 112
    %v2402 = vpop.permute.xlu0 %2401
    %2403 = vrot.lane.b32.xlu0 %v553, 112
    %v2404 = vpop.permute.xlu0 %2403
    %2405 = vrot.lane.b32.xlu0 %v556, 112
    %v2406 = vpop.permute.xlu0 %2405
    %2407 = vrot.lane.b32.xlu0 %v559, 112
    %v2408 = vpop.permute.xlu0 %2407
    %v2410 = vsel %vm561, %v2394, 0
    %v2413 = vsel %vm561, %v2396, 0
    %v2416 = vsel %vm561, %v2398, 0
    %v2419 = vsel %vm561, %v2400, 0
    %v2422 = vsel %vm561, %v2402, 0
    %v2425 = vsel %vm561, %v2404, 0
    %v2428 = vsel %vm561, %v2406, 0
    %v2431 = vsel %vm561, %v2408, 0
    %2433 = vmatprep.subr.bf16.mxu0 0
    %2434 = vmatpush1.bf16.xpose.msra.mxu0 %v2422
    %2435 = vmatprep.subr.bf16.mxu0 0
    %2436 = vmatpush1.bf16.xpose.msra.mxu0 %v2425
    %2437 = vmatprep.subr.bf16.mxu0 0
    %2438 = vmatpush1.bf16.xpose.msra.mxu0 %v2428
    %2439 = vmatprep.subr.bf16.mxu0 0
    %2440 = vmatpush1.bf16.xpose.msra.mxu0 %v2431
    %2441 = vmatprep.subr.bf16.mxu0 0
    %2442 = vmatpush1.bf16.xpose.msra.mxu0 0
    %2443 = vmatprep.subr.bf16.mxu0 0
    %2444 = vmatpush1.bf16.xpose.msra.mxu0 0
    %2445 = vmatprep.subr.bf16.mxu0 0
    %2446 = vmatpush1.bf16.xpose.msra.mxu0 0
    %2447 = vmatprep.subr.bf16.mxu0 0
    %2448 = vmatpush1.bf16.xpose.msra.mxu0 0
    %2449 = vmatprep.subr.bf16.mxu0 0
    %2450 = vmatpush1.bf16.xpose.msra.mxu0 0
    %2451 = vmatprep.subr.bf16.mxu0 0
    %2452 = vmatpush1.bf16.xpose.msra.mxu0 0
    %2453 = vmatprep.subr.bf16.mxu0 0
    %2454 = vmatpush1.bf16.xpose.msra.mxu0 0
    %2455 = vmatprep.subr.bf16.mxu0 0
    %2456 = vmatpush1.bf16.xpose.msra.mxu0 0
    %2457 = vmatprep.subr.bf16.mxu0 0
    %2458 = vmatpush1.bf16.xpose.msra.mxu0 0
    %2459 = vmatprep.subr.bf16.mxu0 0
    %2460 = vmatpush1.bf16.xpose.msra.mxu0 0
    %2461 = vmatprep.subr.bf16.mxu0 0
    %2462 = vmatpush1.bf16.xpose.msra.mxu0 0
    %2463 = vmatprep.subr.bf16.mxu0 0
    %2464 = vmatpush1.bf16.xpose.msra.mxu0 0
    %2465 = vmatprep.mubr.bf16.mxu0 0
    %2466 = vmatmul.mubr.bf16.gmra.mrb[0].mxu0 %v2410
    %v2467 = vpop.f32.mrb[0].mxu0
    %v2468 = vadd.f32 0.0, %v2467
    %v2469 = vpop.f32.mrb[0].mxu0
    %v2470 = vpop.f32.mrb[0].mxu0
    %v2471 = vadd.f32 0.0, %v2470
    %v2472 = vpop.f32.mrb[0].mxu0
    %2473 = vmatprep.mubr.bf16.mxu0 0
    %2474 = vmatmul.mubr.bf16.gmra.mrb[0].mxu0 %v2413
    %v2475 = vpop.f32.mrb[0].mxu0
    %v2476 = vadd.f32 0.0, %v2475
    %v2477 = vpop.f32.mrb[0].mxu0
    %v2478 = vpop.f32.mrb[0].mxu0
    %v2479 = vadd.f32 0.0, %v2478
    %v2480 = vpop.f32.mrb[0].mxu0
    %2481 = vmatprep.mubr.bf16.mxu0 0
    %2482 = vmatmul.mubr.bf16.gmra.mrb[0].mxu0 %v2416
    %v2483 = vpop.f32.mrb[0].mxu0
    %v2484 = vadd.f32 0.0, %v2483
    %v2485 = vpop.f32.mrb[0].mxu0
    %v2486 = vpop.f32.mrb[0].mxu0
    %v2487 = vadd.f32 0.0, %v2486
    %v2488 = vpop.f32.mrb[0].mxu0
    %2489 = vmatprep.mubr.bf16.mxu0 0
    %2490 = vmatmul.mubr.bf16.gmra.mrb[0].mxu0 %v2419
    %v2491 = vpop.f32.mrb[0].mxu0
    %v2492 = vadd.f32 0.0, %v2491
    %v2493 = vpop.f32.mrb[0].mxu0
    %v2494 = vpop.f32.mrb[0].mxu0
    %v2495 = vadd.f32 0.0, %v2494
    %v2496 = vpop.f32.mrb[0].mxu0
    %2497 = vdwg.mxu0
    %v2498 = vsel %vm651, %v2468, -inf
    %2499 = vmax.xlane.f32.xlu0 %v2498
    %v2500 = vpop.xlane.xlu0 %2499
    %v2501 = vsel %vm651, %v2471, -inf
    %2502 = vmax.xlane.f32.xlu0 %v2501
    %v2503 = vpop.xlane.xlu0 %2502
    %v2504 = vsel %vm651, %v2476, -inf
    %2505 = vmax.xlane.f32.xlu0 %v2504
    %v2506 = vpop.xlane.xlu0 %2505
    %v2507 = vsel %vm651, %v2479, -inf
    %2508 = vmax.xlane.f32.xlu0 %v2507
    %v2509 = vpop.xlane.xlu0 %2508
    %v2510 = vsel %vm651, %v2484, -inf
    %2511 = vmax.xlane.f32.xlu0 %v2510
    %v2512 = vpop.xlane.xlu0 %2511
    %v2513 = vsel %vm651, %v2487, -inf
    %2514 = vmax.xlane.f32.xlu0 %v2513
    %v2515 = vpop.xlane.xlu0 %2514
    %v2516 = vsel %vm651, %v2492, -inf
    %2517 = vmax.xlane.f32.xlu0 %v2516
    %v2518 = vpop.xlane.xlu0 %2517
    %v2519 = vsel %vm651, %v2495, -inf
    %2520 = vmax.xlane.f32.xlu0 %v2519
    %v2521 = vpop.xlane.xlu0 %2520
    %v2522 = vsub.f32 %v2468, %v2500
    %v2523 = vsub.f32 %v2471, %v2503
    %v2524 = vsub.f32 %v2476, %v2506
    %v2525 = vsub.f32 %v2479, %v2509
    %v2526 = vsub.f32 %v2484, %v2512
    %v2527 = vsub.f32 %v2487, %v2515
    %v2528 = vsub.f32 %v2492, %v2518
    %v2529 = vsub.f32 %v2495, %v2521
    %v2530 = vpack.c.bf16 %v2523, %v2522
    %v2531 = vpack.c.bf16 %v2525, %v2524
    %v2532 = vpack.c.bf16 %v2527, %v2526
    %v2533 = vpack.c.bf16 %v2529, %v2528
    %v2535 = vmul.bf16 %v2530, 1069105081
    %v2536 = vpow.bf16.pop %v2535
    %v2538 = vmul.bf16 %v2531, 1069105081
    %v2539 = vpow.bf16.pop %v2538
    %v2541 = vmul.bf16 %v2532, 1069105081
    %v2542 = vpow.bf16.pop %v2541
    %v2544 = vmul.bf16 %v2533, 1069105081
    %v2545 = vpow.bf16.pop %v2544
    %v2546 = vunpack.c.l.bf16 %v2536
    %v2547 = vunpack.c.h.bf16 %v2536
    %v2548 = vunpack.c.l.bf16 %v2539
    %v2549 = vunpack.c.h.bf16 %v2539
    %v2550 = vunpack.c.l.bf16 %v2542
    %v2551 = vunpack.c.h.bf16 %v2542
    %v2552 = vunpack.c.l.bf16 %v2545
    %v2553 = vunpack.c.h.bf16 %v2545
    %v2554 = vsel %vm651, %v2546, 0.0
    %2555 = vadd.xlane.f32.xlu0 %v2554
    %v2556 = vpop.xlane.xlu0 %2555
    %v2557 = vsel %vm651, %v2547, 0.0
    %2558 = vadd.xlane.f32.xlu0 %v2557
    %v2559 = vpop.xlane.xlu0 %2558
    %v2560 = vsel %vm651, %v2548, 0.0
    %2561 = vadd.xlane.f32.xlu0 %v2560
    %v2562 = vpop.xlane.xlu0 %2561
    %v2563 = vsel %vm651, %v2549, 0.0
    %2564 = vadd.xlane.f32.xlu0 %v2563
    %v2565 = vpop.xlane.xlu0 %2564
    %v2566 = vsel %vm651, %v2550, 0.0
    %2567 = vadd.xlane.f32.xlu0 %v2566
    %v2568 = vpop.xlane.xlu0 %2567
    %v2569 = vsel %vm651, %v2551, 0.0
    %2570 = vadd.xlane.f32.xlu0 %v2569
    %v2571 = vpop.xlane.xlu0 %2570
    %v2572 = vsel %vm651, %v2552, 0.0
    %2573 = vadd.xlane.f32.xlu0 %v2572
    %v2574 = vpop.xlane.xlu0 %2573
    %v2575 = vsel %vm651, %v2553, 0.0
    %2576 = vadd.xlane.f32.xlu0 %v2575
    %v2577 = vpop.xlane.xlu0 %2576
    %2578 = vrot.lane.b32.xlu0 %v551, 112
    %v2579 = vpop.permute.xlu0 %2578
    %2580 = vrot.lane.b32.xlu0 %v554, 112
    %v2581 = vpop.permute.xlu0 %2580
    %2582 = vrot.lane.b32.xlu0 %v557, 112
    %v2583 = vpop.permute.xlu0 %2582
    %2584 = vrot.lane.b32.xlu0 %v560, 112
    %v2585 = vpop.permute.xlu0 %2584
    %v2591 = vsel %vm651, %v2536, 0
    %v2594 = vsel %vm651, %v2539, 0
    %v2597 = vsel %vm651, %v2542, 0
    %v2600 = vsel %vm651, %v2545, 0
    %2602 = vmatprep.subr.bf16.mxu0 0
    %2603 = vmatpush1.bf16.msra.mxu0 %v2579
    %2604 = vmatprep.subr.bf16.mxu0 0
    %2605 = vmatpush1.bf16.msra.mxu0 %v2581
    %2606 = vmatprep.subr.bf16.mxu0 0
    %2607 = vmatpush1.bf16.msra.mxu0 %v2583
    %2608 = vmatprep.subr.bf16.mxu0 0
    %2609 = vmatpush1.bf16.msra.mxu0 %v2585
    %2610 = vmatprep.subr.bf16.mxu0 0
    %2611 = vmatpush1.bf16.msra.mxu0 0
    %2612 = vmatprep.subr.bf16.mxu0 0
    %2613 = vmatpush1.bf16.msra.mxu0 0
    %2614 = vmatprep.subr.bf16.mxu0 0
    %2615 = vmatpush1.bf16.msra.mxu0 0
    %2616 = vmatprep.subr.bf16.mxu0 0
    %2617 = vmatpush1.bf16.msra.mxu0 0
    %2618 = vmatprep.subr.bf16.mxu0 0
    %2619 = vmatpush1.bf16.msra.mxu0 0
    %2620 = vmatprep.subr.bf16.mxu0 0
    %2621 = vmatpush1.bf16.msra.mxu0 0
    %2622 = vmatprep.subr.bf16.mxu0 0
    %2623 = vmatpush1.bf16.msra.mxu0 0
    %2624 = vmatprep.subr.bf16.mxu0 0
    %2625 = vmatpush1.bf16.msra.mxu0 0
    %2626 = vmatprep.subr.bf16.mxu0 0
    %2627 = vmatpush1.bf16.msra.mxu0 0
    %2628 = vmatprep.subr.bf16.mxu0 0
    %2629 = vmatpush1.bf16.msra.mxu0 0
    %2630 = vmatprep.subr.bf16.mxu0 0
    %2631 = vmatpush1.bf16.msra.mxu0 0
    %2632 = vmatprep.subr.bf16.mxu0 0
    %2633 = vmatpush1.bf16.msra.mxu0 0
    %2634 = vmatprep.mubr.bf16.mxu0 0
    %2635 = vmatmul.mubr.bf16.gmra.mrb[0].mxu0 %v2591
    %v2636 = vpop.f32.mrb[0].mxu0
    %v2637 = vadd.f32 0.0, %v2636
    %v2638 = vpop.f32.mrb[0].mxu0
    %v2639 = vpop.f32.mrb[0].mxu0
    %v2640 = vadd.f32 0.0, %v2639
    %v2641 = vpop.f32.mrb[0].mxu0
    %2642 = vmatprep.mubr.bf16.mxu0 0
    %2643 = vmatmul.mubr.bf16.gmra.mrb[0].mxu0 %v2594
    %v2644 = vpop.f32.mrb[0].mxu0
    %v2645 = vadd.f32 0.0, %v2644
    %v2646 = vpop.f32.mrb[0].mxu0
    %v2647 = vpop.f32.mrb[0].mxu0
    %v2648 = vadd.f32 0.0, %v2647
    %v2649 = vpop.f32.mrb[0].mxu0
    %2650 = vmatprep.mubr.bf16.mxu0 0
    %2651 = vmatmul.mubr.bf16.gmra.mrb[0].mxu0 %v2597
    %v2652 = vpop.f32.mrb[0].mxu0
    %v2653 = vadd.f32 0.0, %v2652
    %v2654 = vpop.f32.mrb[0].mxu0
    %v2655 = vpop.f32.mrb[0].mxu0
    %v2656 = vadd.f32 0.0, %v2655
    %v2657 = vpop.f32.mrb[0].mxu0
    %2658 = vmatprep.mubr.bf16.mxu0 0
    %2659 = vmatmul.mubr.bf16.gmra.mrb[0].mxu0 %v2600
    %v2660 = vpop.f32.mrb[0].mxu0
    %v2661 = vadd.f32 0.0, %v2660
    %v2662 = vpop.f32.mrb[0].mxu0
    %v2663 = vpop.f32.mrb[0].mxu0
    %v2664 = vadd.f32 0.0, %v2663
    %v2665 = vpop.f32.mrb[0].mxu0
    %2666 = vdwg.mxu0
    %v2667 = vrcp.pop %v2556
    %v2668 = vrcp.pop %v2559
    %v2669 = vrcp.pop %v2562
    %v2670 = vrcp.pop %v2565
    %v2671 = vrcp.pop %v2568
    %v2672 = vrcp.pop %v2571
    %v2673 = vrcp.pop %v2574
    %v2674 = vrcp.pop %v2577
    %v2675 = vmul.f32 %v2637, %v2667
    %v2676 = vmul.f32 %v2640, %v2668
    %v2677 = vmul.f32 %v2645, %v2669
    %v2678 = vmul.f32 %v2648, %v2670
    %v2679 = vmul.f32 %v2653, %v2671
    %v2680 = vmul.f32 %v2656, %v2672
    %v2681 = vmul.f32 %v2661, %v2673
    %v2682 = vmul.f32 %v2664, %v2674
    %2683 = vrot.lane.b32.xlu0 %v549, 104
    %v2684 = vpop.permute.xlu0 %2683
    %2685 = vrot.lane.b32.xlu0 %v552, 104
    %v2686 = vpop.permute.xlu0 %2685
    %2687 = vrot.lane.b32.xlu0 %v555, 104
    %v2688 = vpop.permute.xlu0 %2687
    %2689 = vrot.lane.b32.xlu0 %v558, 104
    %v2690 = vpop.permute.xlu0 %2689
    %2691 = vrot.lane.b32.xlu0 %v550, 104
    %v2692 = vpop.permute.xlu0 %2691
    %2693 = vrot.lane.b32.xlu0 %v553, 104
    %v2694 = vpop.permute.xlu0 %2693
    %2695 = vrot.lane.b32.xlu0 %v556, 104
    %v2696 = vpop.permute.xlu0 %2695
    %2697 = vrot.lane.b32.xlu0 %v559, 104
    %v2698 = vpop.permute.xlu0 %2697
    %v2700 = vsel %vm561, %v2684, 0
    %v2703 = vsel %vm561, %v2686, 0
    %v2706 = vsel %vm561, %v2688, 0
    %v2709 = vsel %vm561, %v2690, 0
    %v2712 = vsel %vm561, %v2692, 0
    %v2715 = vsel %vm561, %v2694, 0
    %v2718 = vsel %vm561, %v2696, 0
    %v2721 = vsel %vm561, %v2698, 0
    %2723 = vmatprep.subr.bf16.mxu0 0
    %2724 = vmatpush1.bf16.xpose.msra.mxu0 %v2712
    %2725 = vmatprep.subr.bf16.mxu0 0
    %2726 = vmatpush1.bf16.xpose.msra.mxu0 %v2715
    %2727 = vmatprep.subr.bf16.mxu0 0
    %2728 = vmatpush1.bf16.xpose.msra.mxu0 %v2718
    %2729 = vmatprep.subr.bf16.mxu0 0
    %2730 = vmatpush1.bf16.xpose.msra.mxu0 %v2721
    %2731 = vmatprep.subr.bf16.mxu0 0
    %2732 = vmatpush1.bf16.xpose.msra.mxu0 0
    %2733 = vmatprep.subr.bf16.mxu0 0
    %2734 = vmatpush1.bf16.xpose.msra.mxu0 0
    %2735 = vmatprep.subr.bf16.mxu0 0
    %2736 = vmatpush1.bf16.xpose.msra.mxu0 0
    %2737 = vmatprep.subr.bf16.mxu0 0
    %2738 = vmatpush1.bf16.xpose.msra.mxu0 0
    %2739 = vmatprep.subr.bf16.mxu0 0
    %2740 = vmatpush1.bf16.xpose.msra.mxu0 0
    %2741 = vmatprep.subr.bf16.mxu0 0
    %2742 = vmatpush1.bf16.xpose.msra.mxu0 0
    %2743 = vmatprep.subr.bf16.mxu0 0
    %2744 = vmatpush1.bf16.xpose.msra.mxu0 0
    %2745 = vmatprep.subr.bf16.mxu0 0
    %2746 = vmatpush1.bf16.xpose.msra.mxu0 0
    %2747 = vmatprep.subr.bf16.mxu0 0
    %2748 = vmatpush1.bf16.xpose.msra.mxu0 0
    %2749 = vmatprep.subr.bf16.mxu0 0
    %2750 = vmatpush1.bf16.xpose.msra.mxu0 0
    %2751 = vmatprep.subr.bf16.mxu0 0
    %2752 = vmatpush1.bf16.xpose.msra.mxu0 0
    %2753 = vmatprep.subr.bf16.mxu0 0
    %2754 = vmatpush1.bf16.xpose.msra.mxu0 0
    %2755 = vmatprep.mubr.bf16.mxu0 0
    %2756 = vmatmul.mubr.bf16.gmra.mrb[0].mxu0 %v2700
    %v2757 = vpop.f32.mrb[0].mxu0
    %v2758 = vadd.f32 0.0, %v2757
    %v2759 = vpop.f32.mrb[0].mxu0
    %v2760 = vpop.f32.mrb[0].mxu0
    %v2761 = vadd.f32 0.0, %v2760
    %v2762 = vpop.f32.mrb[0].mxu0
    %2763 = vmatprep.mubr.bf16.mxu0 0
    %2764 = vmatmul.mubr.bf16.gmra.mrb[0].mxu0 %v2703
    %v2765 = vpop.f32.mrb[0].mxu0
    %v2766 = vadd.f32 0.0, %v2765
    %v2767 = vpop.f32.mrb[0].mxu0
    %v2768 = vpop.f32.mrb[0].mxu0
    %v2769 = vadd.f32 0.0, %v2768
    %v2770 = vpop.f32.mrb[0].mxu0
    %2771 = vmatprep.mubr.bf16.mxu0 0
    %2772 = vmatmul.mubr.bf16.gmra.mrb[0].mxu0 %v2706
    %v2773 = vpop.f32.mrb[0].mxu0
    %v2774 = vadd.f32 0.0, %v2773
    %v2775 = vpop.f32.mrb[0].mxu0
    %v2776 = vpop.f32.mrb[0].mxu0
    %v2777 = vadd.f32 0.0, %v2776
    %v2778 = vpop.f32.mrb[0].mxu0
    %2779 = vmatprep.mubr.bf16.mxu0 0
    %2780 = vmatmul.mubr.bf16.gmra.mrb[0].mxu0 %v2709
    %v2781 = vpop.f32.mrb[0].mxu0
    %v2782 = vadd.f32 0.0, %v2781
    %v2783 = vpop.f32.mrb[0].mxu0
    %v2784 = vpop.f32.mrb[0].mxu0
    %v2785 = vadd.f32 0.0, %v2784
    %v2786 = vpop.f32.mrb[0].mxu0
    %2787 = vdwg.mxu0
    %v2788 = vsel %vm651, %v2758, -inf
    %2789 = vmax.xlane.f32.xlu0 %v2788
    %v2790 = vpop.xlane.xlu0 %2789
    %v2791 = vsel %vm651, %v2761, -inf
    %2792 = vmax.xlane.f32.xlu0 %v2791
    %v2793 = vpop.xlane.xlu0 %2792
    %v2794 = vsel %vm651, %v2766, -inf
    %2795 = vmax.xlane.f32.xlu0 %v2794
    %v2796 = vpop.xlane.xlu0 %2795
    %v2797 = vsel %vm651, %v2769, -inf
    %2798 = vmax.xlane.f32.xlu0 %v2797
    %v2799 = vpop.xlane.xlu0 %2798
    %v2800 = vsel %vm651, %v2774, -inf
    %2801 = vmax.xlane.f32.xlu0 %v2800
    %v2802 = vpop.xlane.xlu0 %2801
    %v2803 = vsel %vm651, %v2777, -inf
    %2804 = vmax.xlane.f32.xlu0 %v2803
    %v2805 = vpop.xlane.xlu0 %2804
    %v2806 = vsel %vm651, %v2782, -inf
    %2807 = vmax.xlane.f32.xlu0 %v2806
    %v2808 = vpop.xlane.xlu0 %2807
    %v2809 = vsel %vm651, %v2785, -inf
    %2810 = vmax.xlane.f32.xlu0 %v2809
    %v2811 = vpop.xlane.xlu0 %2810
    %v2812 = vsub.f32 %v2758, %v2790
    %v2813 = vsub.f32 %v2761, %v2793
    %v2814 = vsub.f32 %v2766, %v2796
    %v2815 = vsub.f32 %v2769, %v2799
    %v2816 = vsub.f32 %v2774, %v2802
    %v2817 = vsub.f32 %v2777, %v2805
    %v2818 = vsub.f32 %v2782, %v2808
    %v2819 = vsub.f32 %v2785, %v2811
    %v2820 = vpack.c.bf16 %v2813, %v2812
    %v2821 = vpack.c.bf16 %v2815, %v2814
    %v2822 = vpack.c.bf16 %v2817, %v2816
    %v2823 = vpack.c.bf16 %v2819, %v2818
    %v2825 = vmul.bf16 %v2820, 1069105081
    %v2826 = vpow.bf16.pop %v2825
    %v2828 = vmul.bf16 %v2821, 1069105081
    %v2829 = vpow.bf16.pop %v2828
    %v2831 = vmul.bf16 %v2822, 1069105081
    %v2832 = vpow.bf16.pop %v2831
    %v2834 = vmul.bf16 %v2823, 1069105081
    %v2835 = vpow.bf16.pop %v2834
    %v2836 = vunpack.c.l.bf16 %v2826
    %v2837 = vunpack.c.h.bf16 %v2826
    %v2838 = vunpack.c.l.bf16 %v2829
    %v2839 = vunpack.c.h.bf16 %v2829
    %v2840 = vunpack.c.l.bf16 %v2832
    %v2841 = vunpack.c.h.bf16 %v2832
    %v2842 = vunpack.c.l.bf16 %v2835
    %v2843 = vunpack.c.h.bf16 %v2835
    %v2844 = vsel %vm651, %v2836, 0.0
    %2845 = vadd.xlane.f32.xlu0 %v2844
    %v2846 = vpop.xlane.xlu0 %2845
    %v2847 = vsel %vm651, %v2837, 0.0
    %2848 = vadd.xlane.f32.xlu0 %v2847
    %v2849 = vpop.xlane.xlu0 %2848
    %v2850 = vsel %vm651, %v2838, 0.0
    %2851 = vadd.xlane.f32.xlu0 %v2850
    %v2852 = vpop.xlane.xlu0 %2851
    %v2853 = vsel %vm651, %v2839, 0.0
    %2854 = vadd.xlane.f32.xlu0 %v2853
    %v2855 = vpop.xlane.xlu0 %2854
    %v2856 = vsel %vm651, %v2840, 0.0
    %2857 = vadd.xlane.f32.xlu0 %v2856
    %v2858 = vpop.xlane.xlu0 %2857
    %v2859 = vsel %vm651, %v2841, 0.0
    %2860 = vadd.xlane.f32.xlu0 %v2859
    %v2861 = vpop.xlane.xlu0 %2860
    %v2862 = vsel %vm651, %v2842, 0.0
    %2863 = vadd.xlane.f32.xlu0 %v2862
    %v2864 = vpop.xlane.xlu0 %2863
    %v2865 = vsel %vm651, %v2843, 0.0
    %2866 = vadd.xlane.f32.xlu0 %v2865
    %v2867 = vpop.xlane.xlu0 %2866
    %2868 = vrot.lane.b32.xlu0 %v551, 104
    %v2869 = vpop.permute.xlu0 %2868
    %2870 = vrot.lane.b32.xlu0 %v554, 104
    %v2871 = vpop.permute.xlu0 %2870
    %2872 = vrot.lane.b32.xlu0 %v557, 104
    %v2873 = vpop.permute.xlu0 %2872
    %2874 = vrot.lane.b32.xlu0 %v560, 104
    %v2875 = vpop.permute.xlu0 %2874
    %v2881 = vsel %vm651, %v2826, 0
    %v2884 = vsel %vm651, %v2829, 0
    %v2887 = vsel %vm651, %v2832, 0
    %v2890 = vsel %vm651, %v2835, 0
    %2892 = vmatprep.subr.bf16.mxu0 0
    %2893 = vmatpush1.bf16.msra.mxu0 %v2869
    %2894 = vmatprep.subr.bf16.mxu0 0
    %2895 = vmatpush1.bf16.msra.mxu0 %v2871
    %2896 = vmatprep.subr.bf16.mxu0 0
    %2897 = vmatpush1.bf16.msra.mxu0 %v2873
    %2898 = vmatprep.subr.bf16.mxu0 0
    %2899 = vmatpush1.bf16.msra.mxu0 %v2875
    %2900 = vmatprep.subr.bf16.mxu0 0
    %2901 = vmatpush1.bf16.msra.mxu0 0
    %2902 = vmatprep.subr.bf16.mxu0 0
    %2903 = vmatpush1.bf16.msra.mxu0 0
    %2904 = vmatprep.subr.bf16.mxu0 0
    %2905 = vmatpush1.bf16.msra.mxu0 0
    %2906 = vmatprep.subr.bf16.mxu0 0
    %2907 = vmatpush1.bf16.msra.mxu0 0
    %2908 = vmatprep.subr.bf16.mxu0 0
    %2909 = vmatpush1.bf16.msra.mxu0 0
    %2910 = vmatprep.subr.bf16.mxu0 0
    %2911 = vmatpush1.bf16.msra.mxu0 0
    %2912 = vmatprep.subr.bf16.mxu0 0
    %2913 = vmatpush1.bf16.msra.mxu0 0
    %2914 = vmatprep.subr.bf16.mxu0 0
    %2915 = vmatpush1.bf16.msra.mxu0 0
    %2916 = vmatprep.subr.bf16.mxu0 0
    %2917 = vmatpush1.bf16.msra.mxu0 0
    %2918 = vmatprep.subr.bf16.mxu0 0
    %2919 = vmatpush1.bf16.msra.mxu0 0
    %2920 = vmatprep.subr.bf16.mxu0 0
    %2921 = vmatpush1.bf16.msra.mxu0 0
    %2922 = vmatprep.subr.bf16.mxu0 0
    %2923 = vmatpush1.bf16.msra.mxu0 0
    %2924 = vmatprep.mubr.bf16.mxu0 0
    %2925 = vmatmul.mubr.bf16.gmra.mrb[0].mxu0 %v2881
    %v2926 = vpop.f32.mrb[0].mxu0
    %v2927 = vadd.f32 0.0, %v2926
    %v2928 = vpop.f32.mrb[0].mxu0
    %v2929 = vpop.f32.mrb[0].mxu0
    %v2930 = vadd.f32 0.0, %v2929
    %v2931 = vpop.f32.mrb[0].mxu0
    %2932 = vmatprep.mubr.bf16.mxu0 0
    %2933 = vmatmul.mubr.bf16.gmra.mrb[0].mxu0 %v2884
    %v2934 = vpop.f32.mrb[0].mxu0
    %v2935 = vadd.f32 0.0, %v2934
    %v2936 = vpop.f32.mrb[0].mxu0
    %v2937 = vpop.f32.mrb[0].mxu0
    %v2938 = vadd.f32 0.0, %v2937
    %v2939 = vpop.f32.mrb[0].mxu0
    %2940 = vmatprep.mubr.bf16.mxu0 0
    %2941 = vmatmul.mubr.bf16.gmra.mrb[0].mxu0 %v2887
    %v2942 = vpop.f32.mrb[0].mxu0
    %v2943 = vadd.f32 0.0, %v2942
    %v2944 = vpop.f32.mrb[0].mxu0
    %v2945 = vpop.f32.mrb[0].mxu0
    %v2946 = vadd.f32 0.0, %v2945
    %v2947 = vpop.f32.mrb[0].mxu0
    %2948 = vmatprep.mubr.bf16.mxu0 0
    %2949 = vmatmul.mubr.bf16.gmra.mrb[0].mxu0 %v2890
    %v2950 = vpop.f32.mrb[0].mxu0
    %v2951 = vadd.f32 0.0, %v2950
    %v2952 = vpop.f32.mrb[0].mxu0
    %v2953 = vpop.f32.mrb[0].mxu0
    %v2954 = vadd.f32 0.0, %v2953
    %v2955 = vpop.f32.mrb[0].mxu0
    %2956 = vdwg.mxu0
    %v2957 = vrcp.pop %v2846
    %v2958 = vrcp.pop %v2849
    %v2959 = vrcp.pop %v2852
    %v2960 = vrcp.pop %v2855
    %v2961 = vrcp.pop %v2858
    %v2962 = vrcp.pop %v2861
    %v2963 = vrcp.pop %v2864
    %v2964 = vrcp.pop %v2867
    %v2965 = vmul.f32 %v2927, %v2957
    %v2966 = vmul.f32 %v2930, %v2958
    %v2967 = vmul.f32 %v2935, %v2959
    %v2968 = vmul.f32 %v2938, %v2960
    %v2969 = vmul.f32 %v2943, %v2961
    %v2970 = vmul.f32 %v2946, %v2962
    %v2971 = vmul.f32 %v2951, %v2963
    %v2972 = vmul.f32 %v2954, %v2964
    %2981 = vrot.lane.b32.xlu0 %v2385, 8
    %v2982 = vpop.permute.xlu0 %2981
    %2983 = vrot.lane.b32.xlu0 %v2386, 8
    %v2984 = vpop.permute.xlu0 %2983
    %2985 = vrot.lane.b32.xlu0 %v2387, 8
    %v2986 = vpop.permute.xlu0 %2985
    %2987 = vrot.lane.b32.xlu0 %v2388, 8
    %v2988 = vpop.permute.xlu0 %2987
    %2989 = vrot.lane.b32.xlu0 %v2389, 8
    %v2990 = vpop.permute.xlu0 %2989
    %2991 = vrot.lane.b32.xlu0 %v2390, 8
    %v2992 = vpop.permute.xlu0 %2991
    %2993 = vrot.lane.b32.xlu0 %v2391, 8
    %v2994 = vpop.permute.xlu0 %2993
    %2995 = vrot.lane.b32.xlu0 %v2392, 8
    %v2996 = vpop.permute.xlu0 %2995
    %3013 = vrot.lane.b32.xlu0 %v2675, 16
    %v3014 = vpop.permute.xlu0 %3013
    %3015 = vrot.lane.b32.xlu0 %v2676, 16
    %v3016 = vpop.permute.xlu0 %3015
    %3017 = vrot.lane.b32.xlu0 %v2677, 16
    %v3018 = vpop.permute.xlu0 %3017
    %3019 = vrot.lane.b32.xlu0 %v2678, 16
    %v3020 = vpop.permute.xlu0 %3019
    %3021 = vrot.lane.b32.xlu0 %v2679, 16
    %v3022 = vpop.permute.xlu0 %3021
    %3023 = vrot.lane.b32.xlu0 %v2680, 16
    %v3024 = vpop.permute.xlu0 %3023
    %3025 = vrot.lane.b32.xlu0 %v2681, 16
    %v3026 = vpop.permute.xlu0 %3025
    %3027 = vrot.lane.b32.xlu0 %v2682, 16
    %v3028 = vpop.permute.xlu0 %3027
    %3045 = vrot.lane.b32.xlu0 %v2965, 24
    %v3046 = vpop.permute.xlu0 %3045
    %3047 = vrot.lane.b32.xlu0 %v2966, 24
    %v3048 = vpop.permute.xlu0 %3047
    %3049 = vrot.lane.b32.xlu0 %v2967, 24
    %v3050 = vpop.permute.xlu0 %3049
    %3051 = vrot.lane.b32.xlu0 %v2968, 24
    %v3052 = vpop.permute.xlu0 %3051
    %3053 = vrot.lane.b32.xlu0 %v2969, 24
    %v3054 = vpop.permute.xlu0 %3053
    %3055 = vrot.lane.b32.xlu0 %v2970, 24
    %v3056 = vpop.permute.xlu0 %3055
    %3057 = vrot.lane.b32.xlu0 %v2971, 24
    %v3058 = vpop.permute.xlu0 %3057
    %3059 = vrot.lane.b32.xlu0 %v2972, 24
    %v3060 = vpop.permute.xlu0 %3059
    %v3069 = vsel %vm561, %v2083, %v2982
    %v3070 = vsel %vm561, %v2084, %v2984
    %v3071 = vsel %vm561, %v2085, %v2986
    %v3072 = vsel %vm561, %v2086, %v2988
    %v3073 = vsel %vm561, %v2087, %v2990
    %v3074 = vsel %vm561, %v2088, %v2992
    %v3075 = vsel %vm561, %v2089, %v2994
    %v3076 = vsel %vm561, %v2090, %v2996
    %v3077 = vsel %vm1811, %v3069, %v3014
    %v3078 = vsel %vm1811, %v3070, %v3016
    %v3079 = vsel %vm1811, %v3071, %v3018
    %v3080 = vsel %vm1811, %v3072, %v3020
    %v3081 = vsel %vm1811, %v3073, %v3022
    %v3082 = vsel %vm1811, %v3074, %v3024
    %v3083 = vsel %vm1811, %v3075, %v3026
    %v3084 = vsel %vm1811, %v3076, %v3028
    %v3085 = vsel %vm1820, %v3077, %v3046
    %v3086 = vsel %vm1820, %v3078, %v3048
    %v3087 = vsel %vm1820, %v3079, %v3050
    %v3088 = vsel %vm1820, %v3080, %v3052
    %v3089 = vsel %vm1820, %v3081, %v3054
    %v3090 = vsel %vm1820, %v3082, %v3056
    %v3091 = vsel %vm1820, %v3083, %v3058
    %v3092 = vsel %vm1820, %v3084, %v3060
    %v3093 = vpack.c.bf16 %v1822, %v1821
    %v3094 = vpack.c.bf16 %v1824, %v1823
    %v3095 = vpack.c.bf16 %v1826, %v1825
    %v3096 = vpack.c.bf16 %v1828, %v1827
    %v3097 = vpack.c.bf16 %v3086, %v3085
    %v3098 = vpack.c.bf16 %v3088, %v3087
    %v3099 = vpack.c.bf16 %v3090, %v3089
    %v3100 = vpack.c.bf16 %v3092, %v3091
    %v3101 = vld [vmem:[#allocation8] sm:$0xf]
    %v3102 = vld [vmem:[#allocation8 + $0x4] sm:$0xf]
    %v3103 = vld [vmem:[#allocation8 + $0x8] sm:$0xf]
    %v3104 = vld [vmem:[#allocation8 + $0xc] sm:$0xf]
    %v3105 = vld [vmem:[#allocation10] sm:$0x1]
    %v3107 = vlaneseq
    %v3108 = vshrl.u32 %v3107, 7
    %v3109 = vsub.s32 0, %v3108
    %v3110 = vrot.slane %v3105, %v3109
    %v3116 = vunpack.c.l.b16 %v3101
    %v3117 = vunpack.c.l.b16 %v3102
    %v3118 = vunpack.c.l.b16 %v3103
    %v3119 = vunpack.c.l.b16 %v3104
    %v3120 = vpack.c.b16 %v3117, %v3116
    %v3121 = vpack.c.b16 %v3119, %v3118
    %vm3124 = vcmask 261120
    %v3126 = vsel %vm3124, %v3093, 0
    %v3129 = vsel %vm3124, %v3094, 0
    %v3132 = vsel %vm3124, %v3095, 0
    %v3135 = vsel %vm3124, %v3096, 0
    %v3138 = vsel %vm3124, %v3097, 0
    %v3141 = vsel %vm3124, %v3098, 0
    %v3144 = vsel %vm3124, %v3099, 0
    %v3147 = vsel %vm3124, %v3100, 0
    %3149 = vmatprep.subr.bf16.mxu0 0
    %3150 = vmatpush1.bf16.msra.mxu0 %v3120
    %3151 = vmatprep.subr.bf16.mxu0 0
    %3152 = vmatpush1.bf16.msra.mxu0 %v3121
    %3153 = vmatprep.subr.bf16.mxu0 0
    %3154 = vmatpush1.bf16.msra.mxu0 0
    %3155 = vmatprep.subr.bf16.mxu0 0
    %3156 = vmatpush1.bf16.msra.mxu0 0
    %3157 = vmatprep.subr.bf16.mxu0 0
    %3158 = vmatpush1.bf16.msra.mxu0 0
    %3159 = vmatprep.subr.bf16.mxu0 0
    %3160 = vmatpush1.bf16.msra.mxu0 0
    %3161 = vmatprep.subr.bf16.mxu0 0
    %3162 = vmatpush1.bf16.msra.mxu0 0
    %3163 = vmatprep.subr.bf16.mxu0 0
    %3164 = vmatpush1.bf16.msra.mxu0 0
    %3165 = vmatprep.subr.bf16.mxu0 0
    %3166 = vmatpush1.bf16.msra.mxu0 0
    %3167 = vmatprep.subr.bf16.mxu0 0
    %3168 = vmatpush1.bf16.msra.mxu0 0
    %3169 = vmatprep.subr.bf16.mxu0 0
    %3170 = vmatpush1.bf16.msra.mxu0 0
    %3171 = vmatprep.subr.bf16.mxu0 0
    %3172 = vmatpush1.bf16.msra.mxu0 0
    %3173 = vmatprep.subr.bf16.mxu0 0
    %3174 = vmatpush1.bf16.msra.mxu0 0
    %3175 = vmatprep.subr.bf16.mxu0 0
    %3176 = vmatpush1.bf16.msra.mxu0 0
    %3177 = vmatprep.subr.bf16.mxu0 0
    %3178 = vmatpush1.bf16.msra.mxu0 0
    %3179 = vmatprep.subr.bf16.mxu0 0
    %3180 = vmatpush1.bf16.msra.mxu0 0
    %3181 = vmatprep.mubr.bf16.mxu0 0
    %3182 = vmatmul.mubr.bf16.gmra.mrb[0].mxu0 %v3126
    %v3183 = vpop.f32.mrb[0].mxu0
    %v3184 = vadd.f32 %v3110, %v3183
    %v3185 = vpop.f32.mrb[0].mxu0
    %v3186 = vpop.f32.mrb[0].mxu0
    %v3187 = vadd.f32 %v3110, %v3186
    %v3188 = vpop.f32.mrb[0].mxu0
    %3189 = vmatprep.mubr.bf16.mxu0 0
    %3190 = vmatmul.mubr.bf16.gmra.mrb[0].mxu0 %v3129
    %v3191 = vpop.f32.mrb[0].mxu0
    %v3192 = vadd.f32 %v3110, %v3191
    %v3193 = vpop.f32.mrb[0].mxu0
    %v3194 = vpop.f32.mrb[0].mxu0
    %v3195 = vadd.f32 %v3110, %v3194
    %v3196 = vpop.f32.mrb[0].mxu0
    %3197 = vmatprep.mubr.bf16.mxu0 0
    %3198 = vmatmul.mubr.bf16.gmra.mrb[0].mxu0 %v3132
    %v3199 = vpop.f32.mrb[0].mxu0
    %v3200 = vadd.f32 %v3110, %v3199
    %v3201 = vpop.f32.mrb[0].mxu0
    %v3202 = vpop.f32.mrb[0].mxu0
    %v3203 = vadd.f32 %v3110, %v3202
    %v3204 = vpop.f32.mrb[0].mxu0
    %3205 = vmatprep.mubr.bf16.mxu0 0
    %3206 = vmatmul.mubr.bf16.gmra.mrb[0].mxu0 %v3135
    %v3207 = vpop.f32.mrb[0].mxu0
    %v3208 = vadd.f32 %v3110, %v3207
    %v3209 = vpop.f32.mrb[0].mxu0
    %v3210 = vpop.f32.mrb[0].mxu0
    %v3211 = vadd.f32 %v3110, %v3210
    %v3212 = vpop.f32.mrb[0].mxu0
    %3213 = vmatprep.mubr.bf16.mxu0 0
    %3214 = vmatmul.mubr.bf16.gmra.mrb[0].mxu0 %v3138
    %v3215 = vpop.f32.mrb[0].mxu0
    %v3216 = vadd.f32 %v3110, %v3215
    %v3217 = vpop.f32.mrb[0].mxu0
    %v3218 = vpop.f32.mrb[0].mxu0
    %v3219 = vadd.f32 %v3110, %v3218
    %v3220 = vpop.f32.mrb[0].mxu0
    %3221 = vmatprep.mubr.bf16.mxu0 0
    %3222 = vmatmul.mubr.bf16.gmra.mrb[0].mxu0 %v3141
    %v3223 = vpop.f32.mrb[0].mxu0
    %v3224 = vadd.f32 %v3110, %v3223
    %v3225 = vpop.f32.mrb[0].mxu0
    %v3226 = vpop.f32.mrb[0].mxu0
    %v3227 = vadd.f32 %v3110, %v3226
    %v3228 = vpop.f32.mrb[0].mxu0
    %3229 = vmatprep.mubr.bf16.mxu0 0
    %3230 = vmatmul.mubr.bf16.gmra.mrb[0].mxu0 %v3144
    %v3231 = vpop.f32.mrb[0].mxu0
    %v3232 = vadd.f32 %v3110, %v3231
    %v3233 = vpop.f32.mrb[0].mxu0
    %v3234 = vpop.f32.mrb[0].mxu0
    %v3235 = vadd.f32 %v3110, %v3234
    %v3236 = vpop.f32.mrb[0].mxu0
    %3237 = vmatprep.mubr.bf16.mxu0 0
    %3238 = vmatmul.mubr.bf16.gmra.mrb[0].mxu0 %v3147
    %v3239 = vpop.f32.mrb[0].mxu0
    %v3240 = vadd.f32 %v3110, %v3239
    %v3241 = vpop.f32.mrb[0].mxu0
    %v3242 = vpop.f32.mrb[0].mxu0
    %v3243 = vadd.f32 %v3110, %v3242
    %v3244 = vpop.f32.mrb[0].mxu0
    %3245 = vdwg.mxu0
    %v3246 = vpack.c.bf16 %v3187, %v3184
    %v3247 = vpack.c.bf16 %v3195, %v3192
    %v3248 = vpack.c.bf16 %v3203, %v3200
    %v3249 = vpack.c.bf16 %v3211, %v3208
    %v3250 = vpack.c.bf16 %v3219, %v3216
    %v3251 = vpack.c.bf16 %v3227, %v3224
    %v3252 = vpack.c.bf16 %v3235, %v3232
    %v3253 = vpack.c.bf16 %v3243, %v3240
    %v3262 = vunpack.c.l.b16 %v3246
    %v3263 = vunpack.c.h.b16 %v3246
    %v3264 = vunpack.c.l.b16 %v3247
    %v3265 = vunpack.c.h.b16 %v3247
    %v3266 = vunpack.c.l.b16 %v3248
    %v3267 = vunpack.c.h.b16 %v3248
    %v3268 = vunpack.c.l.b16 %v3249
    %v3269 = vunpack.c.h.b16 %v3249
    %v3270 = vunpack.c.l.b16 %v3250
    %v3271 = vunpack.c.h.b16 %v3250
    %v3272 = vunpack.c.l.b16 %v3251
    %v3273 = vunpack.c.h.b16 %v3251
    %v3274 = vunpack.c.l.b16 %v3252
    %v3275 = vunpack.c.h.b16 %v3252
    %v3276 = vunpack.c.l.b16 %v3253
    %v3277 = vunpack.c.h.b16 %v3253
    %v3278 = vpack.c.b16 %v3262, %v3262
    %v3279 = vpack.c.b16 %v3263, %v3263
    %v3280 = vpack.c.b16 %v3264, %v3264
    %v3281 = vpack.c.b16 %v3265, %v3265
    %v3282 = vpack.c.b16 %v3266, %v3266
    %v3283 = vpack.c.b16 %v3267, %v3267
    %v3284 = vpack.c.b16 %v3268, %v3268
    %v3285 = vpack.c.b16 %v3269, %v3269
    %v3286 = vpack.c.b16 %v3270, %v3270
    %v3287 = vpack.c.b16 %v3271, %v3271
    %v3288 = vpack.c.b16 %v3272, %v3272
    %v3289 = vpack.c.b16 %v3273, %v3273
    %v3290 = vpack.c.b16 %v3274, %v3274
    %v3291 = vpack.c.b16 %v3275, %v3275
    %v3292 = vpack.c.b16 %v3276, %v3276
    %v3293 = vpack.c.b16 %v3277, %v3277
    %3310 = vst [vmem:[#allocation11] sm:$0xf] %v3278
    %3311 = vst [vmem:[#allocation11 + $0x4] sm:$0xf] %v3279
    %3312 = vst [vmem:[#allocation11 + $0x8] sm:$0xf] %v3280
    %3313 = vst [vmem:[#allocation11 + $0xc] sm:$0xf] %v3281
    %3314 = vst [vmem:[#allocation11 + $0x10] sm:$0xf] %v3282
    %3315 = vst [vmem:[#allocation11 + $0x14] sm:$0xf] %v3283
    %3316 = vst [vmem:[#allocation11 + $0x18] sm:$0xf] %v3284
    %3317 = vst [vmem:[#allocation11 + $0x1c] sm:$0xf] %v3285
    %3318 = vst [vmem:[#allocation11 + $0x20] sm:$0xf] %v3286
    %3319 = vst [vmem:[#allocation11 + $0x24] sm:$0xf] %v3287
    %3320 = vst [vmem:[#allocation11 + $0x28] sm:$0xf] %v3288
    %3321 = vst [vmem:[#allocation11 + $0x2c] sm:$0xf] %v3289
    %3322 = vst [vmem:[#allocation11 + $0x30] sm:$0xf] %v3290
    %3323 = vst [vmem:[#allocation11 + $0x34] sm:$0xf] %v3291
    %3324 = vst [vmem:[#allocation11 + $0x38] sm:$0xf] %v3292
    %3325 = vst [vmem:[#allocation11 + $0x3c] sm:$0xf] %v3293
    // Predicated region
    $region42: #{tpu_custom_call.1} parent=1 // pred_check
      _
    $region43: #{tpu_custom_call.1} parent=1 // pred_check_branch
      %3327 = sbr.rel (0) target = $region45
    $region44: #{tpu_custom_call.1} parent=1 // pred_region
      %s3329 = ssub.s32 1024, 1024
      %3330 = vsyncadd [#allocation4], %s3329
      %s3331 = sshll.u32 [#allocation11], 4
      %s3332 = int_to_ptr.vmem [resolvable:$true] %s3331
      %3337 = dma.vmem_to_hbm [thread:$0]  %s3332, 1024, %s5, [#allocation4], 64, 64, 4
    $region45: #{tpu_custom_call.1} parent=1 // pred_fallthru
      _
    // Predicated region
    $region46: #{tpu_custom_call.1} parent=1 // pred_check
      _
    $region47: #{tpu_custom_call.1} parent=1 // pred_check_branch
      %3339 = sbr.rel (0) target = $region49
    $region48: #{tpu_custom_call.1} parent=1 // pred_region
      %3340 = dma.done [#allocation4], 1024
    $region49: #{tpu_custom_call.1} parent=1 // pred_fallthru
      _
    %3341 = vsyncpa [#allocation3], 1
    %3342 = vsyncpa [#allocation6], 1
    %3343 = vsyncpa [#allocation9], 1
    %3344 = vsyncpa [#allocation4], 1

</llo_original>
